<compile_context>
chip_gen: v7x
topology: tpu7x:2x2x1
jax: 0.10.0
libtpu: 0.0.40
codegen_flags: <defaults>
</compile_context>

<pallas_src>
import functools

import jax
import jax.numpy as jnp
from jax.experimental import pallas as pl
from jax.experimental.pallas import tpu as pltpu


def _round_up(x, m):
    return (x + m - 1) // m * m


def _tower_kernel(x_ref, mask_ref,
                  w0a_ref, b0a_ref, wda_ref, bda_ref, w1a_ref, b1a_ref,
                  woa_ref, boa_ref,
                  w0b_ref, b0b_ref, wdb_ref, bdb_ref, w1b_ref, b1b_ref,
                  wob_ref, bob_ref,
                  out_ref, final_ref,
                  *, num_layers, k1, k2, T, T_pad):
    x = x_ref[0]          # (dim, T_pad) bf16
    m = mask_ref[0]       # (1, T_pad)  f32  (== mask[:, 0:1, :], zero beyond T)
    # time-index row for boundary masking of the dilated taps
    t_idx = jax.lax.broadcasted_iota(jnp.int32, (1, T_pad), 1)

    def run_stage(kernel_size, w0, b0, wd, bd, w1, b1, wo, bo):
        # stage-entry 1x1 conv: (F, dim) @ (dim, T_pad)
        h = jnp.dot(w0[...], x, preferred_element_type=jnp.float32) + b0[...]

        for l in range(num_layers):
            d = 2 ** l
            # PyTorch: padding = dilation + dilation*(kernel_size-3)/2
            pad = d * (kernel_size - 1) // 2

            # Build the K dilated taps: tap k reads h[:, t + (k*d - pad)],
            # zero outside [0, T) (== Conv1d zero padding). Shift is a static
            # lane rotation (XLU); wrapped / out-of-range lanes are masked.
            taps = []
            for k in range(kernel_size):
                s = k * d - pad
                shifted = h if s == 0 else pltpu.roll(h, shift=(-s) % T_pad,
                                                      axis=1)
                valid = jnp.logical_and(t_idx + s >= 0, t_idx + s < T)
                taps.append(jnp.where(valid, shifted, 0.0))
            stacked = jnp.concatenate(taps, axis=0).astype(jnp.bfloat16)

            # one big matmul over the stacked contraction dim (K*F)
            acc = jnp.dot(wd[l], stacked,
                          preferred_element_type=jnp.float32) + bd[l]
            acc = jnp.maximum(acc, 0.0)                       # ReLU
            # layer 1x1 conv
            acc = jnp.dot(w1[l], acc.astype(jnp.bfloat16),
                          preferred_element_type=jnp.float32) + b1[l]
            # TODO(synk): nn.Dropout() treated as identity (eval-mode semantics).
            h = (h + acc) * m                                 # residual + mask

        fo = (jnp.dot(wo[...], h.astype(jnp.bfloat16),
                      preferred_element_type=jnp.float32) + bo[...]) * m
        return h, fo

    h1, f1 = run_stage(k1, w0a_ref, b0a_ref, wda_ref, bda_ref,
                       w1a_ref, b1a_ref, woa_ref, boa_ref)
    h2, f2 = run_stage(k2, w0b_ref, b0b_ref, wdb_ref, bdb_ref,
                       w1b_ref, b1b_ref, wob_ref, bob_ref)

    out_ref[0] = (h1 + h2).astype(out_ref.dtype)
    final_ref[0] = (f1 + f2).astype(final_ref.dtype)


def _rep(a):
    """Full-array BlockSpec (weights replicated across the batch grid)."""
    return pl.BlockSpec(a.shape, lambda b, n=a.ndim: (0,) * n)


def tower_forward(x_nct, mask_nct, params_s1, params_s2):
    """TowerModel.forward. x_nct: (B, dim, T), mask_nct: (B, C_mask, T)."""
    B, dim, T = x_nct.shape
    T_pad = _round_up(max(T, 128), 128)

    F = params_s1[0].shape[0]
    NC = params_s1[6].shape[0]
    L = params_s1[2].shape[0]
    k1 = params_s1[2].shape[2] // F
    k2 = params_s2[2].shape[2] // F

    # pad time up to a lane-dense multiple of 128 (zeros; kernel masks them)
    x_p = jnp.zeros((B, dim, T_pad), jnp.bfloat16)
    x_p = x_p.at[:, :, :T].set(x_nct.astype(jnp.bfloat16))
    m_p = jnp.zeros((B, 1, T_pad), jnp.float32)
    m_p = m_p.at[:, :, :T].set(mask_nct[:, 0:1, :].astype(jnp.float32))

    inputs = (x_p, m_p) + tuple(params_s1) + tuple(params_s2)

    kernel = functools.partial(_tower_kernel, num_layers=L, k1=k1, k2=k2,
                               T=T, T_pad=T_pad)

    flops = 2 * B * T_pad * sum(
        dim * F + L * ((K * F) * F + F * F) + F * NC for K in (k1, k2))
    bytes_accessed = sum(int(a.size) * a.dtype.itemsize for a in inputs)
    bytes_accessed += B * T_pad * (F + NC) * 4   # outputs

    out, fin = pl.pallas_call(
        kernel,
        out_shape=(jax.ShapeDtypeStruct((B, F, T_pad), jnp.float32),
                   jax.ShapeDtypeStruct((B, NC, T_pad), jnp.float32)),
        grid=(B,),
        in_specs=[pl.BlockSpec((1, dim, T_pad), lambda b: (b, 0, 0)),
                  pl.BlockSpec((1, 1, T_pad), lambda b: (b, 0, 0))]
                 + [_rep(a) for a in params_s1]
                 + [_rep(a) for a in params_s2],
        out_specs=(pl.BlockSpec((1, F, T_pad), lambda b: (b, 0, 0)),
                   pl.BlockSpec((1, NC, T_pad), lambda b: (b, 0, 0))),
        compiler_params=pltpu.CompilerParams(
            dimension_semantics=("parallel",),
            vmem_limit_bytes=32 * 1024 * 1024),
        cost_estimate=pl.CostEstimate(flops=int(flops), transcendentals=0,
                                      bytes_accessed=int(bytes_accessed)),
    )(*inputs)

    # slice off the time padding; already in PyTorch NCT layout
    return out[:, :, :T], fin[:, :, :T]


def init_stage_params(key, num_layers, num_f_maps, dim, num_classes,
                      kernel_size):
    """Deterministic synthetic parameters.

    Weights are stored bf16 in (C_out, C_in) layouts so they apply directly to
    NCT activations; the dilated-conv weight is pre-flattened over taps:
    wd[l, :, k*F:(k+1)*F] corresponds to the PyTorch weight[:, :, k] slice.
    Biases stay f32 with shape (C_out, 1) (broadcast over time/lanes).
    """
    ks = jax.random.split(key, 8)
    scale = 0.1
    F, NC, L, K = num_f_maps, num_classes, num_layers, kernel_size
    w0 = (jax.random.normal(ks[0], (F, dim), jnp.float32) * scale
          ).astype(jnp.bfloat16)
    b0 = jax.random.normal(ks[1], (F, 1), jnp.float32) * scale
    wd = (jax.random.normal(ks[2], (L, F, K * F), jnp.float32) * scale
          ).astype(jnp.bfloat16)
    bd = jax.random.normal(ks[3], (L, F, 1), jnp.float32) * scale
    w1 = (jax.random.normal(ks[4], (L, F, F), jnp.float32) * scale
          ).astype(jnp.bfloat16)
    b1 = jax.random.normal(ks[5], (L, F, 1), jnp.float32) * scale
    wo = (jax.random.normal(ks[6], (NC, F), jnp.float32) * scale
          ).astype(jnp.bfloat16)
    bo = jax.random.normal(ks[7], (NC, 1), jnp.float32) * scale
    return (w0, b0, wd, bd, w1, b1, wo, bo)


if __name__ == "__main__":
    # small shapes: batch=2, dim=4, T=16, num_f_maps=32, num_classes=5, layers=3
    B, dim, T = 2, 4, 16
    num_f_maps, num_classes, num_layers = 32, 5, 3

    root = jax.random.PRNGKey(0)
    kx, km, k1, k2 = jax.random.split(root, 4)

    x = jax.random.normal(kx, (B, dim, T), jnp.float32)           # NCT
    # mask like MS-TCN: (B, num_classes, T), ones with a zero tail on batch 1
    mask = jnp.ones((B, num_classes, T), jnp.float32)
    mask = mask.at[1, :, T - 4:].set(0.0)

    params_s1 = init_stage_params(k1, num_layers, num_f_maps, dim,
                                  num_classes, kernel_size=3)
    params_s2 = init_stage_params(k2, num_layers, num_f_maps, dim,
                                  num_classes, kernel_size=5)

    fwd = jax.jit(tower_forward)
    out, final_out = fwd(x, mask, params_s1, params_s2)
    out = jax.block_until_ready(out)
    final_out = jax.block_until_ready(final_out)

    assert out.shape == (B, num_f_maps, T)
    assert final_out.shape == (B, num_classes, T)
    print("KERNEL_OK")
</pallas_src>

<mosaic_0001>
module attributes {stable_mosaic.version = 11 : i64} {
  func.func @_tower_kernel(%arg0: i32, %arg1: memref<1x4x128xbf16, #tpu.memory_space<vmem>>, %arg2: memref<1x1x128xf32, #tpu.memory_space<vmem>>, %arg3: memref<32x4xbf16, #tpu.memory_space<vmem>>, %arg4: memref<32x1xf32, #tpu.memory_space<vmem>>, %arg5: memref<3x32x96xbf16, #tpu.memory_space<vmem>>, %arg6: memref<3x32x1xf32, #tpu.memory_space<vmem>>, %arg7: memref<3x32x32xbf16, #tpu.memory_space<vmem>>, %arg8: memref<3x32x1xf32, #tpu.memory_space<vmem>>, %arg9: memref<5x32xbf16, #tpu.memory_space<vmem>>, %arg10: memref<5x1xf32, #tpu.memory_space<vmem>>, %arg11: memref<32x4xbf16, #tpu.memory_space<vmem>>, %arg12: memref<32x1xf32, #tpu.memory_space<vmem>>, %arg13: memref<3x32x160xbf16, #tpu.memory_space<vmem>>, %arg14: memref<3x32x1xf32, #tpu.memory_space<vmem>>, %arg15: memref<3x32x32xbf16, #tpu.memory_space<vmem>>, %arg16: memref<3x32x1xf32, #tpu.memory_space<vmem>>, %arg17: memref<5x32xbf16, #tpu.memory_space<vmem>>, %arg18: memref<5x1xf32, #tpu.memory_space<vmem>>, %arg19: memref<1x32x128xf32, #tpu.memory_space<vmem>>, %arg20: memref<1x5x128xf32, #tpu.memory_space<vmem>>) attributes {dimension_semantics = [#tpu.dimension_semantics<parallel>], iteration_bounds = array<i64: 2>, scalar_prefetch = 0 : i64, scratch_operands = 0 : i64, tpu.core_type = #tpu.core_type<tc>, window_params = [{transform_indices = @transform_0, window_bounds = array<i64: 1, 4, 128>}, {transform_indices = @transform_1, window_bounds = array<i64: 1, 1, 128>}, {pipeline_mode = #tpu.pipeline_mode<synchronous>, transform_indices = @transform_2, window_bounds = array<i64: 32, 4>}, {pipeline_mode = #tpu.pipeline_mode<synchronous>, transform_indices = @transform_3, window_bounds = array<i64: 32, 1>}, {pipeline_mode = #tpu.pipeline_mode<synchronous>, transform_indices = @transform_4, window_bounds = array<i64: 3, 32, 96>}, {pipeline_mode = #tpu.pipeline_mode<synchronous>, transform_indices = @transform_5, window_bounds = array<i64: 3, 32, 1>}, {pipeline_mode = #tpu.pipeline_mode<synchronous>, transform_indices = @transform_6, window_bounds = array<i64: 3, 32, 32>}, {pipeline_mode = #tpu.pipeline_mode<synchronous>, transform_indices = @transform_7, window_bounds = array<i64: 3, 32, 1>}, {pipeline_mode = #tpu.pipeline_mode<synchronous>, transform_indices = @transform_8, window_bounds = array<i64: 5, 32>}, {pipeline_mode = #tpu.pipeline_mode<synchronous>, transform_indices = @transform_9, window_bounds = array<i64: 5, 1>}, {pipeline_mode = #tpu.pipeline_mode<synchronous>, transform_indices = @transform_10, window_bounds = array<i64: 32, 4>}, {pipeline_mode = #tpu.pipeline_mode<synchronous>, transform_indices = @transform_11, window_bounds = array<i64: 32, 1>}, {pipeline_mode = #tpu.pipeline_mode<synchronous>, transform_indices = @transform_12, window_bounds = array<i64: 3, 32, 160>}, {pipeline_mode = #tpu.pipeline_mode<synchronous>, transform_indices = @transform_13, window_bounds = array<i64: 3, 32, 1>}, {pipeline_mode = #tpu.pipeline_mode<synchronous>, transform_indices = @transform_14, window_bounds = array<i64: 3, 32, 32>}, {pipeline_mode = #tpu.pipeline_mode<synchronous>, transform_indices = @transform_15, window_bounds = array<i64: 3, 32, 1>}, {pipeline_mode = #tpu.pipeline_mode<synchronous>, transform_indices = @transform_16, window_bounds = array<i64: 5, 32>}, {pipeline_mode = #tpu.pipeline_mode<synchronous>, transform_indices = @transform_17, window_bounds = array<i64: 5, 1>}, {transform_indices = @transform_18, window_bounds = array<i64: 1, 32, 128>}, {transform_indices = @transform_19, window_bounds = array<i64: 1, 5, 128>}]} {
    %c0 = arith.constant 0 : index
    %c0_0 = arith.constant 0 : index
    %c0_1 = arith.constant 0 : index
    %0 = vector.load %arg1[%c0, %c0_0, %c0_1] : memref<1x4x128xbf16, #tpu.memory_space<vmem>>, vector<1x4x128xbf16>
    %1 = vector.shape_cast %0 : vector<1x4x128xbf16> to vector<4x128xbf16>
    %c0_2 = arith.constant 0 : index
    %c0_3 = arith.constant 0 : index
    %c0_4 = arith.constant 0 : index
    %2 = vector.load %arg2[%c0_2, %c0_3, %c0_4] : memref<1x1x128xf32, #tpu.memory_space<vmem>>, vector<1x1x128xf32>
    %3 = vector.shape_cast %2 : vector<1x1x128xf32> to vector<1x128xf32>
    %4 = tpu.iota {dimensions = array<i32: 1>} : vector<1x128xi32>
    %c0_5 = arith.constant 0 : index
    %c0_6 = arith.constant 0 : index
    %5 = vector.load %arg3[%c0_5, %c0_6] : memref<32x4xbf16, #tpu.memory_space<vmem>>, vector<32x4xbf16>
    %cst = arith.constant dense<0.000000e+00> : vector<32x128xf32>
    %6 = tpu.matmul %5, %1, %cst {dimension_numbers = #tpu.dot_dimension_numbers<[1], [0], [0], [1], [0, 0, 1, 1], [], []>} : vector<32x4xbf16>, vector<4x128xbf16>, vector<32x128xf32> -> vector<32x128xf32>
    %c0_7 = arith.constant 0 : index
    %c0_8 = arith.constant 0 : index
    %7 = vector.load %arg4[%c0_7, %c0_8] : memref<32x1xf32, #tpu.memory_space<vmem>>, vector<32x1xf32>
    %8 = vector.broadcast %7 : vector<32x1xf32> to vector<32x128xf32>
    %9 = arith.addf %6, %8 : vector<32x128xf32>
    %c1_i32 = arith.constant 1 : i32
    %10 = tpu.dynamic_rotate %9 by %c1_i32 dim 1 : vector<32x128xf32>, i32 -> vector<32x128xf32>
    %c-1_i32 = arith.constant -1 : i32
    %11 = vector.broadcast %c-1_i32 : i32 to vector<1x128xi32>
    %12 = arith.addi %4, %11 : vector<1x128xi32>
    %c0_i32 = arith.constant 0 : i32
    %13 = vector.broadcast %c0_i32 : i32 to vector<1x128xi32>
    %14 = arith.cmpi sge, %12, %13 : vector<1x128xi32>
    %c-1_i32_9 = arith.constant -1 : i32
    %15 = vector.broadcast %c-1_i32_9 : i32 to vector<1x128xi32>
    %16 = arith.addi %4, %15 : vector<1x128xi32>
    %c16_i32 = arith.constant 16 : i32
    %17 = vector.broadcast %c16_i32 : i32 to vector<1x128xi32>
    %18 = arith.cmpi slt, %16, %17 : vector<1x128xi32>
    %19 = arith.andi %14, %18 : vector<1x128xi1>
    %cst_10 = arith.constant 0.000000e+00 : f32
    %20 = vector.shape_cast %19 : vector<1x128xi1> to vector<1x128xi1>
    %21 = vector.broadcast %20 : vector<1x128xi1> to vector<32x128xi1>
    %22 = vector.broadcast %cst_10 : f32 to vector<32x128xf32>
    %23 = arith.select %21, %10, %22 : vector<32x128xi1>, vector<32x128xf32>
    %c0_i32_11 = arith.constant 0 : i32
    %24 = vector.broadcast %c0_i32_11 : i32 to vector<1x128xi32>
    %25 = arith.addi %4, %24 : vector<1x128xi32>
    %c0_i32_12 = arith.constant 0 : i32
    %26 = vector.broadcast %c0_i32_12 : i32 to vector<1x128xi32>
    %27 = arith.cmpi sge, %25, %26 : vector<1x128xi32>
    %c0_i32_13 = arith.constant 0 : i32
    %28 = vector.broadcast %c0_i32_13 : i32 to vector<1x128xi32>
    %29 = arith.addi %4, %28 : vector<1x128xi32>
    %c16_i32_14 = arith.constant 16 : i32
    %30 = vector.broadcast %c16_i32_14 : i32 to vector<1x128xi32>
    %31 = arith.cmpi slt, %29, %30 : vector<1x128xi32>
    %32 = arith.andi %27, %31 : vector<1x128xi1>
    %cst_15 = arith.constant 0.000000e+00 : f32
    %33 = vector.shape_cast %32 : vector<1x128xi1> to vector<1x128xi1>
    %34 = vector.broadcast %33 : vector<1x128xi1> to vector<32x128xi1>
    %35 = vector.broadcast %cst_15 : f32 to vector<32x128xf32>
    %36 = arith.select %34, %9, %35 : vector<32x128xi1>, vector<32x128xf32>
    %c127_i32 = arith.constant 127 : i32
    %37 = tpu.dynamic_rotate %9 by %c127_i32 dim 1 : vector<32x128xf32>, i32 -> vector<32x128xf32>
    %c1_i32_16 = arith.constant 1 : i32
    %38 = vector.broadcast %c1_i32_16 : i32 to vector<1x128xi32>
    %39 = arith.addi %4, %38 : vector<1x128xi32>
    %c0_i32_17 = arith.constant 0 : i32
    %40 = vector.broadcast %c0_i32_17 : i32 to vector<1x128xi32>
    %41 = arith.cmpi sge, %39, %40 : vector<1x128xi32>
    %c1_i32_18 = arith.constant 1 : i32
    %42 = vector.broadcast %c1_i32_18 : i32 to vector<1x128xi32>
    %43 = arith.addi %4, %42 : vector<1x128xi32>
    %c16_i32_19 = arith.constant 16 : i32
    %44 = vector.broadcast %c16_i32_19 : i32 to vector<1x128xi32>
    %45 = arith.cmpi slt, %43, %44 : vector<1x128xi32>
    %46 = arith.andi %41, %45 : vector<1x128xi1>
    %cst_20 = arith.constant 0.000000e+00 : f32
    %47 = vector.shape_cast %46 : vector<1x128xi1> to vector<1x128xi1>
    %48 = vector.broadcast %47 : vector<1x128xi1> to vector<32x128xi1>
    %49 = vector.broadcast %cst_20 : f32 to vector<32x128xf32>
    %50 = arith.select %48, %37, %49 : vector<32x128xi1>, vector<32x128xf32>
    %51 = tpu.concatenate %23, %36, %50 in 0 : vector<32x128xf32>, vector<32x128xf32>, vector<32x128xf32> -> vector<96x128xf32>
    %52 = arith.truncf %51 : vector<96x128xf32> to vector<96x128xbf16>
    %c0_21 = arith.constant 0 : index
    %c0_22 = arith.constant 0 : index
    %c0_23 = arith.constant 0 : index
    %53 = vector.load %arg5[%c0_21, %c0_22, %c0_23] : memref<3x32x96xbf16, #tpu.memory_space<vmem>>, vector<1x32x96xbf16>
    %54 = vector.shape_cast %53 : vector<1x32x96xbf16> to vector<32x96xbf16>
    %cst_24 = arith.constant dense<0.000000e+00> : vector<32x128xf32>
    %55 = tpu.matmul %54, %52, %cst_24 {dimension_numbers = #tpu.dot_dimension_numbers<[1], [0], [0], [1], [0, 0, 1, 1], [], []>} : vector<32x96xbf16>, vector<96x128xbf16>, vector<32x128xf32> -> vector<32x128xf32>
    %c0_25 = arith.constant 0 : index
    %c0_26 = arith.constant 0 : index
    %c0_27 = arith.constant 0 : index
    %56 = vector.load %arg6[%c0_25, %c0_26, %c0_27] : memref<3x32x1xf32, #tpu.memory_space<vmem>>, vector<1x32x1xf32>
    %57 = vector.shape_cast %56 : vector<1x32x1xf32> to vector<32x1xf32>
    %58 = vector.broadcast %57 : vector<32x1xf32> to vector<32x128xf32>
    %59 = arith.addf %55, %58 : vector<32x128xf32>
    %cst_28 = arith.constant 0.000000e+00 : f32
    %60 = vector.broadcast %cst_28 : f32 to vector<32x128xf32>
    %61 = arith.maximumf %59, %60 : vector<32x128xf32>
    %c0_29 = arith.constant 0 : index
    %c0_30 = arith.constant 0 : index
    %c0_31 = arith.constant 0 : index
    %62 = vector.load %arg7[%c0_29, %c0_30, %c0_31] : memref<3x32x32xbf16, #tpu.memory_space<vmem>>, vector<1x32x32xbf16>
    %63 = vector.shape_cast %62 : vector<1x32x32xbf16> to vector<32x32xbf16>
    %64 = arith.truncf %61 : vector<32x128xf32> to vector<32x128xbf16>
    %cst_32 = arith.constant dense<0.000000e+00> : vector<32x128xf32>
    %65 = tpu.matmul %63, %64, %cst_32 {dimension_numbers = #tpu.dot_dimension_numbers<[1], [0], [0], [1], [0, 0, 1, 1], [], []>} : vector<32x32xbf16>, vector<32x128xbf16>, vector<32x128xf32> -> vector<32x128xf32>
    %c0_33 = arith.constant 0 : index
    %c0_34 = arith.constant 0 : index
    %c0_35 = arith.constant 0 : index
    %66 = vector.load %arg8[%c0_33, %c0_34, %c0_35] : memref<3x32x1xf32, #tpu.memory_space<vmem>>, vector<1x32x1xf32>
    %67 = vector.shape_cast %66 : vector<1x32x1xf32> to vector<32x1xf32>
    %68 = vector.broadcast %67 : vector<32x1xf32> to vector<32x128xf32>
    %69 = arith.addf %65, %68 : vector<32x128xf32>
    %70 = arith.addf %9, %69 : vector<32x128xf32>
    %71 = vector.broadcast %3 : vector<1x128xf32> to vector<32x128xf32>
    %72 = arith.mulf %70, %71 : vector<32x128xf32>
    %c2_i32 = arith.constant 2 : i32
    %73 = tpu.dynamic_rotate %72 by %c2_i32 dim 1 : vector<32x128xf32>, i32 -> vector<32x128xf32>
    %c-2_i32 = arith.constant -2 : i32
    %74 = vector.broadcast %c-2_i32 : i32 to vector<1x128xi32>
    %75 = arith.addi %4, %74 : vector<1x128xi32>
    %c0_i32_36 = arith.constant 0 : i32
    %76 = vector.broadcast %c0_i32_36 : i32 to vector<1x128xi32>
    %77 = arith.cmpi sge, %75, %76 : vector<1x128xi32>
    %c-2_i32_37 = arith.constant -2 : i32
    %78 = vector.broadcast %c-2_i32_37 : i32 to vector<1x128xi32>
    %79 = arith.addi %4, %78 : vector<1x128xi32>
    %c16_i32_38 = arith.constant 16 : i32
    %80 = vector.broadcast %c16_i32_38 : i32 to vector<1x128xi32>
    %81 = arith.cmpi slt, %79, %80 : vector<1x128xi32>
    %82 = arith.andi %77, %81 : vector<1x128xi1>
    %cst_39 = arith.constant 0.000000e+00 : f32
    %83 = vector.shape_cast %82 : vector<1x128xi1> to vector<1x128xi1>
    %84 = vector.broadcast %83 : vector<1x128xi1> to vector<32x128xi1>
    %85 = vector.broadcast %cst_39 : f32 to vector<32x128xf32>
    %86 = arith.select %84, %73, %85 : vector<32x128xi1>, vector<32x128xf32>
    %c0_i32_40 = arith.constant 0 : i32
    %87 = vector.broadcast %c0_i32_40 : i32 to vector<1x128xi32>
    %88 = arith.addi %4, %87 : vector<1x128xi32>
    %c0_i32_41 = arith.constant 0 : i32
    %89 = vector.broadcast %c0_i32_41 : i32 to vector<1x128xi32>
    %90 = arith.cmpi sge, %88, %89 : vector<1x128xi32>
    %c0_i32_42 = arith.constant 0 : i32
    %91 = vector.broadcast %c0_i32_42 : i32 to vector<1x128xi32>
    %92 = arith.addi %4, %91 : vector<1x128xi32>
    %c16_i32_43 = arith.constant 16 : i32
    %93 = vector.broadcast %c16_i32_43 : i32 to vector<1x128xi32>
    %94 = arith.cmpi slt, %92, %93 : vector<1x128xi32>
    %95 = arith.andi %90, %94 : vector<1x128xi1>
    %cst_44 = arith.constant 0.000000e+00 : f32
    %96 = vector.shape_cast %95 : vector<1x128xi1> to vector<1x128xi1>
    %97 = vector.broadcast %96 : vector<1x128xi1> to vector<32x128xi1>
    %98 = vector.broadcast %cst_44 : f32 to vector<32x128xf32>
    %99 = arith.select %97, %72, %98 : vector<32x128xi1>, vector<32x128xf32>
    %c126_i32 = arith.constant 126 : i32
    %100 = tpu.dynamic_rotate %72 by %c126_i32 dim 1 : vector<32x128xf32>, i32 -> vector<32x128xf32>
    %c2_i32_45 = arith.constant 2 : i32
    %101 = vector.broadcast %c2_i32_45 : i32 to vector<1x128xi32>
    %102 = arith.addi %4, %101 : vector<1x128xi32>
    %c0_i32_46 = arith.constant 0 : i32
    %103 = vector.broadcast %c0_i32_46 : i32 to vector<1x128xi32>
    %104 = arith.cmpi sge, %102, %103 : vector<1x128xi32>
    %c2_i32_47 = arith.constant 2 : i32
    %105 = vector.broadcast %c2_i32_47 : i32 to vector<1x128xi32>
    %106 = arith.addi %4, %105 : vector<1x128xi32>
    %c16_i32_48 = arith.constant 16 : i32
    %107 = vector.broadcast %c16_i32_48 : i32 to vector<1x128xi32>
    %108 = arith.cmpi slt, %106, %107 : vector<1x128xi32>
    %109 = arith.andi %104, %108 : vector<1x128xi1>
    %cst_49 = arith.constant 0.000000e+00 : f32
    %110 = vector.shape_cast %109 : vector<1x128xi1> to vector<1x128xi1>
    %111 = vector.broadcast %110 : vector<1x128xi1> to vector<32x128xi1>
    %112 = vector.broadcast %cst_49 : f32 to vector<32x128xf32>
    %113 = arith.select %111, %100, %112 : vector<32x128xi1>, vector<32x128xf32>
    %114 = tpu.concatenate %86, %99, %113 in 0 : vector<32x128xf32>, vector<32x128xf32>, vector<32x128xf32> -> vector<96x128xf32>
    %115 = arith.truncf %114 : vector<96x128xf32> to vector<96x128xbf16>
    %c1 = arith.constant 1 : index
    %c0_50 = arith.constant 0 : index
    %c0_51 = arith.constant 0 : index
    %116 = vector.load %arg5[%c1, %c0_50, %c0_51] : memref<3x32x96xbf16, #tpu.memory_space<vmem>>, vector<1x32x96xbf16>
    %117 = vector.shape_cast %116 : vector<1x32x96xbf16> to vector<32x96xbf16>
    %cst_52 = arith.constant dense<0.000000e+00> : vector<32x128xf32>
    %118 = tpu.matmul %117, %115, %cst_52 {dimension_numbers = #tpu.dot_dimension_numbers<[1], [0], [0], [1], [0, 0, 1, 1], [], []>} : vector<32x96xbf16>, vector<96x128xbf16>, vector<32x128xf32> -> vector<32x128xf32>
    %c1_53 = arith.constant 1 : index
    %c0_54 = arith.constant 0 : index
    %c0_55 = arith.constant 0 : index
    %119 = vector.load %arg6[%c1_53, %c0_54, %c0_55] : memref<3x32x1xf32, #tpu.memory_space<vmem>>, vector<1x32x1xf32>
    %120 = vector.shape_cast %119 : vector<1x32x1xf32> to vector<32x1xf32>
    %121 = vector.broadcast %120 : vector<32x1xf32> to vector<32x128xf32>
    %122 = arith.addf %118, %121 : vector<32x128xf32>
    %cst_56 = arith.constant 0.000000e+00 : f32
    %123 = vector.broadcast %cst_56 : f32 to vector<32x128xf32>
    %124 = arith.maximumf %122, %123 : vector<32x128xf32>
    %c1_57 = arith.constant 1 : index
    %c0_58 = arith.constant 0 : index
    %c0_59 = arith.constant 0 : index
    %125 = vector.load %arg7[%c1_57, %c0_58, %c0_59] : memref<3x32x32xbf16, #tpu.memory_space<vmem>>, vector<1x32x32xbf16>
    %126 = vector.shape_cast %125 : vector<1x32x32xbf16> to vector<32x32xbf16>
    %127 = arith.truncf %124 : vector<32x128xf32> to vector<32x128xbf16>
    %cst_60 = arith.constant dense<0.000000e+00> : vector<32x128xf32>
    %128 = tpu.matmul %126, %127, %cst_60 {dimension_numbers = #tpu.dot_dimension_numbers<[1], [0], [0], [1], [0, 0, 1, 1], [], []>} : vector<32x32xbf16>, vector<32x128xbf16>, vector<32x128xf32> -> vector<32x128xf32>
    %c1_61 = arith.constant 1 : index
    %c0_62 = arith.constant 0 : index
    %c0_63 = arith.constant 0 : index
    %129 = vector.load %arg8[%c1_61, %c0_62, %c0_63] : memref<3x32x1xf32, #tpu.memory_space<vmem>>, vector<1x32x1xf32>
    %130 = vector.shape_cast %129 : vector<1x32x1xf32> to vector<32x1xf32>
    %131 = vector.broadcast %130 : vector<32x1xf32> to vector<32x128xf32>
    %132 = arith.addf %128, %131 : vector<32x128xf32>
    %133 = arith.addf %72, %132 : vector<32x128xf32>
    %134 = vector.broadcast %3 : vector<1x128xf32> to vector<32x128xf32>
    %135 = arith.mulf %133, %134 : vector<32x128xf32>
    %c4_i32 = arith.constant 4 : i32
    %136 = tpu.dynamic_rotate %135 by %c4_i32 dim 1 : vector<32x128xf32>, i32 -> vector<32x128xf32>
    %c-4_i32 = arith.constant -4 : i32
    %137 = vector.broadcast %c-4_i32 : i32 to vector<1x128xi32>
    %138 = arith.addi %4, %137 : vector<1x128xi32>
    %c0_i32_64 = arith.constant 0 : i32
    %139 = vector.broadcast %c0_i32_64 : i32 to vector<1x128xi32>
    %140 = arith.cmpi sge, %138, %139 : vector<1x128xi32>
    %c-4_i32_65 = arith.constant -4 : i32
    %141 = vector.broadcast %c-4_i32_65 : i32 to vector<1x128xi32>
    %142 = arith.addi %4, %141 : vector<1x128xi32>
    %c16_i32_66 = arith.constant 16 : i32
    %143 = vector.broadcast %c16_i32_66 : i32 to vector<1x128xi32>
    %144 = arith.cmpi slt, %142, %143 : vector<1x128xi32>
    %145 = arith.andi %140, %144 : vector<1x128xi1>
    %cst_67 = arith.constant 0.000000e+00 : f32
    %146 = vector.shape_cast %145 : vector<1x128xi1> to vector<1x128xi1>
    %147 = vector.broadcast %146 : vector<1x128xi1> to vector<32x128xi1>
    %148 = vector.broadcast %cst_67 : f32 to vector<32x128xf32>
    %149 = arith.select %147, %136, %148 : vector<32x128xi1>, vector<32x128xf32>
    %c0_i32_68 = arith.constant 0 : i32
    %150 = vector.broadcast %c0_i32_68 : i32 to vector<1x128xi32>
    %151 = arith.addi %4, %150 : vector<1x128xi32>
    %c0_i32_69 = arith.constant 0 : i32
    %152 = vector.broadcast %c0_i32_69 : i32 to vector<1x128xi32>
    %153 = arith.cmpi sge, %151, %152 : vector<1x128xi32>
    %c0_i32_70 = arith.constant 0 : i32
    %154 = vector.broadcast %c0_i32_70 : i32 to vector<1x128xi32>
    %155 = arith.addi %4, %154 : vector<1x128xi32>
    %c16_i32_71 = arith.constant 16 : i32
    %156 = vector.broadcast %c16_i32_71 : i32 to vector<1x128xi32>
    %157 = arith.cmpi slt, %155, %156 : vector<1x128xi32>
    %158 = arith.andi %153, %157 : vector<1x128xi1>
    %cst_72 = arith.constant 0.000000e+00 : f32
    %159 = vector.shape_cast %158 : vector<1x128xi1> to vector<1x128xi1>
    %160 = vector.broadcast %159 : vector<1x128xi1> to vector<32x128xi1>
    %161 = vector.broadcast %cst_72 : f32 to vector<32x128xf32>
    %162 = arith.select %160, %135, %161 : vector<32x128xi1>, vector<32x128xf32>
    %c124_i32 = arith.constant 124 : i32
    %163 = tpu.dynamic_rotate %135 by %c124_i32 dim 1 : vector<32x128xf32>, i32 -> vector<32x128xf32>
    %c4_i32_73 = arith.constant 4 : i32
    %164 = vector.broadcast %c4_i32_73 : i32 to vector<1x128xi32>
    %165 = arith.addi %4, %164 : vector<1x128xi32>
    %c0_i32_74 = arith.constant 0 : i32
    %166 = vector.broadcast %c0_i32_74 : i32 to vector<1x128xi32>
    %167 = arith.cmpi sge, %165, %166 : vector<1x128xi32>
    %c4_i32_75 = arith.constant 4 : i32
    %168 = vector.broadcast %c4_i32_75 : i32 to vector<1x128xi32>
    %169 = arith.addi %4, %168 : vector<1x128xi32>
    %c16_i32_76 = arith.constant 16 : i32
    %170 = vector.broadcast %c16_i32_76 : i32 to vector<1x128xi32>
    %171 = arith.cmpi slt, %169, %170 : vector<1x128xi32>
    %172 = arith.andi %167, %171 : vector<1x128xi1>
    %cst_77 = arith.constant 0.000000e+00 : f32
    %173 = vector.shape_cast %172 : vector<1x128xi1> to vector<1x128xi1>
    %174 = vector.broadcast %173 : vector<1x128xi1> to vector<32x128xi1>
    %175 = vector.broadcast %cst_77 : f32 to vector<32x128xf32>
    %176 = arith.select %174, %163, %175 : vector<32x128xi1>, vector<32x128xf32>
    %177 = tpu.concatenate %149, %162, %176 in 0 : vector<32x128xf32>, vector<32x128xf32>, vector<32x128xf32> -> vector<96x128xf32>
    %178 = arith.truncf %177 : vector<96x128xf32> to vector<96x128xbf16>
    %c2 = arith.constant 2 : index
    %c0_78 = arith.constant 0 : index
    %c0_79 = arith.constant 0 : index
    %179 = vector.load %arg5[%c2, %c0_78, %c0_79] : memref<3x32x96xbf16, #tpu.memory_space<vmem>>, vector<1x32x96xbf16>
    %180 = vector.shape_cast %179 : vector<1x32x96xbf16> to vector<32x96xbf16>
    %cst_80 = arith.constant dense<0.000000e+00> : vector<32x128xf32>
    %181 = tpu.matmul %180, %178, %cst_80 {dimension_numbers = #tpu.dot_dimension_numbers<[1], [0], [0], [1], [0, 0, 1, 1], [], []>} : vector<32x96xbf16>, vector<96x128xbf16>, vector<32x128xf32> -> vector<32x128xf32>
    %c2_81 = arith.constant 2 : index
    %c0_82 = arith.constant 0 : index
    %c0_83 = arith.constant 0 : index
    %182 = vector.load %arg6[%c2_81, %c0_82, %c0_83] : memref<3x32x1xf32, #tpu.memory_space<vmem>>, vector<1x32x1xf32>
    %183 = vector.shape_cast %182 : vector<1x32x1xf32> to vector<32x1xf32>
    %184 = vector.broadcast %183 : vector<32x1xf32> to vector<32x128xf32>
    %185 = arith.addf %181, %184 : vector<32x128xf32>
    %cst_84 = arith.constant 0.000000e+00 : f32
    %186 = vector.broadcast %cst_84 : f32 to vector<32x128xf32>
    %187 = arith.maximumf %185, %186 : vector<32x128xf32>
    %c2_85 = arith.constant 2 : index
    %c0_86 = arith.constant 0 : index
    %c0_87 = arith.constant 0 : index
    %188 = vector.load %arg7[%c2_85, %c0_86, %c0_87] : memref<3x32x32xbf16, #tpu.memory_space<vmem>>, vector<1x32x32xbf16>
    %189 = vector.shape_cast %188 : vector<1x32x32xbf16> to vector<32x32xbf16>
    %190 = arith.truncf %187 : vector<32x128xf32> to vector<32x128xbf16>
    %cst_88 = arith.constant dense<0.000000e+00> : vector<32x128xf32>
    %191 = tpu.matmul %189, %190, %cst_88 {dimension_numbers = #tpu.dot_dimension_numbers<[1], [0], [0], [1], [0, 0, 1, 1], [], []>} : vector<32x32xbf16>, vector<32x128xbf16>, vector<32x128xf32> -> vector<32x128xf32>
    %c2_89 = arith.constant 2 : index
    %c0_90 = arith.constant 0 : index
    %c0_91 = arith.constant 0 : index
    %192 = vector.load %arg8[%c2_89, %c0_90, %c0_91] : memref<3x32x1xf32, #tpu.memory_space<vmem>>, vector<1x32x1xf32>
    %193 = vector.shape_cast %192 : vector<1x32x1xf32> to vector<32x1xf32>
    %194 = vector.broadcast %193 : vector<32x1xf32> to vector<32x128xf32>
    %195 = arith.addf %191, %194 : vector<32x128xf32>
    %196 = arith.addf %135, %195 : vector<32x128xf32>
    %197 = vector.broadcast %3 : vector<1x128xf32> to vector<32x128xf32>
    %198 = arith.mulf %196, %197 : vector<32x128xf32>
    %c0_92 = arith.constant 0 : index
    %c0_93 = arith.constant 0 : index
    %199 = vector.load %arg9[%c0_92, %c0_93] : memref<5x32xbf16, #tpu.memory_space<vmem>>, vector<5x32xbf16>
    %200 = arith.truncf %198 : vector<32x128xf32> to vector<32x128xbf16>
    %cst_94 = arith.constant dense<0.000000e+00> : vector<5x128xf32>
    %201 = tpu.matmul %199, %200, %cst_94 {dimension_numbers = #tpu.dot_dimension_numbers<[1], [0], [0], [1], [0, 0, 1, 1], [], []>} : vector<5x32xbf16>, vector<32x128xbf16>, vector<5x128xf32> -> vector<5x128xf32>
    %c0_95 = arith.constant 0 : index
    %c0_96 = arith.constant 0 : index
    %202 = vector.load %arg10[%c0_95, %c0_96] : memref<5x1xf32, #tpu.memory_space<vmem>>, vector<5x1xf32>
    %203 = vector.broadcast %202 : vector<5x1xf32> to vector<5x128xf32>
    %204 = arith.addf %201, %203 : vector<5x128xf32>
    %205 = vector.broadcast %3 : vector<1x128xf32> to vector<5x128xf32>
    %206 = arith.mulf %204, %205 : vector<5x128xf32>
    %c0_97 = arith.constant 0 : index
    %c0_98 = arith.constant 0 : index
    %207 = vector.load %arg11[%c0_97, %c0_98] : memref<32x4xbf16, #tpu.memory_space<vmem>>, vector<32x4xbf16>
    %cst_99 = arith.constant dense<0.000000e+00> : vector<32x128xf32>
    %208 = tpu.matmul %207, %1, %cst_99 {dimension_numbers = #tpu.dot_dimension_numbers<[1], [0], [0], [1], [0, 0, 1, 1], [], []>} : vector<32x4xbf16>, vector<4x128xbf16>, vector<32x128xf32> -> vector<32x128xf32>
    %c0_100 = arith.constant 0 : index
    %c0_101 = arith.constant 0 : index
    %209 = vector.load %arg12[%c0_100, %c0_101] : memref<32x1xf32, #tpu.memory_space<vmem>>, vector<32x1xf32>
    %210 = vector.broadcast %209 : vector<32x1xf32> to vector<32x128xf32>
    %211 = arith.addf %208, %210 : vector<32x128xf32>
    %c2_i32_102 = arith.constant 2 : i32
    %212 = tpu.dynamic_rotate %211 by %c2_i32_102 dim 1 : vector<32x128xf32>, i32 -> vector<32x128xf32>
    %c-2_i32_103 = arith.constant -2 : i32
    %213 = vector.broadcast %c-2_i32_103 : i32 to vector<1x128xi32>
    %214 = arith.addi %4, %213 : vector<1x128xi32>
    %c0_i32_104 = arith.constant 0 : i32
    %215 = vector.broadcast %c0_i32_104 : i32 to vector<1x128xi32>
    %216 = arith.cmpi sge, %214, %215 : vector<1x128xi32>
    %c-2_i32_105 = arith.constant -2 : i32
    %217 = vector.broadcast %c-2_i32_105 : i32 to vector<1x128xi32>
    %218 = arith.addi %4, %217 : vector<1x128xi32>
    %c16_i32_106 = arith.constant 16 : i32
    %219 = vector.broadcast %c16_i32_106 : i32 to vector<1x128xi32>
    %220 = arith.cmpi slt, %218, %219 : vector<1x128xi32>
    %221 = arith.andi %216, %220 : vector<1x128xi1>
    %cst_107 = arith.constant 0.000000e+00 : f32
    %222 = vector.shape_cast %221 : vector<1x128xi1> to vector<1x128xi1>
    %223 = vector.broadcast %222 : vector<1x128xi1> to vector<32x128xi1>
    %224 = vector.broadcast %cst_107 : f32 to vector<32x128xf32>
    %225 = arith.select %223, %212, %224 : vector<32x128xi1>, vector<32x128xf32>
    %c1_i32_108 = arith.constant 1 : i32
    %226 = tpu.dynamic_rotate %211 by %c1_i32_108 dim 1 : vector<32x128xf32>, i32 -> vector<32x128xf32>
    %c-1_i32_109 = arith.constant -1 : i32
    %227 = vector.broadcast %c-1_i32_109 : i32 to vector<1x128xi32>
    %228 = arith.addi %4, %227 : vector<1x128xi32>
    %c0_i32_110 = arith.constant 0 : i32
    %229 = vector.broadcast %c0_i32_110 : i32 to vector<1x128xi32>
    %230 = arith.cmpi sge, %228, %229 : vector<1x128xi32>
    %c-1_i32_111 = arith.constant -1 : i32
    %231 = vector.broadcast %c-1_i32_111 : i32 to vector<1x128xi32>
    %232 = arith.addi %4, %231 : vector<1x128xi32>
    %c16_i32_112 = arith.constant 16 : i32
    %233 = vector.broadcast %c16_i32_112 : i32 to vector<1x128xi32>
    %234 = arith.cmpi slt, %232, %233 : vector<1x128xi32>
    %235 = arith.andi %230, %234 : vector<1x128xi1>
    %cst_113 = arith.constant 0.000000e+00 : f32
    %236 = vector.shape_cast %235 : vector<1x128xi1> to vector<1x128xi1>
    %237 = vector.broadcast %236 : vector<1x128xi1> to vector<32x128xi1>
    %238 = vector.broadcast %cst_113 : f32 to vector<32x128xf32>
    %239 = arith.select %237, %226, %238 : vector<32x128xi1>, vector<32x128xf32>
    %c0_i32_114 = arith.constant 0 : i32
    %240 = vector.broadcast %c0_i32_114 : i32 to vector<1x128xi32>
    %241 = arith.addi %4, %240 : vector<1x128xi32>
    %c0_i32_115 = arith.constant 0 : i32
    %242 = vector.broadcast %c0_i32_115 : i32 to vector<1x128xi32>
    %243 = arith.cmpi sge, %241, %242 : vector<1x128xi32>
    %c0_i32_116 = arith.constant 0 : i32
    %244 = vector.broadcast %c0_i32_116 : i32 to vector<1x128xi32>
    %245 = arith.addi %4, %244 : vector<1x128xi32>
    %c16_i32_117 = arith.constant 16 : i32
    %246 = vector.broadcast %c16_i32_117 : i32 to vector<1x128xi32>
    %247 = arith.cmpi slt, %245, %246 : vector<1x128xi32>
    %248 = arith.andi %243, %247 : vector<1x128xi1>
    %cst_118 = arith.constant 0.000000e+00 : f32
    %249 = vector.shape_cast %248 : vector<1x128xi1> to vector<1x128xi1>
    %250 = vector.broadcast %249 : vector<1x128xi1> to vector<32x128xi1>
    %251 = vector.broadcast %cst_118 : f32 to vector<32x128xf32>
    %252 = arith.select %250, %211, %251 : vector<32x128xi1>, vector<32x128xf32>
    %c127_i32_119 = arith.constant 127 : i32
    %253 = tpu.dynamic_rotate %211 by %c127_i32_119 dim 1 : vector<32x128xf32>, i32 -> vector<32x128xf32>
    %c1_i32_120 = arith.constant 1 : i32
    %254 = vector.broadcast %c1_i32_120 : i32 to vector<1x128xi32>
    %255 = arith.addi %4, %254 : vector<1x128xi32>
    %c0_i32_121 = arith.constant 0 : i32
    %256 = vector.broadcast %c0_i32_121 : i32 to vector<1x128xi32>
    %257 = arith.cmpi sge, %255, %256 : vector<1x128xi32>
    %c1_i32_122 = arith.constant 1 : i32
    %258 = vector.broadcast %c1_i32_122 : i32 to vector<1x128xi32>
    %259 = arith.addi %4, %258 : vector<1x128xi32>
    %c16_i32_123 = arith.constant 16 : i32
    %260 = vector.broadcast %c16_i32_123 : i32 to vector<1x128xi32>
    %261 = arith.cmpi slt, %259, %260 : vector<1x128xi32>
    %262 = arith.andi %257, %261 : vector<1x128xi1>
    %cst_124 = arith.constant 0.000000e+00 : f32
    %263 = vector.shape_cast %262 : vector<1x128xi1> to vector<1x128xi1>
    %264 = vector.broadcast %263 : vector<1x128xi1> to vector<32x128xi1>
    %265 = vector.broadcast %cst_124 : f32 to vector<32x128xf32>
    %266 = arith.select %264, %253, %265 : vector<32x128xi1>, vector<32x128xf32>
    %c126_i32_125 = arith.constant 126 : i32
    %267 = tpu.dynamic_rotate %211 by %c126_i32_125 dim 1 : vector<32x128xf32>, i32 -> vector<32x128xf32>
    %c2_i32_126 = arith.constant 2 : i32
    %268 = vector.broadcast %c2_i32_126 : i32 to vector<1x128xi32>
    %269 = arith.addi %4, %268 : vector<1x128xi32>
    %c0_i32_127 = arith.constant 0 : i32
    %270 = vector.broadcast %c0_i32_127 : i32 to vector<1x128xi32>
    %271 = arith.cmpi sge, %269, %270 : vector<1x128xi32>
    %c2_i32_128 = arith.constant 2 : i32
    %272 = vector.broadcast %c2_i32_128 : i32 to vector<1x128xi32>
    %273 = arith.addi %4, %272 : vector<1x128xi32>
    %c16_i32_129 = arith.constant 16 : i32
    %274 = vector.broadcast %c16_i32_129 : i32 to vector<1x128xi32>
    %275 = arith.cmpi slt, %273, %274 : vector<1x128xi32>
    %276 = arith.andi %271, %275 : vector<1x128xi1>
    %cst_130 = arith.constant 0.000000e+00 : f32
    %277 = vector.shape_cast %276 : vector<1x128xi1> to vector<1x128xi1>
    %278 = vector.broadcast %277 : vector<1x128xi1> to vector<32x128xi1>
    %279 = vector.broadcast %cst_130 : f32 to vector<32x128xf32>
    %280 = arith.select %278, %267, %279 : vector<32x128xi1>, vector<32x128xf32>
    %281 = tpu.concatenate %225, %239, %252, %266, %280 in 0 : vector<32x128xf32>, vector<32x128xf32>, vector<32x128xf32>, vector<32x128xf32>, vector<32x128xf32> -> vector<160x128xf32>
    %282 = arith.truncf %281 : vector<160x128xf32> to vector<160x128xbf16>
    %c0_131 = arith.constant 0 : index
    %c0_132 = arith.constant 0 : index
    %c0_133 = arith.constant 0 : index
    %283 = vector.load %arg13[%c0_131, %c0_132, %c0_133] : memref<3x32x160xbf16, #tpu.memory_space<vmem>>, vector<1x32x160xbf16>
    %284 = vector.shape_cast %283 : vector<1x32x160xbf16> to vector<32x160xbf16>
    %cst_134 = arith.constant dense<0.000000e+00> : vector<32x128xf32>
    %285 = tpu.matmul %284, %282, %cst_134 {dimension_numbers = #tpu.dot_dimension_numbers<[1], [0], [0], [1], [0, 0, 1, 1], [], []>} : vector<32x160xbf16>, vector<160x128xbf16>, vector<32x128xf32> -> vector<32x128xf32>
    %c0_135 = arith.constant 0 : index
    %c0_136 = arith.constant 0 : index
    %c0_137 = arith.constant 0 : index
    %286 = vector.load %arg14[%c0_135, %c0_136, %c0_137] : memref<3x32x1xf32, #tpu.memory_space<vmem>>, vector<1x32x1xf32>
    %287 = vector.shape_cast %286 : vector<1x32x1xf32> to vector<32x1xf32>
    %288 = vector.broadcast %287 : vector<32x1xf32> to vector<32x128xf32>
    %289 = arith.addf %285, %288 : vector<32x128xf32>
    %cst_138 = arith.constant 0.000000e+00 : f32
    %290 = vector.broadcast %cst_138 : f32 to vector<32x128xf32>
    %291 = arith.maximumf %289, %290 : vector<32x128xf32>
    %c0_139 = arith.constant 0 : index
    %c0_140 = arith.constant 0 : index
    %c0_141 = arith.constant 0 : index
    %292 = vector.load %arg15[%c0_139, %c0_140, %c0_141] : memref<3x32x32xbf16, #tpu.memory_space<vmem>>, vector<1x32x32xbf16>
    %293 = vector.shape_cast %292 : vector<1x32x32xbf16> to vector<32x32xbf16>
    %294 = arith.truncf %291 : vector<32x128xf32> to vector<32x128xbf16>
    %cst_142 = arith.constant dense<0.000000e+00> : vector<32x128xf32>
    %295 = tpu.matmul %293, %294, %cst_142 {dimension_numbers = #tpu.dot_dimension_numbers<[1], [0], [0], [1], [0, 0, 1, 1], [], []>} : vector<32x32xbf16>, vector<32x128xbf16>, vector<32x128xf32> -> vector<32x128xf32>
    %c0_143 = arith.constant 0 : index
    %c0_144 = arith.constant 0 : index
    %c0_145 = arith.constant 0 : index
    %296 = vector.load %arg16[%c0_143, %c0_144, %c0_145] : memref<3x32x1xf32, #tpu.memory_space<vmem>>, vector<1x32x1xf32>
    %297 = vector.shape_cast %296 : vector<1x32x1xf32> to vector<32x1xf32>
    %298 = vector.broadcast %297 : vector<32x1xf32> to vector<32x128xf32>
    %299 = arith.addf %295, %298 : vector<32x128xf32>
    %300 = arith.addf %211, %299 : vector<32x128xf32>
    %301 = vector.broadcast %3 : vector<1x128xf32> to vector<32x128xf32>
    %302 = arith.mulf %300, %301 : vector<32x128xf32>
    %c4_i32_146 = arith.constant 4 : i32
    %303 = tpu.dynamic_rotate %302 by %c4_i32_146 dim 1 : vector<32x128xf32>, i32 -> vector<32x128xf32>
    %c-4_i32_147 = arith.constant -4 : i32
    %304 = vector.broadcast %c-4_i32_147 : i32 to vector<1x128xi32>
    %305 = arith.addi %4, %304 : vector<1x128xi32>
    %c0_i32_148 = arith.constant 0 : i32
    %306 = vector.broadcast %c0_i32_148 : i32 to vector<1x128xi32>
    %307 = arith.cmpi sge, %305, %306 : vector<1x128xi32>
    %c-4_i32_149 = arith.constant -4 : i32
    %308 = vector.broadcast %c-4_i32_149 : i32 to vector<1x128xi32>
    %309 = arith.addi %4, %308 : vector<1x128xi32>
    %c16_i32_150 = arith.constant 16 : i32
    %310 = vector.broadcast %c16_i32_150 : i32 to vector<1x128xi32>
    %311 = arith.cmpi slt, %309, %310 : vector<1x128xi32>
    %312 = arith.andi %307, %311 : vector<1x128xi1>
    %cst_151 = arith.constant 0.000000e+00 : f32
    %313 = vector.shape_cast %312 : vector<1x128xi1> to vector<1x128xi1>
    %314 = vector.broadcast %313 : vector<1x128xi1> to vector<32x128xi1>
    %315 = vector.broadcast %cst_151 : f32 to vector<32x128xf32>
    %316 = arith.select %314, %303, %315 : vector<32x128xi1>, vector<32x128xf32>
    %c2_i32_152 = arith.constant 2 : i32
    %317 = tpu.dynamic_rotate %302 by %c2_i32_152 dim 1 : vector<32x128xf32>, i32 -> vector<32x128xf32>
    %c-2_i32_153 = arith.constant -2 : i32
    %318 = vector.broadcast %c-2_i32_153 : i32 to vector<1x128xi32>
    %319 = arith.addi %4, %318 : vector<1x128xi32>
    %c0_i32_154 = arith.constant 0 : i32
    %320 = vector.broadcast %c0_i32_154 : i32 to vector<1x128xi32>
    %321 = arith.cmpi sge, %319, %320 : vector<1x128xi32>
    %c-2_i32_155 = arith.constant -2 : i32
    %322 = vector.broadcast %c-2_i32_155 : i32 to vector<1x128xi32>
    %323 = arith.addi %4, %322 : vector<1x128xi32>
    %c16_i32_156 = arith.constant 16 : i32
    %324 = vector.broadcast %c16_i32_156 : i32 to vector<1x128xi32>
    %325 = arith.cmpi slt, %323, %324 : vector<1x128xi32>
    %326 = arith.andi %321, %325 : vector<1x128xi1>
    %cst_157 = arith.constant 0.000000e+00 : f32
    %327 = vector.shape_cast %326 : vector<1x128xi1> to vector<1x128xi1>
    %328 = vector.broadcast %327 : vector<1x128xi1> to vector<32x128xi1>
    %329 = vector.broadcast %cst_157 : f32 to vector<32x128xf32>
    %330 = arith.select %328, %317, %329 : vector<32x128xi1>, vector<32x128xf32>
    %c0_i32_158 = arith.constant 0 : i32
    %331 = vector.broadcast %c0_i32_158 : i32 to vector<1x128xi32>
    %332 = arith.addi %4, %331 : vector<1x128xi32>
    %c0_i32_159 = arith.constant 0 : i32
    %333 = vector.broadcast %c0_i32_159 : i32 to vector<1x128xi32>
    %334 = arith.cmpi sge, %332, %333 : vector<1x128xi32>
    %c0_i32_160 = arith.constant 0 : i32
    %335 = vector.broadcast %c0_i32_160 : i32 to vector<1x128xi32>
    %336 = arith.addi %4, %335 : vector<1x128xi32>
    %c16_i32_161 = arith.constant 16 : i32
    %337 = vector.broadcast %c16_i32_161 : i32 to vector<1x128xi32>
    %338 = arith.cmpi slt, %336, %337 : vector<1x128xi32>
    %339 = arith.andi %334, %338 : vector<1x128xi1>
    %cst_162 = arith.constant 0.000000e+00 : f32
    %340 = vector.shape_cast %339 : vector<1x128xi1> to vector<1x128xi1>
    %341 = vector.broadcast %340 : vector<1x128xi1> to vector<32x128xi1>
    %342 = vector.broadcast %cst_162 : f32 to vector<32x128xf32>
    %343 = arith.select %341, %302, %342 : vector<32x128xi1>, vector<32x128xf32>
    %c126_i32_163 = arith.constant 126 : i32
    %344 = tpu.dynamic_rotate %302 by %c126_i32_163 dim 1 : vector<32x128xf32>, i32 -> vector<32x128xf32>
    %c2_i32_164 = arith.constant 2 : i32
    %345 = vector.broadcast %c2_i32_164 : i32 to vector<1x128xi32>
    %346 = arith.addi %4, %345 : vector<1x128xi32>
    %c0_i32_165 = arith.constant 0 : i32
    %347 = vector.broadcast %c0_i32_165 : i32 to vector<1x128xi32>
    %348 = arith.cmpi sge, %346, %347 : vector<1x128xi32>
    %c2_i32_166 = arith.constant 2 : i32
    %349 = vector.broadcast %c2_i32_166 : i32 to vector<1x128xi32>
    %350 = arith.addi %4, %349 : vector<1x128xi32>
    %c16_i32_167 = arith.constant 16 : i32
    %351 = vector.broadcast %c16_i32_167 : i32 to vector<1x128xi32>
    %352 = arith.cmpi slt, %350, %351 : vector<1x128xi32>
    %353 = arith.andi %348, %352 : vector<1x128xi1>
    %cst_168 = arith.constant 0.000000e+00 : f32
    %354 = vector.shape_cast %353 : vector<1x128xi1> to vector<1x128xi1>
    %355 = vector.broadcast %354 : vector<1x128xi1> to vector<32x128xi1>
    %356 = vector.broadcast %cst_168 : f32 to vector<32x128xf32>
    %357 = arith.select %355, %344, %356 : vector<32x128xi1>, vector<32x128xf32>
    %c124_i32_169 = arith.constant 124 : i32
    %358 = tpu.dynamic_rotate %302 by %c124_i32_169 dim 1 : vector<32x128xf32>, i32 -> vector<32x128xf32>
    %c4_i32_170 = arith.constant 4 : i32
    %359 = vector.broadcast %c4_i32_170 : i32 to vector<1x128xi32>
    %360 = arith.addi %4, %359 : vector<1x128xi32>
    %c0_i32_171 = arith.constant 0 : i32
    %361 = vector.broadcast %c0_i32_171 : i32 to vector<1x128xi32>
    %362 = arith.cmpi sge, %360, %361 : vector<1x128xi32>
    %c4_i32_172 = arith.constant 4 : i32
    %363 = vector.broadcast %c4_i32_172 : i32 to vector<1x128xi32>
    %364 = arith.addi %4, %363 : vector<1x128xi32>
    %c16_i32_173 = arith.constant 16 : i32
    %365 = vector.broadcast %c16_i32_173 : i32 to vector<1x128xi32>
    %366 = arith.cmpi slt, %364, %365 : vector<1x128xi32>
    %367 = arith.andi %362, %366 : vector<1x128xi1>
    %cst_174 = arith.constant 0.000000e+00 : f32
    %368 = vector.shape_cast %367 : vector<1x128xi1> to vector<1x128xi1>
    %369 = vector.broadcast %368 : vector<1x128xi1> to vector<32x128xi1>
    %370 = vector.broadcast %cst_174 : f32 to vector<32x128xf32>
    %371 = arith.select %369, %358, %370 : vector<32x128xi1>, vector<32x128xf32>
    %372 = tpu.concatenate %316, %330, %343, %357, %371 in 0 : vector<32x128xf32>, vector<32x128xf32>, vector<32x128xf32>, vector<32x128xf32>, vector<32x128xf32> -> vector<160x128xf32>
    %373 = arith.truncf %372 : vector<160x128xf32> to vector<160x128xbf16>
    %c1_175 = arith.constant 1 : index
    %c0_176 = arith.constant 0 : index
    %c0_177 = arith.constant 0 : index
    %374 = vector.load %arg13[%c1_175, %c0_176, %c0_177] : memref<3x32x160xbf16, #tpu.memory_space<vmem>>, vector<1x32x160xbf16>
    %375 = vector.shape_cast %374 : vector<1x32x160xbf16> to vector<32x160xbf16>
    %cst_178 = arith.constant dense<0.000000e+00> : vector<32x128xf32>
    %376 = tpu.matmul %375, %373, %cst_178 {dimension_numbers = #tpu.dot_dimension_numbers<[1], [0], [0], [1], [0, 0, 1, 1], [], []>} : vector<32x160xbf16>, vector<160x128xbf16>, vector<32x128xf32> -> vector<32x128xf32>
    %c1_179 = arith.constant 1 : index
    %c0_180 = arith.constant 0 : index
    %c0_181 = arith.constant 0 : index
    %377 = vector.load %arg14[%c1_179, %c0_180, %c0_181] : memref<3x32x1xf32, #tpu.memory_space<vmem>>, vector<1x32x1xf32>
    %378 = vector.shape_cast %377 : vector<1x32x1xf32> to vector<32x1xf32>
    %379 = vector.broadcast %378 : vector<32x1xf32> to vector<32x128xf32>
    %380 = arith.addf %376, %379 : vector<32x128xf32>
    %cst_182 = arith.constant 0.000000e+00 : f32
    %381 = vector.broadcast %cst_182 : f32 to vector<32x128xf32>
    %382 = arith.maximumf %380, %381 : vector<32x128xf32>
    %c1_183 = arith.constant 1 : index
    %c0_184 = arith.constant 0 : index
    %c0_185 = arith.constant 0 : index
    %383 = vector.load %arg15[%c1_183, %c0_184, %c0_185] : memref<3x32x32xbf16, #tpu.memory_space<vmem>>, vector<1x32x32xbf16>
    %384 = vector.shape_cast %383 : vector<1x32x32xbf16> to vector<32x32xbf16>
    %385 = arith.truncf %382 : vector<32x128xf32> to vector<32x128xbf16>
    %cst_186 = arith.constant dense<0.000000e+00> : vector<32x128xf32>
    %386 = tpu.matmul %384, %385, %cst_186 {dimension_numbers = #tpu.dot_dimension_numbers<[1], [0], [0], [1], [0, 0, 1, 1], [], []>} : vector<32x32xbf16>, vector<32x128xbf16>, vector<32x128xf32> -> vector<32x128xf32>
    %c1_187 = arith.constant 1 : index
    %c0_188 = arith.constant 0 : index
    %c0_189 = arith.constant 0 : index
    %387 = vector.load %arg16[%c1_187, %c0_188, %c0_189] : memref<3x32x1xf32, #tpu.memory_space<vmem>>, vector<1x32x1xf32>
    %388 = vector.shape_cast %387 : vector<1x32x1xf32> to vector<32x1xf32>
    %389 = vector.broadcast %388 : vector<32x1xf32> to vector<32x128xf32>
    %390 = arith.addf %386, %389 : vector<32x128xf32>
    %391 = arith.addf %302, %390 : vector<32x128xf32>
    %392 = vector.broadcast %3 : vector<1x128xf32> to vector<32x128xf32>
    %393 = arith.mulf %391, %392 : vector<32x128xf32>
    %c8_i32 = arith.constant 8 : i32
    %394 = tpu.dynamic_rotate %393 by %c8_i32 dim 1 : vector<32x128xf32>, i32 -> vector<32x128xf32>
    %c-8_i32 = arith.constant -8 : i32
    %395 = vector.broadcast %c-8_i32 : i32 to vector<1x128xi32>
    %396 = arith.addi %4, %395 : vector<1x128xi32>
    %c0_i32_190 = arith.constant 0 : i32
    %397 = vector.broadcast %c0_i32_190 : i32 to vector<1x128xi32>
    %398 = arith.cmpi sge, %396, %397 : vector<1x128xi32>
    %c-8_i32_191 = arith.constant -8 : i32
    %399 = vector.broadcast %c-8_i32_191 : i32 to vector<1x128xi32>
    %400 = arith.addi %4, %399 : vector<1x128xi32>
    %c16_i32_192 = arith.constant 16 : i32
    %401 = vector.broadcast %c16_i32_192 : i32 to vector<1x128xi32>
    %402 = arith.cmpi slt, %400, %401 : vector<1x128xi32>
    %403 = arith.andi %398, %402 : vector<1x128xi1>
    %cst_193 = arith.constant 0.000000e+00 : f32
    %404 = vector.shape_cast %403 : vector<1x128xi1> to vector<1x128xi1>
    %405 = vector.broadcast %404 : vector<1x128xi1> to vector<32x128xi1>
    %406 = vector.broadcast %cst_193 : f32 to vector<32x128xf32>
    %407 = arith.select %405, %394, %406 : vector<32x128xi1>, vector<32x128xf32>
    %c4_i32_194 = arith.constant 4 : i32
    %408 = tpu.dynamic_rotate %393 by %c4_i32_194 dim 1 : vector<32x128xf32>, i32 -> vector<32x128xf32>
    %c-4_i32_195 = arith.constant -4 : i32
    %409 = vector.broadcast %c-4_i32_195 : i32 to vector<1x128xi32>
    %410 = arith.addi %4, %409 : vector<1x128xi32>
    %c0_i32_196 = arith.constant 0 : i32
    %411 = vector.broadcast %c0_i32_196 : i32 to vector<1x128xi32>
    %412 = arith.cmpi sge, %410, %411 : vector<1x128xi32>
    %c-4_i32_197 = arith.constant -4 : i32
    %413 = vector.broadcast %c-4_i32_197 : i32 to vector<1x128xi32>
    %414 = arith.addi %4, %413 : vector<1x128xi32>
    %c16_i32_198 = arith.constant 16 : i32
    %415 = vector.broadcast %c16_i32_198 : i32 to vector<1x128xi32>
    %416 = arith.cmpi slt, %414, %415 : vector<1x128xi32>
    %417 = arith.andi %412, %416 : vector<1x128xi1>
    %cst_199 = arith.constant 0.000000e+00 : f32
    %418 = vector.shape_cast %417 : vector<1x128xi1> to vector<1x128xi1>
    %419 = vector.broadcast %418 : vector<1x128xi1> to vector<32x128xi1>
    %420 = vector.broadcast %cst_199 : f32 to vector<32x128xf32>
    %421 = arith.select %419, %408, %420 : vector<32x128xi1>, vector<32x128xf32>
    %c0_i32_200 = arith.constant 0 : i32
    %422 = vector.broadcast %c0_i32_200 : i32 to vector<1x128xi32>
    %423 = arith.addi %4, %422 : vector<1x128xi32>
    %c0_i32_201 = arith.constant 0 : i32
    %424 = vector.broadcast %c0_i32_201 : i32 to vector<1x128xi32>
    %425 = arith.cmpi sge, %423, %424 : vector<1x128xi32>
    %c0_i32_202 = arith.constant 0 : i32
    %426 = vector.broadcast %c0_i32_202 : i32 to vector<1x128xi32>
    %427 = arith.addi %4, %426 : vector<1x128xi32>
    %c16_i32_203 = arith.constant 16 : i32
    %428 = vector.broadcast %c16_i32_203 : i32 to vector<1x128xi32>
    %429 = arith.cmpi slt, %427, %428 : vector<1x128xi32>
    %430 = arith.andi %425, %429 : vector<1x128xi1>
    %cst_204 = arith.constant 0.000000e+00 : f32
    %431 = vector.shape_cast %430 : vector<1x128xi1> to vector<1x128xi1>
    %432 = vector.broadcast %431 : vector<1x128xi1> to vector<32x128xi1>
    %433 = vector.broadcast %cst_204 : f32 to vector<32x128xf32>
    %434 = arith.select %432, %393, %433 : vector<32x128xi1>, vector<32x128xf32>
    %c124_i32_205 = arith.constant 124 : i32
    %435 = tpu.dynamic_rotate %393 by %c124_i32_205 dim 1 : vector<32x128xf32>, i32 -> vector<32x128xf32>
    %c4_i32_206 = arith.constant 4 : i32
    %436 = vector.broadcast %c4_i32_206 : i32 to vector<1x128xi32>
    %437 = arith.addi %4, %436 : vector<1x128xi32>
    %c0_i32_207 = arith.constant 0 : i32
    %438 = vector.broadcast %c0_i32_207 : i32 to vector<1x128xi32>
    %439 = arith.cmpi sge, %437, %438 : vector<1x128xi32>
    %c4_i32_208 = arith.constant 4 : i32
    %440 = vector.broadcast %c4_i32_208 : i32 to vector<1x128xi32>
    %441 = arith.addi %4, %440 : vector<1x128xi32>
    %c16_i32_209 = arith.constant 16 : i32
    %442 = vector.broadcast %c16_i32_209 : i32 to vector<1x128xi32>
    %443 = arith.cmpi slt, %441, %442 : vector<1x128xi32>
    %444 = arith.andi %439, %443 : vector<1x128xi1>
    %cst_210 = arith.constant 0.000000e+00 : f32
    %445 = vector.shape_cast %444 : vector<1x128xi1> to vector<1x128xi1>
    %446 = vector.broadcast %445 : vector<1x128xi1> to vector<32x128xi1>
    %447 = vector.broadcast %cst_210 : f32 to vector<32x128xf32>
    %448 = arith.select %446, %435, %447 : vector<32x128xi1>, vector<32x128xf32>
    %c120_i32 = arith.constant 120 : i32
    %449 = tpu.dynamic_rotate %393 by %c120_i32 dim 1 : vector<32x128xf32>, i32 -> vector<32x128xf32>
    %c8_i32_211 = arith.constant 8 : i32
    %450 = vector.broadcast %c8_i32_211 : i32 to vector<1x128xi32>
    %451 = arith.addi %4, %450 : vector<1x128xi32>
    %c0_i32_212 = arith.constant 0 : i32
    %452 = vector.broadcast %c0_i32_212 : i32 to vector<1x128xi32>
    %453 = arith.cmpi sge, %451, %452 : vector<1x128xi32>
    %c8_i32_213 = arith.constant 8 : i32
    %454 = vector.broadcast %c8_i32_213 : i32 to vector<1x128xi32>
    %455 = arith.addi %4, %454 : vector<1x128xi32>
    %c16_i32_214 = arith.constant 16 : i32
    %456 = vector.broadcast %c16_i32_214 : i32 to vector<1x128xi32>
    %457 = arith.cmpi slt, %455, %456 : vector<1x128xi32>
    %458 = arith.andi %453, %457 : vector<1x128xi1>
    %cst_215 = arith.constant 0.000000e+00 : f32
    %459 = vector.shape_cast %458 : vector<1x128xi1> to vector<1x128xi1>
    %460 = vector.broadcast %459 : vector<1x128xi1> to vector<32x128xi1>
    %461 = vector.broadcast %cst_215 : f32 to vector<32x128xf32>
    %462 = arith.select %460, %449, %461 : vector<32x128xi1>, vector<32x128xf32>
    %463 = tpu.concatenate %407, %421, %434, %448, %462 in 0 : vector<32x128xf32>, vector<32x128xf32>, vector<32x128xf32>, vector<32x128xf32>, vector<32x128xf32> -> vector<160x128xf32>
    %464 = arith.truncf %463 : vector<160x128xf32> to vector<160x128xbf16>
    %c2_216 = arith.constant 2 : index
    %c0_217 = arith.constant 0 : index
    %c0_218 = arith.constant 0 : index
    %465 = vector.load %arg13[%c2_216, %c0_217, %c0_218] : memref<3x32x160xbf16, #tpu.memory_space<vmem>>, vector<1x32x160xbf16>
    %466 = vector.shape_cast %465 : vector<1x32x160xbf16> to vector<32x160xbf16>
    %cst_219 = arith.constant dense<0.000000e+00> : vector<32x128xf32>
    %467 = tpu.matmul %466, %464, %cst_219 {dimension_numbers = #tpu.dot_dimension_numbers<[1], [0], [0], [1], [0, 0, 1, 1], [], []>} : vector<32x160xbf16>, vector<160x128xbf16>, vector<32x128xf32> -> vector<32x128xf32>
    %c2_220 = arith.constant 2 : index
    %c0_221 = arith.constant 0 : index
    %c0_222 = arith.constant 0 : index
    %468 = vector.load %arg14[%c2_220, %c0_221, %c0_222] : memref<3x32x1xf32, #tpu.memory_space<vmem>>, vector<1x32x1xf32>
    %469 = vector.shape_cast %468 : vector<1x32x1xf32> to vector<32x1xf32>
    %470 = vector.broadcast %469 : vector<32x1xf32> to vector<32x128xf32>
    %471 = arith.addf %467, %470 : vector<32x128xf32>
    %cst_223 = arith.constant 0.000000e+00 : f32
    %472 = vector.broadcast %cst_223 : f32 to vector<32x128xf32>
    %473 = arith.maximumf %471, %472 : vector<32x128xf32>
    %c2_224 = arith.constant 2 : index
    %c0_225 = arith.constant 0 : index
    %c0_226 = arith.constant 0 : index
    %474 = vector.load %arg15[%c2_224, %c0_225, %c0_226] : memref<3x32x32xbf16, #tpu.memory_space<vmem>>, vector<1x32x32xbf16>
    %475 = vector.shape_cast %474 : vector<1x32x32xbf16> to vector<32x32xbf16>
    %476 = arith.truncf %473 : vector<32x128xf32> to vector<32x128xbf16>
    %cst_227 = arith.constant dense<0.000000e+00> : vector<32x128xf32>
    %477 = tpu.matmul %475, %476, %cst_227 {dimension_numbers = #tpu.dot_dimension_numbers<[1], [0], [0], [1], [0, 0, 1, 1], [], []>} : vector<32x32xbf16>, vector<32x128xbf16>, vector<32x128xf32> -> vector<32x128xf32>
    %c2_228 = arith.constant 2 : index
    %c0_229 = arith.constant 0 : index
    %c0_230 = arith.constant 0 : index
    %478 = vector.load %arg16[%c2_228, %c0_229, %c0_230] : memref<3x32x1xf32, #tpu.memory_space<vmem>>, vector<1x32x1xf32>
    %479 = vector.shape_cast %478 : vector<1x32x1xf32> to vector<32x1xf32>
    %480 = vector.broadcast %479 : vector<32x1xf32> to vector<32x128xf32>
    %481 = arith.addf %477, %480 : vector<32x128xf32>
    %482 = arith.addf %393, %481 : vector<32x128xf32>
    %483 = vector.broadcast %3 : vector<1x128xf32> to vector<32x128xf32>
    %484 = arith.mulf %482, %483 : vector<32x128xf32>
    %c0_231 = arith.constant 0 : index
    %c0_232 = arith.constant 0 : index
    %485 = vector.load %arg17[%c0_231, %c0_232] : memref<5x32xbf16, #tpu.memory_space<vmem>>, vector<5x32xbf16>
    %486 = arith.truncf %484 : vector<32x128xf32> to vector<32x128xbf16>
    %cst_233 = arith.constant dense<0.000000e+00> : vector<5x128xf32>
    %487 = tpu.matmul %485, %486, %cst_233 {dimension_numbers = #tpu.dot_dimension_numbers<[1], [0], [0], [1], [0, 0, 1, 1], [], []>} : vector<5x32xbf16>, vector<32x128xbf16>, vector<5x128xf32> -> vector<5x128xf32>
    %c0_234 = arith.constant 0 : index
    %c0_235 = arith.constant 0 : index
    %488 = vector.load %arg18[%c0_234, %c0_235] : memref<5x1xf32, #tpu.memory_space<vmem>>, vector<5x1xf32>
    %489 = vector.broadcast %488 : vector<5x1xf32> to vector<5x128xf32>
    %490 = arith.addf %487, %489 : vector<5x128xf32>
    %491 = vector.broadcast %3 : vector<1x128xf32> to vector<5x128xf32>
    %492 = arith.mulf %490, %491 : vector<5x128xf32>
    %493 = arith.addf %198, %484 : vector<32x128xf32>
    %c0_236 = arith.constant 0 : index
    %c0_237 = arith.constant 0 : index
    %c0_238 = arith.constant 0 : index
    %494 = vector.load %arg19[%c0_236, %c0_237, %c0_238] : memref<1x32x128xf32, #tpu.memory_space<vmem>>, vector<1x32x128xf32>
    %495 = vector.shape_cast %494 : vector<1x32x128xf32> to vector<32x128xf32>
    %496 = vector.shape_cast %493 : vector<32x128xf32> to vector<1x32x128xf32>
    tpu.vector_store %arg19[%c0_236, %c0_237, %c0_238], %496 {strides = array<i32>} : memref<1x32x128xf32, #tpu.memory_space<vmem>>, vector<1x32x128xf32>,
    %497 = arith.addf %206, %492 : vector<5x128xf32>
    %c0_239 = arith.constant 0 : index
    %c0_240 = arith.constant 0 : index
    %c0_241 = arith.constant 0 : index
    %498 = vector.load %arg20[%c0_239, %c0_240, %c0_241] : memref<1x5x128xf32, #tpu.memory_space<vmem>>, vector<1x5x128xf32>
    %499 = vector.shape_cast %498 : vector<1x5x128xf32> to vector<5x128xf32>
    %500 = vector.shape_cast %497 : vector<5x128xf32> to vector<1x5x128xf32>
    tpu.vector_store %arg20[%c0_239, %c0_240, %c0_241], %500 {strides = array<i32>} : memref<1x5x128xf32, #tpu.memory_space<vmem>>, vector<1x5x128xf32>,
    return
  }
  func.func @transform_0(%arg0: i32) -> (i32, i32, i32) {
    %c0_i32 = arith.constant 0 : i32
    %c0_i32_0 = arith.constant 0 : i32
    %c0_i32_1 = arith.constant 0 : i32
    return %arg0, %c0_i32, %c0_i32_0 : i32, i32, i32
  }
  func.func @transform_1(%arg0: i32) -> (i32, i32, i32) {
    %c0_i32 = arith.constant 0 : i32
    %c0_i32_0 = arith.constant 0 : i32
    %c0_i32_1 = arith.constant 0 : i32
    return %arg0, %c0_i32, %c0_i32_0 : i32, i32, i32
  }
  func.func @transform_2(%arg0: i32) -> (i32, i32) {
    %c0_i32 = arith.constant 0 : i32
    %c0_i32_0 = arith.constant 0 : i32
    %c0_i32_1 = arith.constant 0 : i32
    return %c0_i32, %c0_i32_0 : i32, i32
  }
  func.func @transform_3(%arg0: i32) -> (i32, i32) {
    %c0_i32 = arith.constant 0 : i32
    %c0_i32_0 = arith.constant 0 : i32
    %c0_i32_1 = arith.constant 0 : i32
    return %c0_i32, %c0_i32_0 : i32, i32
  }
  func.func @transform_4(%arg0: i32) -> (i32, i32, i32) {
    %c0_i32 = arith.constant 0 : i32
    %c0_i32_0 = arith.constant 0 : i32
    %c0_i32_1 = arith.constant 0 : i32
    %c0_i32_2 = arith.constant 0 : i32
    return %c0_i32, %c0_i32_0, %c0_i32_1 : i32, i32, i32
  }
  func.func @transform_5(%arg0: i32) -> (i32, i32, i32) {
    %c0_i32 = arith.constant 0 : i32
    %c0_i32_0 = arith.constant 0 : i32
    %c0_i32_1 = arith.constant 0 : i32
    %c0_i32_2 = arith.constant 0 : i32
    return %c0_i32, %c0_i32_0, %c0_i32_1 : i32, i32, i32
  }
  func.func @transform_6(%arg0: i32) -> (i32, i32, i32) {
    %c0_i32 = arith.constant 0 : i32
    %c0_i32_0 = arith.constant 0 : i32
    %c0_i32_1 = arith.constant 0 : i32
    %c0_i32_2 = arith.constant 0 : i32
    return %c0_i32, %c0_i32_0, %c0_i32_1 : i32, i32, i32
  }
  func.func @transform_7(%arg0: i32) -> (i32, i32, i32) {
    %c0_i32 = arith.constant 0 : i32
    %c0_i32_0 = arith.constant 0 : i32
    %c0_i32_1 = arith.constant 0 : i32
    %c0_i32_2 = arith.constant 0 : i32
    return %c0_i32, %c0_i32_0, %c0_i32_1 : i32, i32, i32
  }
  func.func @transform_8(%arg0: i32) -> (i32, i32) {
    %c0_i32 = arith.constant 0 : i32
    %c0_i32_0 = arith.constant 0 : i32
    %c0_i32_1 = arith.constant 0 : i32
    return %c0_i32, %c0_i32_0 : i32, i32
  }
  func.func @transform_9(%arg0: i32) -> (i32, i32) {
    %c0_i32 = arith.constant 0 : i32
    %c0_i32_0 = arith.constant 0 : i32
    %c0_i32_1 = arith.constant 0 : i32
    return %c0_i32, %c0_i32_0 : i32, i32
  }
  func.func @transform_10(%arg0: i32) -> (i32, i32) {
    %c0_i32 = arith.constant 0 : i32
    %c0_i32_0 = arith.constant 0 : i32
    %c0_i32_1 = arith.constant 0 : i32
    return %c0_i32, %c0_i32_0 : i32, i32
  }
  func.func @transform_11(%arg0: i32) -> (i32, i32) {
    %c0_i32 = arith.constant 0 : i32
    %c0_i32_0 = arith.constant 0 : i32
    %c0_i32_1 = arith.constant 0 : i32
    return %c0_i32, %c0_i32_0 : i32, i32
  }
  func.func @transform_12(%arg0: i32) -> (i32, i32, i32) {
    %c0_i32 = arith.constant 0 : i32
    %c0_i32_0 = arith.constant 0 : i32
    %c0_i32_1 = arith.constant 0 : i32
    %c0_i32_2 = arith.constant 0 : i32
    return %c0_i32, %c0_i32_0, %c0_i32_1 : i32, i32, i32
  }
  func.func @transform_13(%arg0: i32) -> (i32, i32, i32) {
    %c0_i32 = arith.constant 0 : i32
    %c0_i32_0 = arith.constant 0 : i32
    %c0_i32_1 = arith.constant 0 : i32
    %c0_i32_2 = arith.constant 0 : i32
    return %c0_i32, %c0_i32_0, %c0_i32_1 : i32, i32, i32
  }
  func.func @transform_14(%arg0: i32) -> (i32, i32, i32) {
    %c0_i32 = arith.constant 0 : i32
    %c0_i32_0 = arith.constant 0 : i32
    %c0_i32_1 = arith.constant 0 : i32
    %c0_i32_2 = arith.constant 0 : i32
    return %c0_i32, %c0_i32_0, %c0_i32_1 : i32, i32, i32
  }
  func.func @transform_15(%arg0: i32) -> (i32, i32, i32) {
    %c0_i32 = arith.constant 0 : i32
    %c0_i32_0 = arith.constant 0 : i32
    %c0_i32_1 = arith.constant 0 : i32
    %c0_i32_2 = arith.constant 0 : i32
    return %c0_i32, %c0_i32_0, %c0_i32_1 : i32, i32, i32
  }
  func.func @transform_16(%arg0: i32) -> (i32, i32) {
    %c0_i32 = arith.constant 0 : i32
    %c0_i32_0 = arith.constant 0 : i32
    %c0_i32_1 = arith.constant 0 : i32
    return %c0_i32, %c0_i32_0 : i32, i32
  }
  func.func @transform_17(%arg0: i32) -> (i32, i32) {
    %c0_i32 = arith.constant 0 : i32
    %c0_i32_0 = arith.constant 0 : i32
    %c0_i32_1 = arith.constant 0 : i32
    return %c0_i32, %c0_i32_0 : i32, i32
  }
  func.func @transform_18(%arg0: i32) -> (i32, i32, i32) {
    %c0_i32 = arith.constant 0 : i32
    %c0_i32_0 = arith.constant 0 : i32
    %c0_i32_1 = arith.constant 0 : i32
    return %arg0, %c0_i32, %c0_i32_0 : i32, i32, i32
  }
  func.func @transform_19(%arg0: i32) -> (i32, i32, i32) {
    %c0_i32 = arith.constant 0 : i32
    %c0_i32_0 = arith.constant 0 : i32
    %c0_i32_1 = arith.constant 0 : i32
    return %arg0, %c0_i32, %c0_i32_0 : i32, i32, i32
  }
}

</mosaic_0001>

<llo_original>
// kernel: tower_forward.1
$region0: #{tower_forward.1}
  #allocation0 [shape = 'u32[]', space=smem, size = 0x4, offset = 0x4, fixed_abs, tag = 'smem constant byte address 0x4 - core index']
  #allocation1 [shape = 'u32[144,128]{1,0:T(1,128)}', space=vmem, size = 0x12000, scoped, tag = 'internal scratch']
  %s0 = inlined_call_operand.vmem [shape: bf16[2,4,128], index: 0, kind: input, shape index: {}]
  %s1 = inlined_call_operand.vmem [shape: f32[2,1,128], index: 1, kind: input, shape index: {}]
  %s2 = inlined_call_operand.vmem [shape: bf16[32,4], index: 2, kind: input, shape index: {}]
  %s3 = inlined_call_operand.vmem [shape: f32[32,1], index: 3, kind: input, shape index: {}]
  %s4 = inlined_call_operand.vmem [shape: bf16[3,32,96], index: 4, kind: input, shape index: {}]
  %s5 = inlined_call_operand.vmem [shape: f32[3,32,1], index: 5, kind: input, shape index: {}]
  %s6 = inlined_call_operand.vmem [shape: bf16[3,32,32], index: 6, kind: input, shape index: {}]
  %s7 = inlined_call_operand.vmem [shape: f32[3,32,1], index: 7, kind: input, shape index: {}]
  %s8 = inlined_call_operand.vmem [shape: bf16[5,32], index: 8, kind: input, shape index: {}]
  %s9 = inlined_call_operand.vmem [shape: f32[5,1], index: 9, kind: input, shape index: {}]
  %s10 = inlined_call_operand.vmem [shape: bf16[32,4], index: 10, kind: input, shape index: {}]
  %s11 = inlined_call_operand.vmem [shape: f32[32,1], index: 11, kind: input, shape index: {}]
  %s12 = inlined_call_operand.vmem [shape: bf16[3,32,160], index: 12, kind: input, shape index: {}]
  %s13 = inlined_call_operand.vmem [shape: f32[3,32,1], index: 13, kind: input, shape index: {}]
  %s14 = inlined_call_operand.vmem [shape: bf16[3,32,32], index: 14, kind: input, shape index: {}]
  %s15 = inlined_call_operand.vmem [shape: f32[3,32,1], index: 15, kind: input, shape index: {}]
  %s16 = inlined_call_operand.vmem [shape: bf16[5,32], index: 16, kind: input, shape index: {}]
  %s17 = inlined_call_operand.vmem [shape: f32[5,1], index: 17, kind: input, shape index: {}]
  %s18 = inlined_call_operand.vmem [shape: f32[2,32,128], index: 18, kind: output, shape index: {0}]
  %s19 = inlined_call_operand.vmem [shape: f32[2,5,128], index: 19, kind: output, shape index: {1}]
  %20 = xla_tuple %s18, %s19
  %s21 = sld [smem:[#allocation0]]
  $region113: #{tower_forward.1} parent=0
    _
  %s23 = ssub.s32 1, %s21
  %s24 = scalar_select 0, %s23, %s21
  loop: start=0, step=1, limit=4
  $region2: #{tower_forward.1} parent=0 // loop_pre_header
    _
  $region3: #{tower_forward.1} parent=0 // loop_header
    %s26 = sphi 0, %s30
    %p27 = scmp.ge.s32.totalorder %s26, 4
    %s36 = sphi 0, %s38
    %s39 = sphi 0, %s36
    %s40 = sphi 0, %s39
    %s56 = sphi 0, %s40
    %s62 = sphi 0, %s64
    %s65 = sphi 0, %s62
    %s66 = sphi 0, %s65
    %s82 = sphi 0, %s66
    %s86 = sphi 0, %s86
    %s88 = sphi 0, %s86
    %s89 = sphi 0, %s88
    %s103 = sphi 0, %s89
    %s107 = sphi 0, %s107
    %s109 = sphi 0, %s107
    %s110 = sphi 0, %s109
    %s124 = sphi 0, %s110
    %s128 = sphi 0, %s128
    %s130 = sphi 0, %s128
    %s131 = sphi 0, %s130
    %s145 = sphi 0, %s131
    %s149 = sphi 0, %s149
    %s151 = sphi 0, %s149
    %s152 = sphi 0, %s151
    %s166 = sphi 0, %s152
    %s170 = sphi 0, %s170
    %s172 = sphi 0, %s170
    %s173 = sphi 0, %s172
    %s187 = sphi 0, %s173
    %s191 = sphi 0, %s191
    %s193 = sphi 0, %s191
    %s194 = sphi 0, %s193
    %s208 = sphi 0, %s194
    %s212 = sphi 0, %s212
    %s214 = sphi 0, %s212
    %s215 = sphi 0, %s214
    %s229 = sphi 0, %s215
    %s233 = sphi 0, %s233
    %s235 = sphi 0, %s233
    %s236 = sphi 0, %s235
    %s250 = sphi 0, %s236
    %s254 = sphi 0, %s254
    %s256 = sphi 0, %s254
    %s257 = sphi 0, %s256
    %s271 = sphi 0, %s257
    %s275 = sphi 0, %s275
    %s277 = sphi 0, %s275
    %s278 = sphi 0, %s277
    %s292 = sphi 0, %s278
    %s296 = sphi 0, %s296
    %s298 = sphi 0, %s296
    %s299 = sphi 0, %s298
    %s313 = sphi 0, %s299
    %s317 = sphi 0, %s317
    %s319 = sphi 0, %s317
    %s320 = sphi 0, %s319
    %s334 = sphi 0, %s320
    %s338 = sphi 0, %s338
    %s340 = sphi 0, %s338
    %s341 = sphi 0, %s340
    %s355 = sphi 0, %s341
    %s359 = sphi 0, %s359
    %s361 = sphi 0, %s359
    %s362 = sphi 0, %s361
    %s376 = sphi 0, %s362
    %s380 = sphi 0, %s380
    %s382 = sphi 0, %s380
    %s383 = sphi 0, %s382
    %s397 = sphi 0, %s383
    %s401 = sphi 0, %s401
    %s403 = sphi 0, %s401
    %s404 = sphi 0, %s403
    %s418 = sphi 0, %s404
    %s424 = sphi 0, %s426
    %s427 = sphi 0, %s424
    %s428 = sphi 0, %s427
    %s444 = sphi 0, %s428
    %s450 = sphi 0, %s452
    %s453 = sphi 0, %s450
    %s454 = sphi 0, %s453
    %s470 = sphi 0, %s454
  $region4: #{tower_forward.1} parent=0 // loop_header_branch
    %29 = sbr.rel (%p27) target = $region8
  $region5: #{tower_forward.1} parent=0 // loop_body
    %s31 = ssub.s32 %s26, 1
    %s32 = ssub.s32 %s26, 2
    %s33 = sadd.s32 %s26, 1
    %s34 = ssub.s32 %s26, %s33
    %p35 = scmp.eq.s32.totalorder %s34, 0
    %s37 = sadd.s32 %s36, 1
    %s38 = scalar_select %p35, %s36, %s37
    %p41 = pneg %p35
    %p42 = scmp.eq.s32.totalorder %s26, 1
    %p43 = por %p41, %p42
    %p44 = scmp.ne.s32.totalorder %s36, %s39
    %p45 = scmp.eq.s32.totalorder %s26, 0
    %p46 = por %p44, %p45
    %p47 = scmp.ne.s32.totalorder %s36, %s39
    %p48 = scmp.eq.s32.totalorder %s31, 1
    %p49 = por %p47, %p48
    %p50 = scmp.ne.s32.totalorder %s39, %s40
    %p51 = scmp.eq.s32.totalorder %s31, 0
    %p52 = por %p50, %p51
    %p53 = scmp.ne.s32.totalorder %s39, %s40
    %p54 = scmp.eq.s32.totalorder %s32, 1
    %p55 = por %p53, %p54
    %p57 = scmp.ne.s32.totalorder %s40, %s56
    %p58 = scmp.eq.s32.totalorder %s32, 0
    %p59 = por %p57, %p58
    %s60 = ssub.s32 %s26, %s33
    %p61 = scmp.eq.s32.totalorder %s60, 0
    %s63 = sadd.s32 %s62, 1
    %s64 = scalar_select %p61, %s62, %s63
    %p67 = pneg %p61
    %p68 = scmp.eq.s32.totalorder %s26, 1
    %p69 = por %p67, %p68
    %p70 = scmp.ne.s32.totalorder %s62, %s65
    %p71 = scmp.eq.s32.totalorder %s26, 0
    %p72 = por %p70, %p71
    %p73 = scmp.ne.s32.totalorder %s62, %s65
    %p74 = scmp.eq.s32.totalorder %s31, 1
    %p75 = por %p73, %p74
    %p76 = scmp.ne.s32.totalorder %s65, %s66
    %p77 = scmp.eq.s32.totalorder %s31, 0
    %p78 = por %p76, %p77
    %p79 = scmp.ne.s32.totalorder %s65, %s66
    %p80 = scmp.eq.s32.totalorder %s32, 1
    %p81 = por %p79, %p80
    %p83 = scmp.ne.s32.totalorder %s66, %s82
    %p84 = scmp.eq.s32.totalorder %s32, 0
    %p85 = por %p83, %p84
    %s87 = sadd.s32 %s86, 1
    %p90 = scmp.eq.s32.totalorder %s26, 1
    %p91 = scmp.ne.s32.totalorder %s86, %s88
    %p92 = scmp.eq.s32.totalorder %s26, 0
    %p93 = por %p91, %p92
    %p94 = scmp.ne.s32.totalorder %s86, %s88
    %p95 = scmp.eq.s32.totalorder %s31, 1
    %p96 = por %p94, %p95
    %p97 = scmp.ne.s32.totalorder %s88, %s89
    %p98 = scmp.eq.s32.totalorder %s31, 0
    %p99 = por %p97, %p98
    %p100 = scmp.ne.s32.totalorder %s88, %s89
    %p101 = scmp.eq.s32.totalorder %s32, 1
    %p102 = por %p100, %p101
    %p104 = scmp.ne.s32.totalorder %s89, %s103
    %p105 = scmp.eq.s32.totalorder %s32, 0
    %p106 = por %p104, %p105
    %s108 = sadd.s32 %s107, 1
    %p111 = scmp.eq.s32.totalorder %s26, 1
    %p112 = scmp.ne.s32.totalorder %s107, %s109
    %p113 = scmp.eq.s32.totalorder %s26, 0
    %p114 = por %p112, %p113
    %p115 = scmp.ne.s32.totalorder %s107, %s109
    %p116 = scmp.eq.s32.totalorder %s31, 1
    %p117 = por %p115, %p116
    %p118 = scmp.ne.s32.totalorder %s109, %s110
    %p119 = scmp.eq.s32.totalorder %s31, 0
    %p120 = por %p118, %p119
    %p121 = scmp.ne.s32.totalorder %s109, %s110
    %p122 = scmp.eq.s32.totalorder %s32, 1
    %p123 = por %p121, %p122
    %p125 = scmp.ne.s32.totalorder %s110, %s124
    %p126 = scmp.eq.s32.totalorder %s32, 0
    %p127 = por %p125, %p126
    %s129 = sadd.s32 %s128, 1
    %p132 = scmp.eq.s32.totalorder %s26, 1
    %p133 = scmp.ne.s32.totalorder %s128, %s130
    %p134 = scmp.eq.s32.totalorder %s26, 0
    %p135 = por %p133, %p134
    %p136 = scmp.ne.s32.totalorder %s128, %s130
    %p137 = scmp.eq.s32.totalorder %s31, 1
    %p138 = por %p136, %p137
    %p139 = scmp.ne.s32.totalorder %s130, %s131
    %p140 = scmp.eq.s32.totalorder %s31, 0
    %p141 = por %p139, %p140
    %p142 = scmp.ne.s32.totalorder %s130, %s131
    %p143 = scmp.eq.s32.totalorder %s32, 1
    %p144 = por %p142, %p143
    %p146 = scmp.ne.s32.totalorder %s131, %s145
    %p147 = scmp.eq.s32.totalorder %s32, 0
    %p148 = por %p146, %p147
    %s150 = sadd.s32 %s149, 1
    %p153 = scmp.eq.s32.totalorder %s26, 1
    %p154 = scmp.ne.s32.totalorder %s149, %s151
    %p155 = scmp.eq.s32.totalorder %s26, 0
    %p156 = por %p154, %p155
    %p157 = scmp.ne.s32.totalorder %s149, %s151
    %p158 = scmp.eq.s32.totalorder %s31, 1
    %p159 = por %p157, %p158
    %p160 = scmp.ne.s32.totalorder %s151, %s152
    %p161 = scmp.eq.s32.totalorder %s31, 0
    %p162 = por %p160, %p161
    %p163 = scmp.ne.s32.totalorder %s151, %s152
    %p164 = scmp.eq.s32.totalorder %s32, 1
    %p165 = por %p163, %p164
    %p167 = scmp.ne.s32.totalorder %s152, %s166
    %p168 = scmp.eq.s32.totalorder %s32, 0
    %p169 = por %p167, %p168
    %s171 = sadd.s32 %s170, 1
    %p174 = scmp.eq.s32.totalorder %s26, 1
    %p175 = scmp.ne.s32.totalorder %s170, %s172
    %p176 = scmp.eq.s32.totalorder %s26, 0
    %p177 = por %p175, %p176
    %p178 = scmp.ne.s32.totalorder %s170, %s172
    %p179 = scmp.eq.s32.totalorder %s31, 1
    %p180 = por %p178, %p179
    %p181 = scmp.ne.s32.totalorder %s172, %s173
    %p182 = scmp.eq.s32.totalorder %s31, 0
    %p183 = por %p181, %p182
    %p184 = scmp.ne.s32.totalorder %s172, %s173
    %p185 = scmp.eq.s32.totalorder %s32, 1
    %p186 = por %p184, %p185
    %p188 = scmp.ne.s32.totalorder %s173, %s187
    %p189 = scmp.eq.s32.totalorder %s32, 0
    %p190 = por %p188, %p189
    %s192 = sadd.s32 %s191, 1
    %p195 = scmp.eq.s32.totalorder %s26, 1
    %p196 = scmp.ne.s32.totalorder %s191, %s193
    %p197 = scmp.eq.s32.totalorder %s26, 0
    %p198 = por %p196, %p197
    %p199 = scmp.ne.s32.totalorder %s191, %s193
    %p200 = scmp.eq.s32.totalorder %s31, 1
    %p201 = por %p199, %p200
    %p202 = scmp.ne.s32.totalorder %s193, %s194
    %p203 = scmp.eq.s32.totalorder %s31, 0
    %p204 = por %p202, %p203
    %p205 = scmp.ne.s32.totalorder %s193, %s194
    %p206 = scmp.eq.s32.totalorder %s32, 1
    %p207 = por %p205, %p206
    %p209 = scmp.ne.s32.totalorder %s194, %s208
    %p210 = scmp.eq.s32.totalorder %s32, 0
    %p211 = por %p209, %p210
    %s213 = sadd.s32 %s212, 1
    %p216 = scmp.eq.s32.totalorder %s26, 1
    %p217 = scmp.ne.s32.totalorder %s212, %s214
    %p218 = scmp.eq.s32.totalorder %s26, 0
    %p219 = por %p217, %p218
    %p220 = scmp.ne.s32.totalorder %s212, %s214
    %p221 = scmp.eq.s32.totalorder %s31, 1
    %p222 = por %p220, %p221
    %p223 = scmp.ne.s32.totalorder %s214, %s215
    %p224 = scmp.eq.s32.totalorder %s31, 0
    %p225 = por %p223, %p224
    %p226 = scmp.ne.s32.totalorder %s214, %s215
    %p227 = scmp.eq.s32.totalorder %s32, 1
    %p228 = por %p226, %p227
    %p230 = scmp.ne.s32.totalorder %s215, %s229
    %p231 = scmp.eq.s32.totalorder %s32, 0
    %p232 = por %p230, %p231
    %s234 = sadd.s32 %s233, 1
    %p237 = scmp.eq.s32.totalorder %s26, 1
    %p238 = scmp.ne.s32.totalorder %s233, %s235
    %p239 = scmp.eq.s32.totalorder %s26, 0
    %p240 = por %p238, %p239
    %p241 = scmp.ne.s32.totalorder %s233, %s235
    %p242 = scmp.eq.s32.totalorder %s31, 1
    %p243 = por %p241, %p242
    %p244 = scmp.ne.s32.totalorder %s235, %s236
    %p245 = scmp.eq.s32.totalorder %s31, 0
    %p246 = por %p244, %p245
    %p247 = scmp.ne.s32.totalorder %s235, %s236
    %p248 = scmp.eq.s32.totalorder %s32, 1
    %p249 = por %p247, %p248
    %p251 = scmp.ne.s32.totalorder %s236, %s250
    %p252 = scmp.eq.s32.totalorder %s32, 0
    %p253 = por %p251, %p252
    %s255 = sadd.s32 %s254, 1
    %p258 = scmp.eq.s32.totalorder %s26, 1
    %p259 = scmp.ne.s32.totalorder %s254, %s256
    %p260 = scmp.eq.s32.totalorder %s26, 0
    %p261 = por %p259, %p260
    %p262 = scmp.ne.s32.totalorder %s254, %s256
    %p263 = scmp.eq.s32.totalorder %s31, 1
    %p264 = por %p262, %p263
    %p265 = scmp.ne.s32.totalorder %s256, %s257
    %p266 = scmp.eq.s32.totalorder %s31, 0
    %p267 = por %p265, %p266
    %p268 = scmp.ne.s32.totalorder %s256, %s257
    %p269 = scmp.eq.s32.totalorder %s32, 1
    %p270 = por %p268, %p269
    %p272 = scmp.ne.s32.totalorder %s257, %s271
    %p273 = scmp.eq.s32.totalorder %s32, 0
    %p274 = por %p272, %p273
    %s276 = sadd.s32 %s275, 1
    %p279 = scmp.eq.s32.totalorder %s26, 1
    %p280 = scmp.ne.s32.totalorder %s275, %s277
    %p281 = scmp.eq.s32.totalorder %s26, 0
    %p282 = por %p280, %p281
    %p283 = scmp.ne.s32.totalorder %s275, %s277
    %p284 = scmp.eq.s32.totalorder %s31, 1
    %p285 = por %p283, %p284
    %p286 = scmp.ne.s32.totalorder %s277, %s278
    %p287 = scmp.eq.s32.totalorder %s31, 0
    %p288 = por %p286, %p287
    %p289 = scmp.ne.s32.totalorder %s277, %s278
    %p290 = scmp.eq.s32.totalorder %s32, 1
    %p291 = por %p289, %p290
    %p293 = scmp.ne.s32.totalorder %s278, %s292
    %p294 = scmp.eq.s32.totalorder %s32, 0
    %p295 = por %p293, %p294
    %s297 = sadd.s32 %s296, 1
    %p300 = scmp.eq.s32.totalorder %s26, 1
    %p301 = scmp.ne.s32.totalorder %s296, %s298
    %p302 = scmp.eq.s32.totalorder %s26, 0
    %p303 = por %p301, %p302
    %p304 = scmp.ne.s32.totalorder %s296, %s298
    %p305 = scmp.eq.s32.totalorder %s31, 1
    %p306 = por %p304, %p305
    %p307 = scmp.ne.s32.totalorder %s298, %s299
    %p308 = scmp.eq.s32.totalorder %s31, 0
    %p309 = por %p307, %p308
    %p310 = scmp.ne.s32.totalorder %s298, %s299
    %p311 = scmp.eq.s32.totalorder %s32, 1
    %p312 = por %p310, %p311
    %p314 = scmp.ne.s32.totalorder %s299, %s313
    %p315 = scmp.eq.s32.totalorder %s32, 0
    %p316 = por %p314, %p315
    %s318 = sadd.s32 %s317, 1
    %p321 = scmp.eq.s32.totalorder %s26, 1
    %p322 = scmp.ne.s32.totalorder %s317, %s319
    %p323 = scmp.eq.s32.totalorder %s26, 0
    %p324 = por %p322, %p323
    %p325 = scmp.ne.s32.totalorder %s317, %s319
    %p326 = scmp.eq.s32.totalorder %s31, 1
    %p327 = por %p325, %p326
    %p328 = scmp.ne.s32.totalorder %s319, %s320
    %p329 = scmp.eq.s32.totalorder %s31, 0
    %p330 = por %p328, %p329
    %p331 = scmp.ne.s32.totalorder %s319, %s320
    %p332 = scmp.eq.s32.totalorder %s32, 1
    %p333 = por %p331, %p332
    %p335 = scmp.ne.s32.totalorder %s320, %s334
    %p336 = scmp.eq.s32.totalorder %s32, 0
    %p337 = por %p335, %p336
    %s339 = sadd.s32 %s338, 1
    %p342 = scmp.eq.s32.totalorder %s26, 1
    %p343 = scmp.ne.s32.totalorder %s338, %s340
    %p344 = scmp.eq.s32.totalorder %s26, 0
    %p345 = por %p343, %p344
    %p346 = scmp.ne.s32.totalorder %s338, %s340
    %p347 = scmp.eq.s32.totalorder %s31, 1
    %p348 = por %p346, %p347
    %p349 = scmp.ne.s32.totalorder %s340, %s341
    %p350 = scmp.eq.s32.totalorder %s31, 0
    %p351 = por %p349, %p350
    %p352 = scmp.ne.s32.totalorder %s340, %s341
    %p353 = scmp.eq.s32.totalorder %s32, 1
    %p354 = por %p352, %p353
    %p356 = scmp.ne.s32.totalorder %s341, %s355
    %p357 = scmp.eq.s32.totalorder %s32, 0
    %p358 = por %p356, %p357
    %s360 = sadd.s32 %s359, 1
    %p363 = scmp.eq.s32.totalorder %s26, 1
    %p364 = scmp.ne.s32.totalorder %s359, %s361
    %p365 = scmp.eq.s32.totalorder %s26, 0
    %p366 = por %p364, %p365
    %p367 = scmp.ne.s32.totalorder %s359, %s361
    %p368 = scmp.eq.s32.totalorder %s31, 1
    %p369 = por %p367, %p368
    %p370 = scmp.ne.s32.totalorder %s361, %s362
    %p371 = scmp.eq.s32.totalorder %s31, 0
    %p372 = por %p370, %p371
    %p373 = scmp.ne.s32.totalorder %s361, %s362
    %p374 = scmp.eq.s32.totalorder %s32, 1
    %p375 = por %p373, %p374
    %p377 = scmp.ne.s32.totalorder %s362, %s376
    %p378 = scmp.eq.s32.totalorder %s32, 0
    %p379 = por %p377, %p378
    %s381 = sadd.s32 %s380, 1
    %p384 = scmp.eq.s32.totalorder %s26, 1
    %p385 = scmp.ne.s32.totalorder %s380, %s382
    %p386 = scmp.eq.s32.totalorder %s26, 0
    %p387 = por %p385, %p386
    %p388 = scmp.ne.s32.totalorder %s380, %s382
    %p389 = scmp.eq.s32.totalorder %s31, 1
    %p390 = por %p388, %p389
    %p391 = scmp.ne.s32.totalorder %s382, %s383
    %p392 = scmp.eq.s32.totalorder %s31, 0
    %p393 = por %p391, %p392
    %p394 = scmp.ne.s32.totalorder %s382, %s383
    %p395 = scmp.eq.s32.totalorder %s32, 1
    %p396 = por %p394, %p395
    %p398 = scmp.ne.s32.totalorder %s383, %s397
    %p399 = scmp.eq.s32.totalorder %s32, 0
    %p400 = por %p398, %p399
    %s402 = sadd.s32 %s401, 1
    %p405 = scmp.eq.s32.totalorder %s26, 1
    %p406 = scmp.ne.s32.totalorder %s401, %s403
    %p407 = scmp.eq.s32.totalorder %s26, 0
    %p408 = por %p406, %p407
    %p409 = scmp.ne.s32.totalorder %s401, %s403
    %p410 = scmp.eq.s32.totalorder %s31, 1
    %p411 = por %p409, %p410
    %p412 = scmp.ne.s32.totalorder %s403, %s404
    %p413 = scmp.eq.s32.totalorder %s31, 0
    %p414 = por %p412, %p413
    %p415 = scmp.ne.s32.totalorder %s403, %s404
    %p416 = scmp.eq.s32.totalorder %s32, 1
    %p417 = por %p415, %p416
    %p419 = scmp.ne.s32.totalorder %s404, %s418
    %p420 = scmp.eq.s32.totalorder %s32, 0
    %p421 = por %p419, %p420
    %s422 = ssub.s32 %s26, %s33
    %p423 = scmp.eq.s32.totalorder %s422, 0
    %s425 = sadd.s32 %s424, 1
    %s426 = scalar_select %p423, %s424, %s425
    %p429 = pneg %p423
    %p430 = scmp.eq.s32.totalorder %s26, 1
    %p431 = por %p429, %p430
    %p432 = scmp.ne.s32.totalorder %s424, %s427
    %p433 = scmp.eq.s32.totalorder %s26, 0
    %p434 = por %p432, %p433
    %p435 = scmp.ne.s32.totalorder %s424, %s427
    %p436 = scmp.eq.s32.totalorder %s31, 1
    %p437 = por %p435, %p436
    %p438 = scmp.ne.s32.totalorder %s427, %s428
    %p439 = scmp.eq.s32.totalorder %s31, 0
    %p440 = por %p438, %p439
    %p441 = scmp.ne.s32.totalorder %s427, %s428
    %p442 = scmp.eq.s32.totalorder %s32, 1
    %p443 = por %p441, %p442
    %p445 = scmp.ne.s32.totalorder %s428, %s444
    %p446 = scmp.eq.s32.totalorder %s32, 0
    %p447 = por %p445, %p446
    %s448 = ssub.s32 %s26, %s33
    %p449 = scmp.eq.s32.totalorder %s448, 0
    %s451 = sadd.s32 %s450, 1
    %s452 = scalar_select %p449, %s450, %s451
    %p455 = pneg %p449
    %p456 = scmp.eq.s32.totalorder %s26, 1
    %p457 = por %p455, %p456
    %p458 = scmp.ne.s32.totalorder %s450, %s453
    %p459 = scmp.eq.s32.totalorder %s26, 0
    %p460 = por %p458, %p459
    %p461 = scmp.ne.s32.totalorder %s450, %s453
    %p462 = scmp.eq.s32.totalorder %s31, 1
    %p463 = por %p461, %p462
    %p464 = scmp.ne.s32.totalorder %s453, %s454
    %p465 = scmp.eq.s32.totalorder %s31, 0
    %p466 = por %p464, %p465
    %p467 = scmp.ne.s32.totalorder %s453, %s454
    %p468 = scmp.eq.s32.totalorder %s32, 1
    %p469 = por %p467, %p468
    %p471 = scmp.ne.s32.totalorder %s454, %s470
    %p472 = scmp.eq.s32.totalorder %s32, 0
    %p473 = por %p471, %p472
    %p474 = scmp.le.s32.totalorder 1, %s26
    %p475 = scmp.lt.s32.totalorder %s26, 3
    %p476 = pnand %p474, %p475
    %p477 = pneg %p476
    // Predicated region
    $region9: #{tower_forward.1} parent=5 // pred_check
      _
    $region10: #{tower_forward.1} parent=5 // pred_check_branch
      %479 = sbr.rel (%p476) target = $region12
    $region11: #{tower_forward.1} parent=5 // pred_region
      %s480 = ssub.s32 %s26, 1
      // Predicated region
      $region13: #{tower_forward.1} parent=11 // pred_check
        %p481 = pneg %p99
      $region14: #{tower_forward.1} parent=11 // pred_check_branch
        %483 = sbr.rel (%p481) target = $region16
      $region15: #{tower_forward.1} parent=11 // pred_region
        _
      $region16: #{tower_forward.1} parent=11 // pred_fallthru
        _
      // Predicated region
      $region17: #{tower_forward.1} parent=11 // pred_check
        %p484 = pneg %p120
      $region18: #{tower_forward.1} parent=11 // pred_check_branch
        %486 = sbr.rel (%p484) target = $region20
      $region19: #{tower_forward.1} parent=11 // pred_region
        _
      $region20: #{tower_forward.1} parent=11 // pred_fallthru
        _
      // Predicated region
      $region21: #{tower_forward.1} parent=11 // pred_check
        %p487 = pneg %p141
      $region22: #{tower_forward.1} parent=11 // pred_check_branch
        %489 = sbr.rel (%p487) target = $region24
      $region23: #{tower_forward.1} parent=11 // pred_region
        _
      $region24: #{tower_forward.1} parent=11 // pred_fallthru
        _
      // Predicated region
      $region25: #{tower_forward.1} parent=11 // pred_check
        %p490 = pneg %p162
      $region26: #{tower_forward.1} parent=11 // pred_check_branch
        %492 = sbr.rel (%p490) target = $region28
      $region27: #{tower_forward.1} parent=11 // pred_region
        _
      $region28: #{tower_forward.1} parent=11 // pred_fallthru
        _
      // Predicated region
      $region29: #{tower_forward.1} parent=11 // pred_check
        %p493 = pneg %p183
      $region30: #{tower_forward.1} parent=11 // pred_check_branch
        %495 = sbr.rel (%p493) target = $region32
      $region31: #{tower_forward.1} parent=11 // pred_region
        _
      $region32: #{tower_forward.1} parent=11 // pred_fallthru
        _
      // Predicated region
      $region33: #{tower_forward.1} parent=11 // pred_check
        %p496 = pneg %p204
      $region34: #{tower_forward.1} parent=11 // pred_check_branch
        %498 = sbr.rel (%p496) target = $region36
      $region35: #{tower_forward.1} parent=11 // pred_region
        _
      $region36: #{tower_forward.1} parent=11 // pred_fallthru
        _
      // Predicated region
      $region37: #{tower_forward.1} parent=11 // pred_check
        %p499 = pneg %p225
      $region38: #{tower_forward.1} parent=11 // pred_check_branch
        %501 = sbr.rel (%p499) target = $region40
      $region39: #{tower_forward.1} parent=11 // pred_region
        _
      $region40: #{tower_forward.1} parent=11 // pred_fallthru
        _
      // Predicated region
      $region41: #{tower_forward.1} parent=11 // pred_check
        %p502 = pneg %p246
      $region42: #{tower_forward.1} parent=11 // pred_check_branch
        %504 = sbr.rel (%p502) target = $region44
      $region43: #{tower_forward.1} parent=11 // pred_region
        _
      $region44: #{tower_forward.1} parent=11 // pred_fallthru
        _
      // Predicated region
      $region45: #{tower_forward.1} parent=11 // pred_check
        %p505 = pneg %p267
      $region46: #{tower_forward.1} parent=11 // pred_check_branch
        %507 = sbr.rel (%p505) target = $region48
      $region47: #{tower_forward.1} parent=11 // pred_region
        _
      $region48: #{tower_forward.1} parent=11 // pred_fallthru
        _
      // Predicated region
      $region49: #{tower_forward.1} parent=11 // pred_check
        %p508 = pneg %p288
      $region50: #{tower_forward.1} parent=11 // pred_check_branch
        %510 = sbr.rel (%p508) target = $region52
      $region51: #{tower_forward.1} parent=11 // pred_region
        _
      $region52: #{tower_forward.1} parent=11 // pred_fallthru
        _
      // Predicated region
      $region53: #{tower_forward.1} parent=11 // pred_check
        %p511 = pneg %p309
      $region54: #{tower_forward.1} parent=11 // pred_check_branch
        %513 = sbr.rel (%p511) target = $region56
      $region55: #{tower_forward.1} parent=11 // pred_region
        _
      $region56: #{tower_forward.1} parent=11 // pred_fallthru
        _
      // Predicated region
      $region57: #{tower_forward.1} parent=11 // pred_check
        %p514 = pneg %p330
      $region58: #{tower_forward.1} parent=11 // pred_check_branch
        %516 = sbr.rel (%p514) target = $region60
      $region59: #{tower_forward.1} parent=11 // pred_region
        _
      $region60: #{tower_forward.1} parent=11 // pred_fallthru
        _
      // Predicated region
      $region61: #{tower_forward.1} parent=11 // pred_check
        %p517 = pneg %p351
      $region62: #{tower_forward.1} parent=11 // pred_check_branch
        %519 = sbr.rel (%p517) target = $region64
      $region63: #{tower_forward.1} parent=11 // pred_region
        _
      $region64: #{tower_forward.1} parent=11 // pred_fallthru
        _
      // Predicated region
      $region65: #{tower_forward.1} parent=11 // pred_check
        %p520 = pneg %p372
      $region66: #{tower_forward.1} parent=11 // pred_check_branch
        %522 = sbr.rel (%p520) target = $region68
      $region67: #{tower_forward.1} parent=11 // pred_region
        _
      $region68: #{tower_forward.1} parent=11 // pred_fallthru
        _
      // Predicated region
      $region69: #{tower_forward.1} parent=11 // pred_check
        %p523 = pneg %p393
      $region70: #{tower_forward.1} parent=11 // pred_check_branch
        %525 = sbr.rel (%p523) target = $region72
      $region71: #{tower_forward.1} parent=11 // pred_region
        _
      $region72: #{tower_forward.1} parent=11 // pred_fallthru
        _
      // Predicated region
      $region73: #{tower_forward.1} parent=11 // pred_check
        %p526 = pneg %p414
      $region74: #{tower_forward.1} parent=11 // pred_check_branch
        %528 = sbr.rel (%p526) target = $region76
      $region75: #{tower_forward.1} parent=11 // pred_region
        _
      $region76: #{tower_forward.1} parent=11 // pred_fallthru
        _
    $region12: #{tower_forward.1} parent=5 // pred_fallthru
      _
    %p529 = scmp.lt.s32.totalorder %s26, 2
    // Predicated region
    $region77: #{tower_forward.1} parent=5 // pred_check
      %p530 = pneg %p529
    $region78: #{tower_forward.1} parent=5 // pred_check_branch
      %532 = sbr.rel (%p530) target = $region80
    $region79: #{tower_forward.1} parent=5 // pred_region
      // Predicated region
      $region81: #{tower_forward.1} parent=79 // pred_check
        %p533 = pneg %p46
      $region82: #{tower_forward.1} parent=79 // pred_check_branch
        %535 = sbr.rel (%p533) target = $region84
      $region83: #{tower_forward.1} parent=79 // pred_region
        %p536 = scmp.lt.s32.totalorder %s26, 1
        %s537 = scalar_select %p536, %s26, 1
        %s538 = smul.addr %s537, 2
        %s539 = scalar_lea.vmem %s0, %s538
      $region84: #{tower_forward.1} parent=79 // pred_fallthru
        _
      // Predicated region
      $region85: #{tower_forward.1} parent=79 // pred_check
        %p540 = pneg %p72
      $region86: #{tower_forward.1} parent=79 // pred_check_branch
        %542 = sbr.rel (%p540) target = $region88
      $region87: #{tower_forward.1} parent=79 // pred_region
        %p543 = scmp.lt.s32.totalorder %s26, 1
        %s544 = scalar_select %p543, %s26, 1
        %s545 = scalar_lea.vmem %s1, %s544
      $region88: #{tower_forward.1} parent=79 // pred_fallthru
        _
    $region80: #{tower_forward.1} parent=5 // pred_fallthru
      _
    %p546 = scmp.le.s32.totalorder 1, %s26
    %p547 = scmp.lt.s32.totalorder %s26, 3
    %p548 = pnand %p546, %p547
    %p549 = pneg %p548
    // Predicated region
    $region89: #{tower_forward.1} parent=5 // pred_check
      _
    $region90: #{tower_forward.1} parent=5 // pred_check_branch
      %551 = sbr.rel (%p548) target = $region92
    $region91: #{tower_forward.1} parent=5 // pred_region
      %s552 = ssub.s32 %s26, 1
      %p553 = scmp.lt.s32.totalorder %s31, 1
      %s554 = scalar_select %p553, %s31, 1
      %s555 = smul.addr %s554, 2
      %s556 = scalar_lea.vmem %s0, %s555
      %p557 = pneg %p52
      %p558 = pneg %p49
      %p559 = scmp.lt.s32.totalorder %s31, 1
      %s560 = scalar_select %p559, %s31, 1
      %s561 = scalar_lea.vmem %s1, %s560
      %p562 = pneg %p78
      %p563 = pneg %p75
      %p564 = pneg %p99
      %p565 = pneg %p96
      %p566 = pneg %p120
      %p567 = pneg %p117
      %p568 = pneg %p141
      %p569 = pneg %p138
      %p570 = pneg %p162
      %p571 = pneg %p159
      %p572 = pneg %p183
      %p573 = pneg %p180
      %p574 = pneg %p204
      %p575 = pneg %p201
      %p576 = pneg %p225
      %p577 = pneg %p222
      %p578 = pneg %p246
      %p579 = pneg %p243
      %p580 = pneg %p267
      %p581 = pneg %p264
      %p582 = pneg %p288
      %p583 = pneg %p285
      %p584 = pneg %p309
      %p585 = pneg %p306
      %p586 = pneg %p330
      %p587 = pneg %p327
      %p588 = pneg %p351
      %p589 = pneg %p348
      %p590 = pneg %p372
      %p591 = pneg %p369
      %p592 = pneg %p393
      %p593 = pneg %p390
      %p594 = pneg %p414
      %p595 = pneg %p411
      %p596 = pneg %p440
      %p597 = pneg %p437
      %p598 = scmp.lt.s32.totalorder %s31, 1
      %s599 = scalar_select %p598, %s31, 1
      %s600 = smul.addr %s599, 4
      %s601 = smul.addr %s600, 8
      %s602 = scalar_lea.vmem %s18, %s601
      %p603 = pneg %p466
      %p604 = pneg %p463
      %p605 = scmp.lt.s32.totalorder %s31, 1
      %s606 = scalar_select %p605, %s31, 1
      %s607 = smul.addr %s606, 8
      %s608 = scalar_lea.vmem %s19, %s607
      %p609 = scmp.lt.s32.totalorder %s31, 1
      %s610 = scalar_select %p609, %s31, 1
      %s611 = smul.addr %s610, 2
      %s612 = scalar_lea.vmem %s0, %s611
      %p613 = scmp.lt.s32.totalorder %s31, 1
      %s614 = scalar_select %p613, %s31, 1
      %s615 = scalar_lea.vmem %s1, %s614
      %p616 = scmp.lt.s32.totalorder %s31, 1
      %s617 = scalar_select %p616, %s31, 1
      %s618 = smul.addr %s617, 4
      %s619 = smul.addr %s618, 8
      %s620 = scalar_lea.vmem %s18, %s619
      %p621 = scmp.lt.s32.totalorder %s31, 1
      %s622 = scalar_select %p621, %s31, 1
      %s623 = smul.addr %s622, 8
      %s624 = scalar_lea.vmem %s19, %s623
      %v626 = vld [vmem:[%s612] sm:$0x3]
      %v627 = vld [vmem:[%s615] sm:$0x1]
      %v628 = vlaneseq
      %v629 = vand.u32 %v628, 127
      %v630 = vld [vmem:[%s2] sm:$0xf]
      %v631 = vld [vmem:[%s2 + $0x4] sm:$0xf]
      %v632 = vld [vmem:[%s2 + $0x8] sm:$0xf]
      %v633 = vld [vmem:[%s2 + $0xc] sm:$0xf]
      %v634 = vld [vmem:[%s3] sm:$0xff]
      %v635 = vld [vmem:[%s3 + $0x8] sm:$0xff]
      %v636 = vld [vmem:[%s3 + $0x10] sm:$0xff]
      %v637 = vld [vmem:[%s3 + $0x18] sm:$0xff]
      %639 = vset.pattern.permute.xlu0 0
      %640 = vperm.xlu0 %639, %v634
      %v641 = vpop.permute.xlu0 %640
      %644 = vset.pattern.permute.xlu0 0
      %645 = vperm.xlu0 %644, %v635
      %v646 = vpop.permute.xlu0 %645
      %649 = vset.pattern.permute.xlu0 0
      %650 = vperm.xlu0 %649, %v636
      %v651 = vpop.permute.xlu0 %650
      %654 = vset.pattern.permute.xlu0 0
      %655 = vperm.xlu0 %654, %v637
      %v656 = vpop.permute.xlu0 %655
      %v662 = vunpack.c.l.b16 %v630
      %v663 = vunpack.c.l.b16 %v631
      %v664 = vunpack.c.l.b16 %v632
      %v665 = vunpack.c.l.b16 %v633
      %v666 = vpack.c.b16 %v663, %v662
      %v667 = vpack.c.b16 %v665, %v664
      %vm668 = vcmask 31744
      %v670 = vsel %vm668, %v666, 0
      %v673 = vsel %vm668, %v667, 0
      %vm675 = vcmask 1041408
      %v677 = vsel %vm675, %v626, 0
      %679 = vmatprep.subr.bf16.mxu0 0
      %680 = vmatpush1.bf16.msra.mxu0 %v677
      %681 = vmatprep.subr.bf16.mxu0 0
      %682 = vmatpush1.bf16.msra.mxu0 0
      %683 = vmatprep.subr.bf16.mxu0 0
      %684 = vmatpush1.bf16.msra.mxu0 0
      %685 = vmatprep.subr.bf16.mxu0 0
      %686 = vmatpush1.bf16.msra.mxu0 0
      %687 = vmatprep.subr.bf16.mxu0 0
      %688 = vmatpush1.bf16.msra.mxu0 0
      %689 = vmatprep.subr.bf16.mxu0 0
      %690 = vmatpush1.bf16.msra.mxu0 0
      %691 = vmatprep.subr.bf16.mxu0 0
      %692 = vmatpush1.bf16.msra.mxu0 0
      %693 = vmatprep.subr.bf16.mxu0 0
      %694 = vmatpush1.bf16.msra.mxu0 0
      %695 = vmatprep.subr.bf16.mxu0 0
      %696 = vmatpush1.bf16.msra.mxu0 0
      %697 = vmatprep.subr.bf16.mxu0 0
      %698 = vmatpush1.bf16.msra.mxu0 0
      %699 = vmatprep.subr.bf16.mxu0 0
      %700 = vmatpush1.bf16.msra.mxu0 0
      %701 = vmatprep.subr.bf16.mxu0 0
      %702 = vmatpush1.bf16.msra.mxu0 0
      %703 = vmatprep.subr.bf16.mxu0 0
      %704 = vmatpush1.bf16.msra.mxu0 0
      %705 = vmatprep.subr.bf16.mxu0 0
      %706 = vmatpush1.bf16.msra.mxu0 0
      %707 = vmatprep.subr.bf16.mxu0 0
      %708 = vmatpush1.bf16.msra.mxu0 0
      %709 = vmatprep.subr.bf16.mxu0 0
      %710 = vmatpush1.bf16.msra.mxu0 0
      %711 = vmatprep.mubr.bf16.mxu0 0
      %712 = vmatmul.mubr.bf16.gmra.mrb[0].mxu0 %v670
      %v713 = vpop.f32.mrb[0].mxu0
      %v714 = vadd.f32 %v641, %v713
      %v715 = vpop.f32.mrb[0].mxu0
      %v716 = vpop.f32.mrb[0].mxu0
      %v717 = vadd.f32 %v646, %v716
      %v718 = vpop.f32.mrb[0].mxu0
      %719 = vmatprep.mubr.bf16.mxu0 0
      %720 = vmatmul.mubr.bf16.gmra.mrb[0].mxu0 %v673
      %v721 = vpop.f32.mrb[0].mxu0
      %v722 = vadd.f32 %v651, %v721
      %v723 = vpop.f32.mrb[0].mxu0
      %v724 = vpop.f32.mrb[0].mxu0
      %v725 = vadd.f32 %v656, %v724
      %v726 = vpop.f32.mrb[0].mxu0
      %727 = vdwg.mxu0
      %728 = vrot.lane.b32.xlu0 %v714, 1
      %v729 = vpop.permute.xlu0 %728
      %730 = vrot.lane.b32.xlu0 %v717, 1
      %v731 = vpop.permute.xlu0 %730
      %732 = vrot.lane.b32.xlu0 %v722, 1
      %v733 = vpop.permute.xlu0 %732
      %734 = vrot.lane.b32.xlu0 %v725, 1
      %v735 = vpop.permute.xlu0 %734
      %v736 = vadd.s32 %v629, 4294967295
      %vm737 = vcmp.ge.s32.totalorder %v736, 0
      %vm738 = vcmp.lt.s32.totalorder %v736, 16
      %vm739 = vmand %vm737, %vm738
      %v740 = vsel %vm739, 1, 0
      %vm741 = vcmp.eq.s32.totalorder %v740, 1
      %v742 = vsel %vm741, %v729, 0.0
      %v743 = vsel %vm741, %v731, 0.0
      %v744 = vsel %vm741, %v733, 0.0
      %v745 = vsel %vm741, %v735, 0.0
      %vm746 = vcmp.ge.s32.totalorder %v629, 0
      %vm747 = vcmp.lt.s32.totalorder %v629, 16
      %vm748 = vmand %vm746, %vm747
      %v749 = vsel %vm748, 1, 0
      %vm750 = vcmp.eq.s32.totalorder %v749, 1
      %v751 = vsel %vm750, %v714, 0.0
      %v752 = vsel %vm750, %v717, 0.0
      %v753 = vsel %vm750, %v722, 0.0
      %v754 = vsel %vm750, %v725, 0.0
      %755 = vrot.lane.b32.xlu0 %v714, 127
      %v756 = vpop.permute.xlu0 %755
      %757 = vrot.lane.b32.xlu0 %v717, 127
      %v758 = vpop.permute.xlu0 %757
      %759 = vrot.lane.b32.xlu0 %v722, 127
      %v760 = vpop.permute.xlu0 %759
      %761 = vrot.lane.b32.xlu0 %v725, 127
      %v762 = vpop.permute.xlu0 %761
      %v763 = vadd.s32 %v629, 1
      %vm764 = vcmp.ge.s32.totalorder %v763, 0
      %vm765 = vcmp.lt.s32.totalorder %v763, 16
      %vm766 = vmand %vm764, %vm765
      %v767 = vsel %vm766, 1, 0
      %vm768 = vcmp.eq.s32.totalorder %v767, 1
      %v769 = vsel %vm768, %v756, 0.0
      %v770 = vsel %vm768, %v758, 0.0
      %v771 = vsel %vm768, %v760, 0.0
      %v772 = vsel %vm768, %v762, 0.0
      %v773 = vpack.c.bf16 %v743, %v742
      %v774 = vpack.c.bf16 %v745, %v744
      %v775 = vpack.c.bf16 %v752, %v751
      %v776 = vpack.c.bf16 %v754, %v753
      %v777 = vpack.c.bf16 %v770, %v769
      %v778 = vpack.c.bf16 %v772, %v771
      %v779 = vld [vmem:[%s4] sm:$0xf]
      %v780 = vld [vmem:[%s4 + $0x4] sm:$0xf]
      %v781 = vld [vmem:[%s4 + $0x8] sm:$0xf]
      %v782 = vld [vmem:[%s4 + $0xc] sm:$0xf]
      %v783 = vld [vmem:[%s5] sm:$0xff]
      %v784 = vld [vmem:[%s5 + $0x8] sm:$0xff]
      %v785 = vld [vmem:[%s5 + $0x10] sm:$0xff]
      %v786 = vld [vmem:[%s5 + $0x18] sm:$0xff]
      %788 = vset.pattern.permute.xlu0 0
      %789 = vperm.xlu0 %788, %v783
      %v790 = vpop.permute.xlu0 %789
      %793 = vset.pattern.permute.xlu0 0
      %794 = vperm.xlu0 %793, %v784
      %v795 = vpop.permute.xlu0 %794
      %798 = vset.pattern.permute.xlu0 0
      %799 = vperm.xlu0 %798, %v785
      %v800 = vpop.permute.xlu0 %799
      %803 = vset.pattern.permute.xlu0 0
      %804 = vperm.xlu0 %803, %v786
      %v805 = vpop.permute.xlu0 %804
      %v811 = vunpack.c.l.b16 %v779
      %v812 = vunpack.c.l.b16 %v780
      %v813 = vunpack.c.l.b16 %v781
      %v814 = vunpack.c.l.b16 %v782
      %v815 = vpack.c.b16 %v812, %v811
      %v816 = vpack.c.b16 %v814, %v813
      %vm817 = vcmask 785408
      %v819 = vsel %vm817, %v815, 0
      %v822 = vsel %vm817, %v816, 0
      %824 = vmatprep.subr.bf16.mxu0 0
      %825 = vmatpush1.bf16.msra.mxu0 %v773
      %826 = vmatprep.subr.bf16.mxu0 0
      %827 = vmatpush1.bf16.msra.mxu0 %v774
      %828 = vmatprep.subr.bf16.mxu0 0
      %829 = vmatpush1.bf16.msra.mxu0 %v775
      %830 = vmatprep.subr.bf16.mxu0 0
      %831 = vmatpush1.bf16.msra.mxu0 %v776
      %832 = vmatprep.subr.bf16.mxu0 0
      %833 = vmatpush1.bf16.msra.mxu0 %v777
      %834 = vmatprep.subr.bf16.mxu0 0
      %835 = vmatpush1.bf16.msra.mxu0 %v778
      %836 = vmatprep.subr.bf16.mxu0 0
      %837 = vmatpush1.bf16.msra.mxu0 0
      %838 = vmatprep.subr.bf16.mxu0 0
      %839 = vmatpush1.bf16.msra.mxu0 0
      %840 = vmatprep.subr.bf16.mxu0 0
      %841 = vmatpush1.bf16.msra.mxu0 0
      %842 = vmatprep.subr.bf16.mxu0 0
      %843 = vmatpush1.bf16.msra.mxu0 0
      %844 = vmatprep.subr.bf16.mxu0 0
      %845 = vmatpush1.bf16.msra.mxu0 0
      %846 = vmatprep.subr.bf16.mxu0 0
      %847 = vmatpush1.bf16.msra.mxu0 0
      %848 = vmatprep.subr.bf16.mxu0 0
      %849 = vmatpush1.bf16.msra.mxu0 0
      %850 = vmatprep.subr.bf16.mxu0 0
      %851 = vmatpush1.bf16.msra.mxu0 0
      %852 = vmatprep.subr.bf16.mxu0 0
      %853 = vmatpush1.bf16.msra.mxu0 0
      %854 = vmatprep.subr.bf16.mxu0 0
      %855 = vmatpush1.bf16.msra.mxu0 0
      %856 = vmatprep.mubr.bf16.mxu0 0
      %857 = vmatmul.mubr.bf16.gmra.mrb[0].mxu0 %v819
      %v858 = vpop.f32.mrb[0].mxu0
      %v859 = vadd.f32 %v790, %v858
      %v860 = vpop.f32.mrb[0].mxu0
      %v861 = vpop.f32.mrb[0].mxu0
      %v862 = vadd.f32 %v795, %v861
      %v863 = vpop.f32.mrb[0].mxu0
      %864 = vmatprep.mubr.bf16.mxu0 0
      %865 = vmatmul.mubr.bf16.gmra.mrb[0].mxu0 %v822
      %v866 = vpop.f32.mrb[0].mxu0
      %v867 = vadd.f32 %v800, %v866
      %v868 = vpop.f32.mrb[0].mxu0
      %v869 = vpop.f32.mrb[0].mxu0
      %v870 = vadd.f32 %v805, %v869
      %v871 = vpop.f32.mrb[0].mxu0
      %872 = vdwg.mxu0
      %v873 = vmax.f32 %v859, 0.0
      %v874 = vmax.f32 %v862, 0.0
      %v875 = vmax.f32 %v867, 0.0
      %v876 = vmax.f32 %v870, 0.0
      %v877 = vld [vmem:[%s6] sm:$0xf]
      %v878 = vld [vmem:[%s6 + $0x4] sm:$0xf]
      %v879 = vld [vmem:[%s6 + $0x8] sm:$0xf]
      %v880 = vld [vmem:[%s6 + $0xc] sm:$0xf]
      %v881 = vpack.c.bf16 %v874, %v873
      %v882 = vpack.c.bf16 %v876, %v875
      %v883 = vld [vmem:[%s7] sm:$0xff]
      %v884 = vld [vmem:[%s7 + $0x8] sm:$0xff]
      %v885 = vld [vmem:[%s7 + $0x10] sm:$0xff]
      %v886 = vld [vmem:[%s7 + $0x18] sm:$0xff]
      %888 = vset.pattern.permute.xlu0 0
      %889 = vperm.xlu0 %888, %v883
      %v890 = vpop.permute.xlu0 %889
      %893 = vset.pattern.permute.xlu0 0
      %894 = vperm.xlu0 %893, %v884
      %v895 = vpop.permute.xlu0 %894
      %898 = vset.pattern.permute.xlu0 0
      %899 = vperm.xlu0 %898, %v885
      %v900 = vpop.permute.xlu0 %899
      %903 = vset.pattern.permute.xlu0 0
      %904 = vperm.xlu0 %903, %v886
      %v905 = vpop.permute.xlu0 %904
      %v911 = vunpack.c.l.b16 %v877
      %v912 = vunpack.c.l.b16 %v878
      %v913 = vunpack.c.l.b16 %v879
      %v914 = vunpack.c.l.b16 %v880
      %v915 = vpack.c.b16 %v912, %v911
      %v916 = vpack.c.b16 %v914, %v913
      %vm917 = vcmask 261120
      %v919 = vsel %vm917, %v915, 0
      %v922 = vsel %vm917, %v916, 0
      %924 = vmatprep.subr.bf16.mxu0 0
      %925 = vmatpush1.bf16.msra.mxu0 %v881
      %926 = vmatprep.subr.bf16.mxu0 0
      %927 = vmatpush1.bf16.msra.mxu0 %v882
      %928 = vmatprep.subr.bf16.mxu0 0
      %929 = vmatpush1.bf16.msra.mxu0 0
      %930 = vmatprep.subr.bf16.mxu0 0
      %931 = vmatpush1.bf16.msra.mxu0 0
      %932 = vmatprep.subr.bf16.mxu0 0
      %933 = vmatpush1.bf16.msra.mxu0 0
      %934 = vmatprep.subr.bf16.mxu0 0
      %935 = vmatpush1.bf16.msra.mxu0 0
      %936 = vmatprep.subr.bf16.mxu0 0
      %937 = vmatpush1.bf16.msra.mxu0 0
      %938 = vmatprep.subr.bf16.mxu0 0
      %939 = vmatpush1.bf16.msra.mxu0 0
      %940 = vmatprep.subr.bf16.mxu0 0
      %941 = vmatpush1.bf16.msra.mxu0 0
      %942 = vmatprep.subr.bf16.mxu0 0
      %943 = vmatpush1.bf16.msra.mxu0 0
      %944 = vmatprep.subr.bf16.mxu0 0
      %945 = vmatpush1.bf16.msra.mxu0 0
      %946 = vmatprep.subr.bf16.mxu0 0
      %947 = vmatpush1.bf16.msra.mxu0 0
      %948 = vmatprep.subr.bf16.mxu0 0
      %949 = vmatpush1.bf16.msra.mxu0 0
      %950 = vmatprep.subr.bf16.mxu0 0
      %951 = vmatpush1.bf16.msra.mxu0 0
      %952 = vmatprep.subr.bf16.mxu0 0
      %953 = vmatpush1.bf16.msra.mxu0 0
      %954 = vmatprep.subr.bf16.mxu0 0
      %955 = vmatpush1.bf16.msra.mxu0 0
      %956 = vmatprep.mubr.bf16.mxu0 0
      %957 = vmatmul.mubr.bf16.gmra.mrb[0].mxu0 %v919
      %v958 = vpop.f32.mrb[0].mxu0
      %v959 = vadd.f32 %v890, %v958
      %v960 = vpop.f32.mrb[0].mxu0
      %v961 = vpop.f32.mrb[0].mxu0
      %v962 = vadd.f32 %v895, %v961
      %v963 = vpop.f32.mrb[0].mxu0
      %964 = vmatprep.mubr.bf16.mxu0 0
      %965 = vmatmul.mubr.bf16.gmra.mrb[0].mxu0 %v922
      %v966 = vpop.f32.mrb[0].mxu0
      %v967 = vadd.f32 %v900, %v966
      %v968 = vpop.f32.mrb[0].mxu0
      %v969 = vpop.f32.mrb[0].mxu0
      %v970 = vadd.f32 %v905, %v969
      %v971 = vpop.f32.mrb[0].mxu0
      %972 = vdwg.mxu0
      %v973 = vadd.f32 %v714, %v959
      %v974 = vadd.f32 %v717, %v962
      %v975 = vadd.f32 %v722, %v967
      %v976 = vadd.f32 %v725, %v970
      %v978 = vlaneseq
      %v979 = vshrl.u32 %v978, 7
      %v980 = vsub.s32 0, %v979
      %v981 = vrot.slane %v627, %v980
      %v983 = vmul.f32 %v973, %v981
      %v984 = vmul.f32 %v974, %v981
      %v985 = vmul.f32 %v975, %v981
      %v986 = vmul.f32 %v976, %v981
      %987 = vrot.lane.b32.xlu0 %v983, 2
      %v988 = vpop.permute.xlu0 %987
      %989 = vrot.lane.b32.xlu0 %v984, 2
      %v990 = vpop.permute.xlu0 %989
      %991 = vrot.lane.b32.xlu0 %v985, 2
      %v992 = vpop.permute.xlu0 %991
      %993 = vrot.lane.b32.xlu0 %v986, 2
      %v994 = vpop.permute.xlu0 %993
      %v995 = vadd.s32 %v629, 4294967294
      %vm996 = vcmp.ge.s32.totalorder %v995, 0
      %vm997 = vcmp.lt.s32.totalorder %v995, 16
      %vm998 = vmand %vm996, %vm997
      %v999 = vsel %vm998, 1, 0
      %vm1000 = vcmp.eq.s32.totalorder %v999, 1
      %v1001 = vsel %vm1000, %v988, 0.0
      %v1002 = vsel %vm1000, %v990, 0.0
      %v1003 = vsel %vm1000, %v992, 0.0
      %v1004 = vsel %vm1000, %v994, 0.0
      %v1005 = vsel %vm750, %v983, 0.0
      %v1006 = vsel %vm750, %v984, 0.0
      %v1007 = vsel %vm750, %v985, 0.0
      %v1008 = vsel %vm750, %v986, 0.0
      %1009 = vrot.lane.b32.xlu0 %v983, 126
      %v1010 = vpop.permute.xlu0 %1009
      %1011 = vrot.lane.b32.xlu0 %v984, 126
      %v1012 = vpop.permute.xlu0 %1011
      %1013 = vrot.lane.b32.xlu0 %v985, 126
      %v1014 = vpop.permute.xlu0 %1013
      %1015 = vrot.lane.b32.xlu0 %v986, 126
      %v1016 = vpop.permute.xlu0 %1015
      %v1017 = vadd.s32 %v629, 2
      %vm1018 = vcmp.ge.s32.totalorder %v1017, 0
      %vm1019 = vcmp.lt.s32.totalorder %v1017, 16
      %vm1020 = vmand %vm1018, %vm1019
      %v1021 = vsel %vm1020, 1, 0
      %vm1022 = vcmp.eq.s32.totalorder %v1021, 1
      %v1023 = vsel %vm1022, %v1010, 0.0
      %v1024 = vsel %vm1022, %v1012, 0.0
      %v1025 = vsel %vm1022, %v1014, 0.0
      %v1026 = vsel %vm1022, %v1016, 0.0
      %v1027 = vpack.c.bf16 %v1002, %v1001
      %v1028 = vpack.c.bf16 %v1004, %v1003
      %v1029 = vpack.c.bf16 %v1006, %v1005
      %v1030 = vpack.c.bf16 %v1008, %v1007
      %v1031 = vpack.c.bf16 %v1024, %v1023
      %v1032 = vpack.c.bf16 %v1026, %v1025
      %s1033 = scalar_lea.vmem %s4, 16
      %v1034 = vld [vmem:[%s1033] sm:$0xf]
      %v1035 = vld [vmem:[%s1033 + $0x4] sm:$0xf]
      %v1036 = vld [vmem:[%s1033 + $0x8] sm:$0xf]
      %v1037 = vld [vmem:[%s1033 + $0xc] sm:$0xf]
      %s1038 = scalar_lea.vmem %s5, 32
      %v1039 = vld [vmem:[%s1038] sm:$0xff]
      %v1040 = vld [vmem:[%s1038 + $0x8] sm:$0xff]
      %v1041 = vld [vmem:[%s1038 + $0x10] sm:$0xff]
      %v1042 = vld [vmem:[%s1038 + $0x18] sm:$0xff]
      %1044 = vset.pattern.permute.xlu0 0
      %1045 = vperm.xlu0 %1044, %v1039
      %v1046 = vpop.permute.xlu0 %1045
      %1049 = vset.pattern.permute.xlu0 0
      %1050 = vperm.xlu0 %1049, %v1040
      %v1051 = vpop.permute.xlu0 %1050
      %1054 = vset.pattern.permute.xlu0 0
      %1055 = vperm.xlu0 %1054, %v1041
      %v1056 = vpop.permute.xlu0 %1055
      %1059 = vset.pattern.permute.xlu0 0
      %1060 = vperm.xlu0 %1059, %v1042
      %v1061 = vpop.permute.xlu0 %1060
      %v1067 = vunpack.c.l.b16 %v1034
      %v1068 = vunpack.c.l.b16 %v1035
      %v1069 = vunpack.c.l.b16 %v1036
      %v1070 = vunpack.c.l.b16 %v1037
      %v1071 = vpack.c.b16 %v1068, %v1067
      %v1072 = vpack.c.b16 %v1070, %v1069
      %v1074 = vsel %vm817, %v1071, 0
      %v1077 = vsel %vm817, %v1072, 0
      %1079 = vmatprep.subr.bf16.mxu0 0
      %1080 = vmatpush1.bf16.msra.mxu0 %v1027
      %1081 = vmatprep.subr.bf16.mxu0 0
      %1082 = vmatpush1.bf16.msra.mxu0 %v1028
      %1083 = vmatprep.subr.bf16.mxu0 0
      %1084 = vmatpush1.bf16.msra.mxu0 %v1029
      %1085 = vmatprep.subr.bf16.mxu0 0
      %1086 = vmatpush1.bf16.msra.mxu0 %v1030
      %1087 = vmatprep.subr.bf16.mxu0 0
      %1088 = vmatpush1.bf16.msra.mxu0 %v1031
      %1089 = vmatprep.subr.bf16.mxu0 0
      %1090 = vmatpush1.bf16.msra.mxu0 %v1032
      %1091 = vmatprep.subr.bf16.mxu0 0
      %1092 = vmatpush1.bf16.msra.mxu0 0
      %1093 = vmatprep.subr.bf16.mxu0 0
      %1094 = vmatpush1.bf16.msra.mxu0 0
      %1095 = vmatprep.subr.bf16.mxu0 0
      %1096 = vmatpush1.bf16.msra.mxu0 0
      %1097 = vmatprep.subr.bf16.mxu0 0
      %1098 = vmatpush1.bf16.msra.mxu0 0
      %1099 = vmatprep.subr.bf16.mxu0 0
      %1100 = vmatpush1.bf16.msra.mxu0 0
      %1101 = vmatprep.subr.bf16.mxu0 0
      %1102 = vmatpush1.bf16.msra.mxu0 0
      %1103 = vmatprep.subr.bf16.mxu0 0
      %1104 = vmatpush1.bf16.msra.mxu0 0
      %1105 = vmatprep.subr.bf16.mxu0 0
      %1106 = vmatpush1.bf16.msra.mxu0 0
      %1107 = vmatprep.subr.bf16.mxu0 0
      %1108 = vmatpush1.bf16.msra.mxu0 0
      %1109 = vmatprep.subr.bf16.mxu0 0
      %1110 = vmatpush1.bf16.msra.mxu0 0
      %1111 = vmatprep.mubr.bf16.mxu0 0
      %1112 = vmatmul.mubr.bf16.gmra.mrb[0].mxu0 %v1074
      %v1113 = vpop.f32.mrb[0].mxu0
      %v1114 = vadd.f32 %v1046, %v1113
      %v1115 = vpop.f32.mrb[0].mxu0
      %v1116 = vpop.f32.mrb[0].mxu0
      %v1117 = vadd.f32 %v1051, %v1116
      %v1118 = vpop.f32.mrb[0].mxu0
      %1119 = vmatprep.mubr.bf16.mxu0 0
      %1120 = vmatmul.mubr.bf16.gmra.mrb[0].mxu0 %v1077
      %v1121 = vpop.f32.mrb[0].mxu0
      %v1122 = vadd.f32 %v1056, %v1121
      %v1123 = vpop.f32.mrb[0].mxu0
      %v1124 = vpop.f32.mrb[0].mxu0
      %v1125 = vadd.f32 %v1061, %v1124
      %v1126 = vpop.f32.mrb[0].mxu0
      %1127 = vdwg.mxu0
      %v1128 = vmax.f32 %v1114, 0.0
      %v1129 = vmax.f32 %v1117, 0.0
      %v1130 = vmax.f32 %v1122, 0.0
      %v1131 = vmax.f32 %v1125, 0.0
      %s1132 = scalar_lea.vmem %s6, 16
      %v1133 = vld [vmem:[%s1132] sm:$0xf]
      %v1134 = vld [vmem:[%s1132 + $0x4] sm:$0xf]
      %v1135 = vld [vmem:[%s1132 + $0x8] sm:$0xf]
      %v1136 = vld [vmem:[%s1132 + $0xc] sm:$0xf]
      %v1137 = vpack.c.bf16 %v1129, %v1128
      %v1138 = vpack.c.bf16 %v1131, %v1130
      %s1139 = scalar_lea.vmem %s7, 32
      %v1140 = vld [vmem:[%s1139] sm:$0xff]
      %v1141 = vld [vmem:[%s1139 + $0x8] sm:$0xff]
      %v1142 = vld [vmem:[%s1139 + $0x10] sm:$0xff]
      %v1143 = vld [vmem:[%s1139 + $0x18] sm:$0xff]
      %1145 = vset.pattern.permute.xlu0 0
      %1146 = vperm.xlu0 %1145, %v1140
      %v1147 = vpop.permute.xlu0 %1146
      %1150 = vset.pattern.permute.xlu0 0
      %1151 = vperm.xlu0 %1150, %v1141
      %v1152 = vpop.permute.xlu0 %1151
      %1155 = vset.pattern.permute.xlu0 0
      %1156 = vperm.xlu0 %1155, %v1142
      %v1157 = vpop.permute.xlu0 %1156
      %1160 = vset.pattern.permute.xlu0 0
      %1161 = vperm.xlu0 %1160, %v1143
      %v1162 = vpop.permute.xlu0 %1161
      %v1168 = vunpack.c.l.b16 %v1133
      %v1169 = vunpack.c.l.b16 %v1134
      %v1170 = vunpack.c.l.b16 %v1135
      %v1171 = vunpack.c.l.b16 %v1136
      %v1172 = vpack.c.b16 %v1169, %v1168
      %v1173 = vpack.c.b16 %v1171, %v1170
      %v1175 = vsel %vm917, %v1172, 0
      %v1178 = vsel %vm917, %v1173, 0
      %1180 = vmatprep.subr.bf16.mxu0 0
      %1181 = vmatpush1.bf16.msra.mxu0 %v1137
      %1182 = vmatprep.subr.bf16.mxu0 0
      %1183 = vmatpush1.bf16.msra.mxu0 %v1138
      %1184 = vmatprep.subr.bf16.mxu0 0
      %1185 = vmatpush1.bf16.msra.mxu0 0
      %1186 = vmatprep.subr.bf16.mxu0 0
      %1187 = vmatpush1.bf16.msra.mxu0 0
      %1188 = vmatprep.subr.bf16.mxu0 0
      %1189 = vmatpush1.bf16.msra.mxu0 0
      %1190 = vmatprep.subr.bf16.mxu0 0
      %1191 = vmatpush1.bf16.msra.mxu0 0
      %1192 = vmatprep.subr.bf16.mxu0 0
      %1193 = vmatpush1.bf16.msra.mxu0 0
      %1194 = vmatprep.subr.bf16.mxu0 0
      %1195 = vmatpush1.bf16.msra.mxu0 0
      %1196 = vmatprep.subr.bf16.mxu0 0
      %1197 = vmatpush1.bf16.msra.mxu0 0
      %1198 = vmatprep.subr.bf16.mxu0 0
      %1199 = vmatpush1.bf16.msra.mxu0 0
      %1200 = vmatprep.subr.bf16.mxu0 0
      %1201 = vmatpush1.bf16.msra.mxu0 0
      %1202 = vmatprep.subr.bf16.mxu0 0
      %1203 = vmatpush1.bf16.msra.mxu0 0
      %1204 = vmatprep.subr.bf16.mxu0 0
      %1205 = vmatpush1.bf16.msra.mxu0 0
      %1206 = vmatprep.subr.bf16.mxu0 0
      %1207 = vmatpush1.bf16.msra.mxu0 0
      %1208 = vmatprep.subr.bf16.mxu0 0
      %1209 = vmatpush1.bf16.msra.mxu0 0
      %1210 = vmatprep.subr.bf16.mxu0 0
      %1211 = vmatpush1.bf16.msra.mxu0 0
      %1212 = vmatprep.mubr.bf16.mxu0 0
      %1213 = vmatmul.mubr.bf16.gmra.mrb[0].mxu0 %v1175
      %v1214 = vpop.f32.mrb[0].mxu0
      %v1215 = vadd.f32 %v1147, %v1214
      %v1216 = vpop.f32.mrb[0].mxu0
      %v1217 = vpop.f32.mrb[0].mxu0
      %v1218 = vadd.f32 %v1152, %v1217
      %v1219 = vpop.f32.mrb[0].mxu0
      %1220 = vmatprep.mubr.bf16.mxu0 0
      %1221 = vmatmul.mubr.bf16.gmra.mrb[0].mxu0 %v1178
      %v1222 = vpop.f32.mrb[0].mxu0
      %v1223 = vadd.f32 %v1157, %v1222
      %v1224 = vpop.f32.mrb[0].mxu0
      %v1225 = vpop.f32.mrb[0].mxu0
      %v1226 = vadd.f32 %v1162, %v1225
      %v1227 = vpop.f32.mrb[0].mxu0
      %1228 = vdwg.mxu0
      %v1229 = vadd.f32 %v983, %v1215
      %v1230 = vadd.f32 %v984, %v1218
      %v1231 = vadd.f32 %v985, %v1223
      %v1232 = vadd.f32 %v986, %v1226
      %v1233 = vmul.f32 %v1229, %v981
      %v1234 = vmul.f32 %v1230, %v981
      %v1235 = vmul.f32 %v1231, %v981
      %v1236 = vmul.f32 %v1232, %v981
      %1237 = vrot.lane.b32.xlu0 %v1233, 4
      %v1238 = vpop.permute.xlu0 %1237
      %1239 = vrot.lane.b32.xlu0 %v1234, 4
      %v1240 = vpop.permute.xlu0 %1239
      %1241 = vrot.lane.b32.xlu0 %v1235, 4
      %v1242 = vpop.permute.xlu0 %1241
      %1243 = vrot.lane.b32.xlu0 %v1236, 4
      %v1244 = vpop.permute.xlu0 %1243
      %v1245 = vadd.s32 %v629, 4294967292
      %vm1246 = vcmp.ge.s32.totalorder %v1245, 0
      %vm1247 = vcmp.lt.s32.totalorder %v1245, 16
      %vm1248 = vmand %vm1246, %vm1247
      %v1249 = vsel %vm1248, 1, 0
      %vm1250 = vcmp.eq.s32.totalorder %v1249, 1
      %v1251 = vsel %vm1250, %v1238, 0.0
      %v1252 = vsel %vm1250, %v1240, 0.0
      %v1253 = vsel %vm1250, %v1242, 0.0
      %v1254 = vsel %vm1250, %v1244, 0.0
      %v1255 = vsel %vm750, %v1233, 0.0
      %v1256 = vsel %vm750, %v1234, 0.0
      %v1257 = vsel %vm750, %v1235, 0.0
      %v1258 = vsel %vm750, %v1236, 0.0
      %1259 = vrot.lane.b32.xlu0 %v1233, 124
      %v1260 = vpop.permute.xlu0 %1259
      %1261 = vrot.lane.b32.xlu0 %v1234, 124
      %v1262 = vpop.permute.xlu0 %1261
      %1263 = vrot.lane.b32.xlu0 %v1235, 124
      %v1264 = vpop.permute.xlu0 %1263
      %1265 = vrot.lane.b32.xlu0 %v1236, 124
      %v1266 = vpop.permute.xlu0 %1265
      %v1267 = vadd.s32 %v629, 4
      %vm1268 = vcmp.ge.s32.totalorder %v1267, 0
      %vm1269 = vcmp.lt.s32.totalorder %v1267, 16
      %vm1270 = vmand %vm1268, %vm1269
      %v1271 = vsel %vm1270, 1, 0
      %vm1272 = vcmp.eq.s32.totalorder %v1271, 1
      %v1273 = vsel %vm1272, %v1260, 0.0
      %v1274 = vsel %vm1272, %v1262, 0.0
      %v1275 = vsel %vm1272, %v1264, 0.0
      %v1276 = vsel %vm1272, %v1266, 0.0
      %v1277 = vpack.c.bf16 %v1252, %v1251
      %v1278 = vpack.c.bf16 %v1254, %v1253
      %v1279 = vpack.c.bf16 %v1256, %v1255
      %v1280 = vpack.c.bf16 %v1258, %v1257
      %v1281 = vpack.c.bf16 %v1274, %v1273
      %v1282 = vpack.c.bf16 %v1276, %v1275
      %s1283 = scalar_lea.vmem %s4, 32
      %v1284 = vld [vmem:[%s1283] sm:$0xf]
      %v1285 = vld [vmem:[%s1283 + $0x4] sm:$0xf]
      %v1286 = vld [vmem:[%s1283 + $0x8] sm:$0xf]
      %v1287 = vld [vmem:[%s1283 + $0xc] sm:$0xf]
      %s1288 = scalar_lea.vmem %s5, 64
      %v1289 = vld [vmem:[%s1288] sm:$0xff]
      %v1290 = vld [vmem:[%s1288 + $0x8] sm:$0xff]
      %v1291 = vld [vmem:[%s1288 + $0x10] sm:$0xff]
      %v1292 = vld [vmem:[%s1288 + $0x18] sm:$0xff]
      %1294 = vset.pattern.permute.xlu0 0
      %1295 = vperm.xlu0 %1294, %v1289
      %v1296 = vpop.permute.xlu0 %1295
      %1299 = vset.pattern.permute.xlu0 0
      %1300 = vperm.xlu0 %1299, %v1290
      %v1301 = vpop.permute.xlu0 %1300
      %1304 = vset.pattern.permute.xlu0 0
      %1305 = vperm.xlu0 %1304, %v1291
      %v1306 = vpop.permute.xlu0 %1305
      %1309 = vset.pattern.permute.xlu0 0
      %1310 = vperm.xlu0 %1309, %v1292
      %v1311 = vpop.permute.xlu0 %1310
      %v1317 = vunpack.c.l.b16 %v1284
      %v1318 = vunpack.c.l.b16 %v1285
      %v1319 = vunpack.c.l.b16 %v1286
      %v1320 = vunpack.c.l.b16 %v1287
      %v1321 = vpack.c.b16 %v1318, %v1317
      %v1322 = vpack.c.b16 %v1320, %v1319
      %v1324 = vsel %vm817, %v1321, 0
      %v1327 = vsel %vm817, %v1322, 0
      %1329 = vmatprep.subr.bf16.mxu0 0
      %1330 = vmatpush1.bf16.msra.mxu0 %v1277
      %1331 = vmatprep.subr.bf16.mxu0 0
      %1332 = vmatpush1.bf16.msra.mxu0 %v1278
      %1333 = vmatprep.subr.bf16.mxu0 0
      %1334 = vmatpush1.bf16.msra.mxu0 %v1279
      %1335 = vmatprep.subr.bf16.mxu0 0
      %1336 = vmatpush1.bf16.msra.mxu0 %v1280
      %1337 = vmatprep.subr.bf16.mxu0 0
      %1338 = vmatpush1.bf16.msra.mxu0 %v1281
      %1339 = vmatprep.subr.bf16.mxu0 0
      %1340 = vmatpush1.bf16.msra.mxu0 %v1282
      %1341 = vmatprep.subr.bf16.mxu0 0
      %1342 = vmatpush1.bf16.msra.mxu0 0
      %1343 = vmatprep.subr.bf16.mxu0 0
      %1344 = vmatpush1.bf16.msra.mxu0 0
      %1345 = vmatprep.subr.bf16.mxu0 0
      %1346 = vmatpush1.bf16.msra.mxu0 0
      %1347 = vmatprep.subr.bf16.mxu0 0
      %1348 = vmatpush1.bf16.msra.mxu0 0
      %1349 = vmatprep.subr.bf16.mxu0 0
      %1350 = vmatpush1.bf16.msra.mxu0 0
      %1351 = vmatprep.subr.bf16.mxu0 0
      %1352 = vmatpush1.bf16.msra.mxu0 0
      %1353 = vmatprep.subr.bf16.mxu0 0
      %1354 = vmatpush1.bf16.msra.mxu0 0
      %1355 = vmatprep.subr.bf16.mxu0 0
      %1356 = vmatpush1.bf16.msra.mxu0 0
      %1357 = vmatprep.subr.bf16.mxu0 0
      %1358 = vmatpush1.bf16.msra.mxu0 0
      %1359 = vmatprep.subr.bf16.mxu0 0
      %1360 = vmatpush1.bf16.msra.mxu0 0
      %1361 = vmatprep.mubr.bf16.mxu0 0
      %1362 = vmatmul.mubr.bf16.gmra.mrb[0].mxu0 %v1324
      %v1363 = vpop.f32.mrb[0].mxu0
      %v1364 = vadd.f32 %v1296, %v1363
      %v1365 = vpop.f32.mrb[0].mxu0
      %v1366 = vpop.f32.mrb[0].mxu0
      %v1367 = vadd.f32 %v1301, %v1366
      %v1368 = vpop.f32.mrb[0].mxu0
      %1369 = vmatprep.mubr.bf16.mxu0 0
      %1370 = vmatmul.mubr.bf16.gmra.mrb[0].mxu0 %v1327
      %v1371 = vpop.f32.mrb[0].mxu0
      %v1372 = vadd.f32 %v1306, %v1371
      %v1373 = vpop.f32.mrb[0].mxu0
      %v1374 = vpop.f32.mrb[0].mxu0
      %v1375 = vadd.f32 %v1311, %v1374
      %v1376 = vpop.f32.mrb[0].mxu0
      %1377 = vdwg.mxu0
      %v1378 = vmax.f32 %v1364, 0.0
      %v1379 = vmax.f32 %v1367, 0.0
      %v1380 = vmax.f32 %v1372, 0.0
      %v1381 = vmax.f32 %v1375, 0.0
      %s1382 = scalar_lea.vmem %s6, 32
      %v1383 = vld [vmem:[%s1382] sm:$0xf]
      %v1384 = vld [vmem:[%s1382 + $0x4] sm:$0xf]
      %v1385 = vld [vmem:[%s1382 + $0x8] sm:$0xf]
      %v1386 = vld [vmem:[%s1382 + $0xc] sm:$0xf]
      %v1387 = vpack.c.bf16 %v1379, %v1378
      %v1388 = vpack.c.bf16 %v1381, %v1380
      %s1389 = scalar_lea.vmem %s7, 64
      %v1390 = vld [vmem:[%s1389] sm:$0xff]
      %v1391 = vld [vmem:[%s1389 + $0x8] sm:$0xff]
      %v1392 = vld [vmem:[%s1389 + $0x10] sm:$0xff]
      %v1393 = vld [vmem:[%s1389 + $0x18] sm:$0xff]
      %1395 = vset.pattern.permute.xlu0 0
      %1396 = vperm.xlu0 %1395, %v1390
      %v1397 = vpop.permute.xlu0 %1396
      %1400 = vset.pattern.permute.xlu0 0
      %1401 = vperm.xlu0 %1400, %v1391
      %v1402 = vpop.permute.xlu0 %1401
      %1405 = vset.pattern.permute.xlu0 0
      %1406 = vperm.xlu0 %1405, %v1392
      %v1407 = vpop.permute.xlu0 %1406
      %1410 = vset.pattern.permute.xlu0 0
      %1411 = vperm.xlu0 %1410, %v1393
      %v1412 = vpop.permute.xlu0 %1411
      %v1418 = vunpack.c.l.b16 %v1383
      %v1419 = vunpack.c.l.b16 %v1384
      %v1420 = vunpack.c.l.b16 %v1385
      %v1421 = vunpack.c.l.b16 %v1386
      %v1422 = vpack.c.b16 %v1419, %v1418
      %v1423 = vpack.c.b16 %v1421, %v1420
      %v1425 = vsel %vm917, %v1422, 0
      %v1428 = vsel %vm917, %v1423, 0
      %1430 = vmatprep.subr.bf16.mxu0 0
      %1431 = vmatpush1.bf16.msra.mxu0 %v1387
      %1432 = vmatprep.subr.bf16.mxu0 0
      %1433 = vmatpush1.bf16.msra.mxu0 %v1388
      %1434 = vmatprep.subr.bf16.mxu0 0
      %1435 = vmatpush1.bf16.msra.mxu0 0
      %1436 = vmatprep.subr.bf16.mxu0 0
      %1437 = vmatpush1.bf16.msra.mxu0 0
      %1438 = vmatprep.subr.bf16.mxu0 0
      %1439 = vmatpush1.bf16.msra.mxu0 0
      %1440 = vmatprep.subr.bf16.mxu0 0
      %1441 = vmatpush1.bf16.msra.mxu0 0
      %1442 = vmatprep.subr.bf16.mxu0 0
      %1443 = vmatpush1.bf16.msra.mxu0 0
      %1444 = vmatprep.subr.bf16.mxu0 0
      %1445 = vmatpush1.bf16.msra.mxu0 0
      %1446 = vmatprep.subr.bf16.mxu0 0
      %1447 = vmatpush1.bf16.msra.mxu0 0
      %1448 = vmatprep.subr.bf16.mxu0 0
      %1449 = vmatpush1.bf16.msra.mxu0 0
      %1450 = vmatprep.subr.bf16.mxu0 0
      %1451 = vmatpush1.bf16.msra.mxu0 0
      %1452 = vmatprep.subr.bf16.mxu0 0
      %1453 = vmatpush1.bf16.msra.mxu0 0
      %1454 = vmatprep.subr.bf16.mxu0 0
      %1455 = vmatpush1.bf16.msra.mxu0 0
      %1456 = vmatprep.subr.bf16.mxu0 0
      %1457 = vmatpush1.bf16.msra.mxu0 0
      %1458 = vmatprep.subr.bf16.mxu0 0
      %1459 = vmatpush1.bf16.msra.mxu0 0
      %1460 = vmatprep.subr.bf16.mxu0 0
      %1461 = vmatpush1.bf16.msra.mxu0 0
      %1462 = vmatprep.mubr.bf16.mxu0 0
      %1463 = vmatmul.mubr.bf16.gmra.mrb[0].mxu0 %v1425
      %v1464 = vpop.f32.mrb[0].mxu0
      %v1465 = vadd.f32 %v1397, %v1464
      %v1466 = vpop.f32.mrb[0].mxu0
      %v1467 = vpop.f32.mrb[0].mxu0
      %v1468 = vadd.f32 %v1402, %v1467
      %v1469 = vpop.f32.mrb[0].mxu0
      %1470 = vmatprep.mubr.bf16.mxu0 0
      %1471 = vmatmul.mubr.bf16.gmra.mrb[0].mxu0 %v1428
      %v1472 = vpop.f32.mrb[0].mxu0
      %v1473 = vadd.f32 %v1407, %v1472
      %v1474 = vpop.f32.mrb[0].mxu0
      %v1475 = vpop.f32.mrb[0].mxu0
      %v1476 = vadd.f32 %v1412, %v1475
      %v1477 = vpop.f32.mrb[0].mxu0
      %1478 = vdwg.mxu0
      %v1479 = vadd.f32 %v1233, %v1465
      %v1480 = vadd.f32 %v1234, %v1468
      %v1481 = vadd.f32 %v1235, %v1473
      %v1482 = vadd.f32 %v1236, %v1476
      %v1483 = vmul.f32 %v1479, %v981
      %v1484 = vmul.f32 %v1480, %v981
      %v1485 = vmul.f32 %v1481, %v981
      %v1486 = vmul.f32 %v1482, %v981
      %v1487 = vld [vmem:[%s8] sm:$0x7]
      %v1488 = vpack.c.bf16 %v1484, %v1483
      %v1489 = vpack.c.bf16 %v1486, %v1485
      %v1490 = vld [vmem:[%s9] sm:$0x1f]
      %1492 = vset.pattern.permute.xlu0 0
      %1493 = vperm.xlu0 %1492, %v1490
      %v1494 = vpop.permute.xlu0 %1493
      %v1497 = vsel %vm917, %v1487, 0
      %1499 = vmatprep.subr.bf16.mxu0 0
      %1500 = vmatpush1.bf16.msra.mxu0 %v1488
      %1501 = vmatprep.subr.bf16.mxu0 0
      %1502 = vmatpush1.bf16.msra.mxu0 %v1489
      %1503 = vmatprep.subr.bf16.mxu0 0
      %1504 = vmatpush1.bf16.msra.mxu0 0
      %1505 = vmatprep.subr.bf16.mxu0 0
      %1506 = vmatpush1.bf16.msra.mxu0 0
      %1507 = vmatprep.subr.bf16.mxu0 0
      %1508 = vmatpush1.bf16.msra.mxu0 0
      %1509 = vmatprep.subr.bf16.mxu0 0
      %1510 = vmatpush1.bf16.msra.mxu0 0
      %1511 = vmatprep.subr.bf16.mxu0 0
      %1512 = vmatpush1.bf16.msra.mxu0 0
      %1513 = vmatprep.subr.bf16.mxu0 0
      %1514 = vmatpush1.bf16.msra.mxu0 0
      %1515 = vmatprep.subr.bf16.mxu0 0
      %1516 = vmatpush1.bf16.msra.mxu0 0
      %1517 = vmatprep.subr.bf16.mxu0 0
      %1518 = vmatpush1.bf16.msra.mxu0 0
      %1519 = vmatprep.subr.bf16.mxu0 0
      %1520 = vmatpush1.bf16.msra.mxu0 0
      %1521 = vmatprep.subr.bf16.mxu0 0
      %1522 = vmatpush1.bf16.msra.mxu0 0
      %1523 = vmatprep.subr.bf16.mxu0 0
      %1524 = vmatpush1.bf16.msra.mxu0 0
      %1525 = vmatprep.subr.bf16.mxu0 0
      %1526 = vmatpush1.bf16.msra.mxu0 0
      %1527 = vmatprep.subr.bf16.mxu0 0
      %1528 = vmatpush1.bf16.msra.mxu0 0
      %1529 = vmatprep.subr.bf16.mxu0 0
      %1530 = vmatpush1.bf16.msra.mxu0 0
      %1531 = vmatprep.mubr.bf16.mxu0 0
      %1532 = vmatmul.mubr.bf16.gmra.mrb[0].mxu0 %v1497
      %v1533 = vpop.f32.mrb[0].mxu0
      %v1534 = vadd.f32 %v1494, %v1533
      %v1535 = vpop.f32.mrb[0].mxu0
      %v1536 = vpop.f32.mrb[0].mxu0
      %v1537 = vpop.f32.mrb[0].mxu0
      %1538 = vdwg.mxu0
      %v1539 = vmul.f32 %v1534, %v981
      %v1540 = vld [vmem:[%s10] sm:$0xf]
      %v1541 = vld [vmem:[%s10 + $0x4] sm:$0xf]
      %v1542 = vld [vmem:[%s10 + $0x8] sm:$0xf]
      %v1543 = vld [vmem:[%s10 + $0xc] sm:$0xf]
      %v1544 = vld [vmem:[%s11] sm:$0xff]
      %v1545 = vld [vmem:[%s11 + $0x8] sm:$0xff]
      %v1546 = vld [vmem:[%s11 + $0x10] sm:$0xff]
      %v1547 = vld [vmem:[%s11 + $0x18] sm:$0xff]
      %1549 = vset.pattern.permute.xlu0 0
      %1550 = vperm.xlu0 %1549, %v1544
      %v1551 = vpop.permute.xlu0 %1550
      %1554 = vset.pattern.permute.xlu0 0
      %1555 = vperm.xlu0 %1554, %v1545
      %v1556 = vpop.permute.xlu0 %1555
      %1559 = vset.pattern.permute.xlu0 0
      %1560 = vperm.xlu0 %1559, %v1546
      %v1561 = vpop.permute.xlu0 %1560
      %1564 = vset.pattern.permute.xlu0 0
      %1565 = vperm.xlu0 %1564, %v1547
      %v1566 = vpop.permute.xlu0 %1565
      %v1572 = vunpack.c.l.b16 %v1540
      %v1573 = vunpack.c.l.b16 %v1541
      %v1574 = vunpack.c.l.b16 %v1542
      %v1575 = vunpack.c.l.b16 %v1543
      %v1576 = vpack.c.b16 %v1573, %v1572
      %v1577 = vpack.c.b16 %v1575, %v1574
      %v1579 = vsel %vm668, %v1576, 0
      %v1582 = vsel %vm668, %v1577, 0
      %1584 = vmatprep.subr.bf16.mxu0 0
      %1585 = vmatpush1.bf16.msra.mxu0 %v677
      %1586 = vmatprep.subr.bf16.mxu0 0
      %1587 = vmatpush1.bf16.msra.mxu0 0
      %1588 = vmatprep.subr.bf16.mxu0 0
      %1589 = vmatpush1.bf16.msra.mxu0 0
      %1590 = vmatprep.subr.bf16.mxu0 0
      %1591 = vmatpush1.bf16.msra.mxu0 0
      %1592 = vmatprep.subr.bf16.mxu0 0
      %1593 = vmatpush1.bf16.msra.mxu0 0
      %1594 = vmatprep.subr.bf16.mxu0 0
      %1595 = vmatpush1.bf16.msra.mxu0 0
      %1596 = vmatprep.subr.bf16.mxu0 0
      %1597 = vmatpush1.bf16.msra.mxu0 0
      %1598 = vmatprep.subr.bf16.mxu0 0
      %1599 = vmatpush1.bf16.msra.mxu0 0
      %1600 = vmatprep.subr.bf16.mxu0 0
      %1601 = vmatpush1.bf16.msra.mxu0 0
      %1602 = vmatprep.subr.bf16.mxu0 0
      %1603 = vmatpush1.bf16.msra.mxu0 0
      %1604 = vmatprep.subr.bf16.mxu0 0
      %1605 = vmatpush1.bf16.msra.mxu0 0
      %1606 = vmatprep.subr.bf16.mxu0 0
      %1607 = vmatpush1.bf16.msra.mxu0 0
      %1608 = vmatprep.subr.bf16.mxu0 0
      %1609 = vmatpush1.bf16.msra.mxu0 0
      %1610 = vmatprep.subr.bf16.mxu0 0
      %1611 = vmatpush1.bf16.msra.mxu0 0
      %1612 = vmatprep.subr.bf16.mxu0 0
      %1613 = vmatpush1.bf16.msra.mxu0 0
      %1614 = vmatprep.subr.bf16.mxu0 0
      %1615 = vmatpush1.bf16.msra.mxu0 0
      %1616 = vmatprep.mubr.bf16.mxu0 0
      %1617 = vmatmul.mubr.bf16.gmra.mrb[0].mxu0 %v1579
      %v1618 = vpop.f32.mrb[0].mxu0
      %v1619 = vadd.f32 %v1551, %v1618
      %v1620 = vpop.f32.mrb[0].mxu0
      %v1621 = vpop.f32.mrb[0].mxu0
      %v1622 = vadd.f32 %v1556, %v1621
      %v1623 = vpop.f32.mrb[0].mxu0
      %1624 = vmatprep.mubr.bf16.mxu0 0
      %1625 = vmatmul.mubr.bf16.gmra.mrb[0].mxu0 %v1582
      %v1626 = vpop.f32.mrb[0].mxu0
      %v1627 = vadd.f32 %v1561, %v1626
      %v1628 = vpop.f32.mrb[0].mxu0
      %v1629 = vpop.f32.mrb[0].mxu0
      %v1630 = vadd.f32 %v1566, %v1629
      %v1631 = vpop.f32.mrb[0].mxu0
      %1632 = vdwg.mxu0
      %1633 = vrot.lane.b32.xlu0 %v1619, 2
      %v1634 = vpop.permute.xlu0 %1633
      %1635 = vrot.lane.b32.xlu0 %v1622, 2
      %v1636 = vpop.permute.xlu0 %1635
      %1637 = vrot.lane.b32.xlu0 %v1627, 2
      %v1638 = vpop.permute.xlu0 %1637
      %1639 = vrot.lane.b32.xlu0 %v1630, 2
      %v1640 = vpop.permute.xlu0 %1639
      %v1641 = vsel %vm1000, %v1634, 0.0
      %v1642 = vsel %vm1000, %v1636, 0.0
      %v1643 = vsel %vm1000, %v1638, 0.0
      %v1644 = vsel %vm1000, %v1640, 0.0
      %1645 = vrot.lane.b32.xlu0 %v1619, 1
      %v1646 = vpop.permute.xlu0 %1645
      %1647 = vrot.lane.b32.xlu0 %v1622, 1
      %v1648 = vpop.permute.xlu0 %1647
      %1649 = vrot.lane.b32.xlu0 %v1627, 1
      %v1650 = vpop.permute.xlu0 %1649
      %1651 = vrot.lane.b32.xlu0 %v1630, 1
      %v1652 = vpop.permute.xlu0 %1651
      %v1653 = vsel %vm741, %v1646, 0.0
      %v1654 = vsel %vm741, %v1648, 0.0
      %v1655 = vsel %vm741, %v1650, 0.0
      %v1656 = vsel %vm741, %v1652, 0.0
      %v1657 = vsel %vm750, %v1619, 0.0
      %v1658 = vsel %vm750, %v1622, 0.0
      %v1659 = vsel %vm750, %v1627, 0.0
      %v1660 = vsel %vm750, %v1630, 0.0
      %1661 = vrot.lane.b32.xlu0 %v1619, 127
      %v1662 = vpop.permute.xlu0 %1661
      %1663 = vrot.lane.b32.xlu0 %v1622, 127
      %v1664 = vpop.permute.xlu0 %1663
      %1665 = vrot.lane.b32.xlu0 %v1627, 127
      %v1666 = vpop.permute.xlu0 %1665
      %1667 = vrot.lane.b32.xlu0 %v1630, 127
      %v1668 = vpop.permute.xlu0 %1667
      %v1669 = vsel %vm768, %v1662, 0.0
      %v1670 = vsel %vm768, %v1664, 0.0
      %v1671 = vsel %vm768, %v1666, 0.0
      %v1672 = vsel %vm768, %v1668, 0.0
      %1673 = vrot.lane.b32.xlu0 %v1619, 126
      %v1674 = vpop.permute.xlu0 %1673
      %1675 = vrot.lane.b32.xlu0 %v1622, 126
      %v1676 = vpop.permute.xlu0 %1675
      %1677 = vrot.lane.b32.xlu0 %v1627, 126
      %v1678 = vpop.permute.xlu0 %1677
      %1679 = vrot.lane.b32.xlu0 %v1630, 126
      %v1680 = vpop.permute.xlu0 %1679
      %v1681 = vsel %vm1022, %v1674, 0.0
      %v1682 = vsel %vm1022, %v1676, 0.0
      %v1683 = vsel %vm1022, %v1678, 0.0
      %v1684 = vsel %vm1022, %v1680, 0.0
      %v1685 = vpack.c.bf16 %v1642, %v1641
      %v1686 = vpack.c.bf16 %v1644, %v1643
      %v1687 = vpack.c.bf16 %v1654, %v1653
      %v1688 = vpack.c.bf16 %v1656, %v1655
      %v1689 = vpack.c.bf16 %v1658, %v1657
      %v1690 = vpack.c.bf16 %v1660, %v1659
      %v1691 = vpack.c.bf16 %v1670, %v1669
      %v1692 = vpack.c.bf16 %v1672, %v1671
      %v1693 = vpack.c.bf16 %v1682, %v1681
      %v1694 = vpack.c.bf16 %v1684, %v1683
      %v1695 = vld [vmem:[%s12] sm:$0xff]
      %v1696 = vld [vmem:[%s12 + $0x8] sm:$0xff]
      %v1697 = vld [vmem:[%s12 + $0x10] sm:$0xff]
      %v1698 = vld [vmem:[%s12 + $0x18] sm:$0xff]
      %v1699 = vld [vmem:[%s13] sm:$0xff]
      %v1700 = vld [vmem:[%s13 + $0x8] sm:$0xff]
      %v1701 = vld [vmem:[%s13 + $0x10] sm:$0xff]
      %v1702 = vld [vmem:[%s13 + $0x18] sm:$0xff]
      %1704 = vset.pattern.permute.xlu0 0
      %1705 = vperm.xlu0 %1704, %v1699
      %v1706 = vpop.permute.xlu0 %1705
      %1709 = vset.pattern.permute.xlu0 0
      %1710 = vperm.xlu0 %1709, %v1700
      %v1711 = vpop.permute.xlu0 %1710
      %1714 = vset.pattern.permute.xlu0 0
      %1715 = vperm.xlu0 %1714, %v1701
      %v1716 = vpop.permute.xlu0 %1715
      %1719 = vset.pattern.permute.xlu0 0
      %1720 = vperm.xlu0 %1719, %v1702
      %v1721 = vpop.permute.xlu0 %1720
      %v1727 = vunpack.c.l.b16 %v1695
      %v1728 = vunpack.c.h.b16 %v1695
      %v1729 = vunpack.c.l.b16 %v1696
      %v1730 = vunpack.c.h.b16 %v1696
      %v1731 = vunpack.c.l.b16 %v1697
      %v1732 = vunpack.c.h.b16 %v1697
      %v1733 = vunpack.c.l.b16 %v1698
      %v1734 = vunpack.c.h.b16 %v1698
      %v1735 = vpack.c.b16 %v1729, %v1727
      %v1736 = vpack.c.b16 %v1730, %v1728
      %v1737 = vpack.c.b16 %v1733, %v1731
      %v1738 = vpack.c.b16 %v1734, %v1732
      %v1742 = vsel %vm917, %v1736, 0
      %v1745 = vsel %vm917, %v1738, 0
      %1747 = vmatprep.subr.bf16.mxu0 0
      %1748 = vmatpush1.bf16.msra.mxu0 %v1685
      %1749 = vmatprep.subr.bf16.mxu0 0
      %1750 = vmatpush1.bf16.msra.mxu0 %v1686
      %1751 = vmatprep.subr.bf16.mxu0 0
      %1752 = vmatpush1.bf16.msra.mxu0 %v1687
      %1753 = vmatprep.subr.bf16.mxu0 0
      %1754 = vmatpush1.bf16.msra.mxu0 %v1688
      %1755 = vmatprep.subr.bf16.mxu0 0
      %1756 = vmatpush1.bf16.msra.mxu0 %v1689
      %1757 = vmatprep.subr.bf16.mxu0 0
      %1758 = vmatpush1.bf16.msra.mxu0 %v1690
      %1759 = vmatprep.subr.bf16.mxu0 0
      %1760 = vmatpush1.bf16.msra.mxu0 %v1691
      %1761 = vmatprep.subr.bf16.mxu0 0
      %1762 = vmatpush1.bf16.msra.mxu0 %v1692
      %1763 = vmatprep.subr.bf16.mxu0 0
      %1764 = vmatpush1.bf16.msra.mxu0 %v1693
      %1765 = vmatprep.subr.bf16.mxu0 0
      %1766 = vmatpush1.bf16.msra.mxu0 %v1694
      %1767 = vmatprep.subr.bf16.mxu0 0
      %1768 = vmatpush1.bf16.msra.mxu0 0
      %1769 = vmatprep.subr.bf16.mxu0 0
      %1770 = vmatpush1.bf16.msra.mxu0 0
      %1771 = vmatprep.subr.bf16.mxu0 0
      %1772 = vmatpush1.bf16.msra.mxu0 0
      %1773 = vmatprep.subr.bf16.mxu0 0
      %1774 = vmatpush1.bf16.msra.mxu0 0
      %1775 = vmatprep.subr.bf16.mxu0 0
      %1776 = vmatpush1.bf16.msra.mxu0 0
      %1777 = vmatprep.subr.bf16.mxu0 0
      %1778 = vmatpush1.bf16.msra.mxu0 0
      %1779 = vmatprep.mubr.bf16.mxu0 %v1742
      %1780 = vmatmul.mubr.bf16.gmra.mrb[0].mxu0 %v1735
      %v1781 = vpop.f32.mrb[0].mxu0
      %v1782 = vadd.f32 %v1706, %v1781
      %v1783 = vpop.f32.mrb[0].mxu0
      %v1784 = vpop.f32.mrb[0].mxu0
      %v1785 = vadd.f32 %v1711, %v1784
      %v1786 = vpop.f32.mrb[0].mxu0
      %1787 = vmatprep.mubr.bf16.mxu0 %v1745
      %1788 = vmatmul.mubr.bf16.gmra.mrb[0].mxu0 %v1737
      %v1789 = vpop.f32.mrb[0].mxu0
      %v1790 = vadd.f32 %v1716, %v1789
      %v1791 = vpop.f32.mrb[0].mxu0
      %v1792 = vpop.f32.mrb[0].mxu0
      %v1793 = vadd.f32 %v1721, %v1792
      %v1794 = vpop.f32.mrb[0].mxu0
      %1795 = vdwg.mxu0
      %v1796 = vmax.f32 %v1782, 0.0
      %v1797 = vmax.f32 %v1785, 0.0
      %v1798 = vmax.f32 %v1790, 0.0
      %v1799 = vmax.f32 %v1793, 0.0
      %v1800 = vld [vmem:[%s14] sm:$0xf]
      %v1801 = vld [vmem:[%s14 + $0x4] sm:$0xf]
      %v1802 = vld [vmem:[%s14 + $0x8] sm:$0xf]
      %v1803 = vld [vmem:[%s14 + $0xc] sm:$0xf]
      %v1804 = vpack.c.bf16 %v1797, %v1796
      %v1805 = vpack.c.bf16 %v1799, %v1798
      %v1806 = vld [vmem:[%s15] sm:$0xff]
      %v1807 = vld [vmem:[%s15 + $0x8] sm:$0xff]
      %v1808 = vld [vmem:[%s15 + $0x10] sm:$0xff]
      %v1809 = vld [vmem:[%s15 + $0x18] sm:$0xff]
      %1811 = vset.pattern.permute.xlu0 0
      %1812 = vperm.xlu0 %1811, %v1806
      %v1813 = vpop.permute.xlu0 %1812
      %1816 = vset.pattern.permute.xlu0 0
      %1817 = vperm.xlu0 %1816, %v1807
      %v1818 = vpop.permute.xlu0 %1817
      %1821 = vset.pattern.permute.xlu0 0
      %1822 = vperm.xlu0 %1821, %v1808
      %v1823 = vpop.permute.xlu0 %1822
      %1826 = vset.pattern.permute.xlu0 0
      %1827 = vperm.xlu0 %1826, %v1809
      %v1828 = vpop.permute.xlu0 %1827
      %v1834 = vunpack.c.l.b16 %v1800
      %v1835 = vunpack.c.l.b16 %v1801
      %v1836 = vunpack.c.l.b16 %v1802
      %v1837 = vunpack.c.l.b16 %v1803
      %v1838 = vpack.c.b16 %v1835, %v1834
      %v1839 = vpack.c.b16 %v1837, %v1836
      %v1841 = vsel %vm917, %v1838, 0
      %v1844 = vsel %vm917, %v1839, 0
      %1846 = vmatprep.subr.bf16.mxu0 0
      %1847 = vmatpush1.bf16.msra.mxu0 %v1804
      %1848 = vmatprep.subr.bf16.mxu0 0
      %1849 = vmatpush1.bf16.msra.mxu0 %v1805
      %1850 = vmatprep.subr.bf16.mxu0 0
      %1851 = vmatpush1.bf16.msra.mxu0 0
      %1852 = vmatprep.subr.bf16.mxu0 0
      %1853 = vmatpush1.bf16.msra.mxu0 0
      %1854 = vmatprep.subr.bf16.mxu0 0
      %1855 = vmatpush1.bf16.msra.mxu0 0
      %1856 = vmatprep.subr.bf16.mxu0 0
      %1857 = vmatpush1.bf16.msra.mxu0 0
      %1858 = vmatprep.subr.bf16.mxu0 0
      %1859 = vmatpush1.bf16.msra.mxu0 0
      %1860 = vmatprep.subr.bf16.mxu0 0
      %1861 = vmatpush1.bf16.msra.mxu0 0
      %1862 = vmatprep.subr.bf16.mxu0 0
      %1863 = vmatpush1.bf16.msra.mxu0 0
      %1864 = vmatprep.subr.bf16.mxu0 0
      %1865 = vmatpush1.bf16.msra.mxu0 0
      %1866 = vmatprep.subr.bf16.mxu0 0
      %1867 = vmatpush1.bf16.msra.mxu0 0
      %1868 = vmatprep.subr.bf16.mxu0 0
      %1869 = vmatpush1.bf16.msra.mxu0 0
      %1870 = vmatprep.subr.bf16.mxu0 0
      %1871 = vmatpush1.bf16.msra.mxu0 0
      %1872 = vmatprep.subr.bf16.mxu0 0
      %1873 = vmatpush1.bf16.msra.mxu0 0
      %1874 = vmatprep.subr.bf16.mxu0 0
      %1875 = vmatpush1.bf16.msra.mxu0 0
      %1876 = vmatprep.subr.bf16.mxu0 0
      %1877 = vmatpush1.bf16.msra.mxu0 0
      %1878 = vmatprep.mubr.bf16.mxu0 0
      %1879 = vmatmul.mubr.bf16.gmra.mrb[0].mxu0 %v1841
      %v1880 = vpop.f32.mrb[0].mxu0
      %v1881 = vadd.f32 %v1813, %v1880
      %v1882 = vpop.f32.mrb[0].mxu0
      %v1883 = vpop.f32.mrb[0].mxu0
      %v1884 = vadd.f32 %v1818, %v1883
      %v1885 = vpop.f32.mrb[0].mxu0
      %1886 = vmatprep.mubr.bf16.mxu0 0
      %1887 = vmatmul.mubr.bf16.gmra.mrb[0].mxu0 %v1844
      %v1888 = vpop.f32.mrb[0].mxu0
      %v1889 = vadd.f32 %v1823, %v1888
      %v1890 = vpop.f32.mrb[0].mxu0
      %v1891 = vpop.f32.mrb[0].mxu0
      %v1892 = vadd.f32 %v1828, %v1891
      %v1893 = vpop.f32.mrb[0].mxu0
      %1894 = vdwg.mxu0
      %v1895 = vadd.f32 %v1619, %v1881
      %v1896 = vadd.f32 %v1622, %v1884
      %v1897 = vadd.f32 %v1627, %v1889
      %v1898 = vadd.f32 %v1630, %v1892
      %v1899 = vmul.f32 %v1895, %v981
      %v1900 = vmul.f32 %v1896, %v981
      %v1901 = vmul.f32 %v1897, %v981
      %v1902 = vmul.f32 %v1898, %v981
      %1903 = vrot.lane.b32.xlu0 %v1899, 4
      %v1904 = vpop.permute.xlu0 %1903
      %1905 = vrot.lane.b32.xlu0 %v1900, 4
      %v1906 = vpop.permute.xlu0 %1905
      %1907 = vrot.lane.b32.xlu0 %v1901, 4
      %v1908 = vpop.permute.xlu0 %1907
      %1909 = vrot.lane.b32.xlu0 %v1902, 4
      %v1910 = vpop.permute.xlu0 %1909
      %v1911 = vsel %vm1250, %v1904, 0.0
      %v1912 = vsel %vm1250, %v1906, 0.0
      %v1913 = vsel %vm1250, %v1908, 0.0
      %v1914 = vsel %vm1250, %v1910, 0.0
      %1915 = vrot.lane.b32.xlu0 %v1899, 2
      %v1916 = vpop.permute.xlu0 %1915
      %1917 = vrot.lane.b32.xlu0 %v1900, 2
      %v1918 = vpop.permute.xlu0 %1917
      %1919 = vrot.lane.b32.xlu0 %v1901, 2
      %v1920 = vpop.permute.xlu0 %1919
      %1921 = vrot.lane.b32.xlu0 %v1902, 2
      %v1922 = vpop.permute.xlu0 %1921
      %v1923 = vsel %vm1000, %v1916, 0.0
      %v1924 = vsel %vm1000, %v1918, 0.0
      %v1925 = vsel %vm1000, %v1920, 0.0
      %v1926 = vsel %vm1000, %v1922, 0.0
      %v1927 = vsel %vm750, %v1899, 0.0
      %v1928 = vsel %vm750, %v1900, 0.0
      %v1929 = vsel %vm750, %v1901, 0.0
      %v1930 = vsel %vm750, %v1902, 0.0
      %1931 = vrot.lane.b32.xlu0 %v1899, 126
      %v1932 = vpop.permute.xlu0 %1931
      %1933 = vrot.lane.b32.xlu0 %v1900, 126
      %v1934 = vpop.permute.xlu0 %1933
      %1935 = vrot.lane.b32.xlu0 %v1901, 126
      %v1936 = vpop.permute.xlu0 %1935
      %1937 = vrot.lane.b32.xlu0 %v1902, 126
      %v1938 = vpop.permute.xlu0 %1937
      %v1939 = vsel %vm1022, %v1932, 0.0
      %v1940 = vsel %vm1022, %v1934, 0.0
      %v1941 = vsel %vm1022, %v1936, 0.0
      %v1942 = vsel %vm1022, %v1938, 0.0
      %1943 = vrot.lane.b32.xlu0 %v1899, 124
      %v1944 = vpop.permute.xlu0 %1943
      %1945 = vrot.lane.b32.xlu0 %v1900, 124
      %v1946 = vpop.permute.xlu0 %1945
      %1947 = vrot.lane.b32.xlu0 %v1901, 124
      %v1948 = vpop.permute.xlu0 %1947
      %1949 = vrot.lane.b32.xlu0 %v1902, 124
      %v1950 = vpop.permute.xlu0 %1949
      %v1951 = vsel %vm1272, %v1944, 0.0
      %v1952 = vsel %vm1272, %v1946, 0.0
      %v1953 = vsel %vm1272, %v1948, 0.0
      %v1954 = vsel %vm1272, %v1950, 0.0
      %v1955 = vpack.c.bf16 %v1912, %v1911
      %v1956 = vpack.c.bf16 %v1914, %v1913
      %v1957 = vpack.c.bf16 %v1924, %v1923
      %v1958 = vpack.c.bf16 %v1926, %v1925
      %v1959 = vpack.c.bf16 %v1928, %v1927
      %v1960 = vpack.c.bf16 %v1930, %v1929
      %v1961 = vpack.c.bf16 %v1940, %v1939
      %v1962 = vpack.c.bf16 %v1942, %v1941
      %v1963 = vpack.c.bf16 %v1952, %v1951
      %v1964 = vpack.c.bf16 %v1954, %v1953
      %s1965 = scalar_lea.vmem %s12, 32
      %v1966 = vld [vmem:[%s1965] sm:$0xff]
      %v1967 = vld [vmem:[%s1965 + $0x8] sm:$0xff]
      %v1968 = vld [vmem:[%s1965 + $0x10] sm:$0xff]
      %v1969 = vld [vmem:[%s1965 + $0x18] sm:$0xff]
      %s1970 = scalar_lea.vmem %s13, 32
      %v1971 = vld [vmem:[%s1970] sm:$0xff]
      %v1972 = vld [vmem:[%s1970 + $0x8] sm:$0xff]
      %v1973 = vld [vmem:[%s1970 + $0x10] sm:$0xff]
      %v1974 = vld [vmem:[%s1970 + $0x18] sm:$0xff]
      %1976 = vset.pattern.permute.xlu0 0
      %1977 = vperm.xlu0 %1976, %v1971
      %v1978 = vpop.permute.xlu0 %1977
      %1981 = vset.pattern.permute.xlu0 0
      %1982 = vperm.xlu0 %1981, %v1972
      %v1983 = vpop.permute.xlu0 %1982
      %1986 = vset.pattern.permute.xlu0 0
      %1987 = vperm.xlu0 %1986, %v1973
      %v1988 = vpop.permute.xlu0 %1987
      %1991 = vset.pattern.permute.xlu0 0
      %1992 = vperm.xlu0 %1991, %v1974
      %v1993 = vpop.permute.xlu0 %1992
      %v1999 = vunpack.c.l.b16 %v1966
      %v2000 = vunpack.c.h.b16 %v1966
      %v2001 = vunpack.c.l.b16 %v1967
      %v2002 = vunpack.c.h.b16 %v1967
      %v2003 = vunpack.c.l.b16 %v1968
      %v2004 = vunpack.c.h.b16 %v1968
      %v2005 = vunpack.c.l.b16 %v1969
      %v2006 = vunpack.c.h.b16 %v1969
      %v2007 = vpack.c.b16 %v2001, %v1999
      %v2008 = vpack.c.b16 %v2002, %v2000
      %v2009 = vpack.c.b16 %v2005, %v2003
      %v2010 = vpack.c.b16 %v2006, %v2004
      %v2014 = vsel %vm917, %v2008, 0
      %v2017 = vsel %vm917, %v2010, 0
      %2019 = vmatprep.subr.bf16.mxu0 0
      %2020 = vmatpush1.bf16.msra.mxu0 %v1955
      %2021 = vmatprep.subr.bf16.mxu0 0
      %2022 = vmatpush1.bf16.msra.mxu0 %v1956
      %2023 = vmatprep.subr.bf16.mxu0 0
      %2024 = vmatpush1.bf16.msra.mxu0 %v1957
      %2025 = vmatprep.subr.bf16.mxu0 0
      %2026 = vmatpush1.bf16.msra.mxu0 %v1958
      %2027 = vmatprep.subr.bf16.mxu0 0
      %2028 = vmatpush1.bf16.msra.mxu0 %v1959
      %2029 = vmatprep.subr.bf16.mxu0 0
      %2030 = vmatpush1.bf16.msra.mxu0 %v1960
      %2031 = vmatprep.subr.bf16.mxu0 0
      %2032 = vmatpush1.bf16.msra.mxu0 %v1961
      %2033 = vmatprep.subr.bf16.mxu0 0
      %2034 = vmatpush1.bf16.msra.mxu0 %v1962
      %2035 = vmatprep.subr.bf16.mxu0 0
      %2036 = vmatpush1.bf16.msra.mxu0 %v1963
      %2037 = vmatprep.subr.bf16.mxu0 0
      %2038 = vmatpush1.bf16.msra.mxu0 %v1964
      %2039 = vmatprep.subr.bf16.mxu0 0
      %2040 = vmatpush1.bf16.msra.mxu0 0
      %2041 = vmatprep.subr.bf16.mxu0 0
      %2042 = vmatpush1.bf16.msra.mxu0 0
      %2043 = vmatprep.subr.bf16.mxu0 0
      %2044 = vmatpush1.bf16.msra.mxu0 0
      %2045 = vmatprep.subr.bf16.mxu0 0
      %2046 = vmatpush1.bf16.msra.mxu0 0
      %2047 = vmatprep.subr.bf16.mxu0 0
      %2048 = vmatpush1.bf16.msra.mxu0 0
      %2049 = vmatprep.subr.bf16.mxu0 0
      %2050 = vmatpush1.bf16.msra.mxu0 0
      %2051 = vmatprep.mubr.bf16.mxu0 %v2014
      %2052 = vmatmul.mubr.bf16.gmra.mrb[0].mxu0 %v2007
      %v2053 = vpop.f32.mrb[0].mxu0
      %v2054 = vadd.f32 %v1978, %v2053
      %v2055 = vpop.f32.mrb[0].mxu0
      %v2056 = vpop.f32.mrb[0].mxu0
      %v2057 = vadd.f32 %v1983, %v2056
      %v2058 = vpop.f32.mrb[0].mxu0
      %2059 = vmatprep.mubr.bf16.mxu0 %v2017
      %2060 = vmatmul.mubr.bf16.gmra.mrb[0].mxu0 %v2009
      %v2061 = vpop.f32.mrb[0].mxu0
      %v2062 = vadd.f32 %v1988, %v2061
      %v2063 = vpop.f32.mrb[0].mxu0
      %v2064 = vpop.f32.mrb[0].mxu0
      %v2065 = vadd.f32 %v1993, %v2064
      %v2066 = vpop.f32.mrb[0].mxu0
      %2067 = vdwg.mxu0
      %v2068 = vmax.f32 %v2054, 0.0
      %v2069 = vmax.f32 %v2057, 0.0
      %v2070 = vmax.f32 %v2062, 0.0
      %v2071 = vmax.f32 %v2065, 0.0
      %s2072 = scalar_lea.vmem %s14, 16
      %v2073 = vld [vmem:[%s2072] sm:$0xf]
      %v2074 = vld [vmem:[%s2072 + $0x4] sm:$0xf]
      %v2075 = vld [vmem:[%s2072 + $0x8] sm:$0xf]
      %v2076 = vld [vmem:[%s2072 + $0xc] sm:$0xf]
      %v2077 = vpack.c.bf16 %v2069, %v2068
      %v2078 = vpack.c.bf16 %v2071, %v2070
      %s2079 = scalar_lea.vmem %s15, 32
      %v2080 = vld [vmem:[%s2079] sm:$0xff]
      %v2081 = vld [vmem:[%s2079 + $0x8] sm:$0xff]
      %v2082 = vld [vmem:[%s2079 + $0x10] sm:$0xff]
      %v2083 = vld [vmem:[%s2079 + $0x18] sm:$0xff]
      %2085 = vset.pattern.permute.xlu0 0
      %2086 = vperm.xlu0 %2085, %v2080
      %v2087 = vpop.permute.xlu0 %2086
      %2090 = vset.pattern.permute.xlu0 0
      %2091 = vperm.xlu0 %2090, %v2081
      %v2092 = vpop.permute.xlu0 %2091
      %2095 = vset.pattern.permute.xlu0 0
      %2096 = vperm.xlu0 %2095, %v2082
      %v2097 = vpop.permute.xlu0 %2096
      %2100 = vset.pattern.permute.xlu0 0
      %2101 = vperm.xlu0 %2100, %v2083
      %v2102 = vpop.permute.xlu0 %2101
      %v2108 = vunpack.c.l.b16 %v2073
      %v2109 = vunpack.c.l.b16 %v2074
      %v2110 = vunpack.c.l.b16 %v2075
      %v2111 = vunpack.c.l.b16 %v2076
      %v2112 = vpack.c.b16 %v2109, %v2108
      %v2113 = vpack.c.b16 %v2111, %v2110
      %v2115 = vsel %vm917, %v2112, 0
      %v2118 = vsel %vm917, %v2113, 0
      %2120 = vmatprep.subr.bf16.mxu0 0
      %2121 = vmatpush1.bf16.msra.mxu0 %v2077
      %2122 = vmatprep.subr.bf16.mxu0 0
      %2123 = vmatpush1.bf16.msra.mxu0 %v2078
      %2124 = vmatprep.subr.bf16.mxu0 0
      %2125 = vmatpush1.bf16.msra.mxu0 0
      %2126 = vmatprep.subr.bf16.mxu0 0
      %2127 = vmatpush1.bf16.msra.mxu0 0
      %2128 = vmatprep.subr.bf16.mxu0 0
      %2129 = vmatpush1.bf16.msra.mxu0 0
      %2130 = vmatprep.subr.bf16.mxu0 0
      %2131 = vmatpush1.bf16.msra.mxu0 0
      %2132 = vmatprep.subr.bf16.mxu0 0
      %2133 = vmatpush1.bf16.msra.mxu0 0
      %2134 = vmatprep.subr.bf16.mxu0 0
      %2135 = vmatpush1.bf16.msra.mxu0 0
      %2136 = vmatprep.subr.bf16.mxu0 0
      %2137 = vmatpush1.bf16.msra.mxu0 0
      %2138 = vmatprep.subr.bf16.mxu0 0
      %2139 = vmatpush1.bf16.msra.mxu0 0
      %2140 = vmatprep.subr.bf16.mxu0 0
      %2141 = vmatpush1.bf16.msra.mxu0 0
      %2142 = vmatprep.subr.bf16.mxu0 0
      %2143 = vmatpush1.bf16.msra.mxu0 0
      %2144 = vmatprep.subr.bf16.mxu0 0
      %2145 = vmatpush1.bf16.msra.mxu0 0
      %2146 = vmatprep.subr.bf16.mxu0 0
      %2147 = vmatpush1.bf16.msra.mxu0 0
      %2148 = vmatprep.subr.bf16.mxu0 0
      %2149 = vmatpush1.bf16.msra.mxu0 0
      %2150 = vmatprep.subr.bf16.mxu0 0
      %2151 = vmatpush1.bf16.msra.mxu0 0
      %2152 = vmatprep.mubr.bf16.mxu0 0
      %2153 = vmatmul.mubr.bf16.gmra.mrb[0].mxu0 %v2115
      %v2154 = vpop.f32.mrb[0].mxu0
      %v2155 = vadd.f32 %v2087, %v2154
      %v2156 = vpop.f32.mrb[0].mxu0
      %v2157 = vpop.f32.mrb[0].mxu0
      %v2158 = vadd.f32 %v2092, %v2157
      %v2159 = vpop.f32.mrb[0].mxu0
      %2160 = vmatprep.mubr.bf16.mxu0 0
      %2161 = vmatmul.mubr.bf16.gmra.mrb[0].mxu0 %v2118
      %v2162 = vpop.f32.mrb[0].mxu0
      %v2163 = vadd.f32 %v2097, %v2162
      %v2164 = vpop.f32.mrb[0].mxu0
      %v2165 = vpop.f32.mrb[0].mxu0
      %v2166 = vadd.f32 %v2102, %v2165
      %v2167 = vpop.f32.mrb[0].mxu0
      %2168 = vdwg.mxu0
      %v2169 = vadd.f32 %v1899, %v2155
      %v2170 = vadd.f32 %v1900, %v2158
      %v2171 = vadd.f32 %v1901, %v2163
      %v2172 = vadd.f32 %v1902, %v2166
      %v2173 = vmul.f32 %v2169, %v981
      %v2174 = vmul.f32 %v2170, %v981
      %v2175 = vmul.f32 %v2171, %v981
      %v2176 = vmul.f32 %v2172, %v981
      %2177 = vrot.lane.b32.xlu0 %v2173, 8
      %v2178 = vpop.permute.xlu0 %2177
      %2179 = vrot.lane.b32.xlu0 %v2174, 8
      %v2180 = vpop.permute.xlu0 %2179
      %2181 = vrot.lane.b32.xlu0 %v2175, 8
      %v2182 = vpop.permute.xlu0 %2181
      %2183 = vrot.lane.b32.xlu0 %v2176, 8
      %v2184 = vpop.permute.xlu0 %2183
      %v2185 = vadd.s32 %v629, 4294967288
      %vm2186 = vcmp.ge.s32.totalorder %v2185, 0
      %vm2187 = vcmp.lt.s32.totalorder %v2185, 16
      %vm2188 = vmand %vm2186, %vm2187
      %v2189 = vsel %vm2188, 1, 0
      %vm2190 = vcmp.eq.s32.totalorder %v2189, 1
      %v2191 = vsel %vm2190, %v2178, 0.0
      %v2192 = vsel %vm2190, %v2180, 0.0
      %v2193 = vsel %vm2190, %v2182, 0.0
      %v2194 = vsel %vm2190, %v2184, 0.0
      %2195 = vrot.lane.b32.xlu0 %v2173, 4
      %v2196 = vpop.permute.xlu0 %2195
      %2197 = vrot.lane.b32.xlu0 %v2174, 4
      %v2198 = vpop.permute.xlu0 %2197
      %2199 = vrot.lane.b32.xlu0 %v2175, 4
      %v2200 = vpop.permute.xlu0 %2199
      %2201 = vrot.lane.b32.xlu0 %v2176, 4
      %v2202 = vpop.permute.xlu0 %2201
      %v2203 = vsel %vm1250, %v2196, 0.0
      %v2204 = vsel %vm1250, %v2198, 0.0
      %v2205 = vsel %vm1250, %v2200, 0.0
      %v2206 = vsel %vm1250, %v2202, 0.0
      %v2207 = vsel %vm750, %v2173, 0.0
      %v2208 = vsel %vm750, %v2174, 0.0
      %v2209 = vsel %vm750, %v2175, 0.0
      %v2210 = vsel %vm750, %v2176, 0.0
      %2211 = vrot.lane.b32.xlu0 %v2173, 124
      %v2212 = vpop.permute.xlu0 %2211
      %2213 = vrot.lane.b32.xlu0 %v2174, 124
      %v2214 = vpop.permute.xlu0 %2213
      %2215 = vrot.lane.b32.xlu0 %v2175, 124
      %v2216 = vpop.permute.xlu0 %2215
      %2217 = vrot.lane.b32.xlu0 %v2176, 124
      %v2218 = vpop.permute.xlu0 %2217
      %v2219 = vsel %vm1272, %v2212, 0.0
      %v2220 = vsel %vm1272, %v2214, 0.0
      %v2221 = vsel %vm1272, %v2216, 0.0
      %v2222 = vsel %vm1272, %v2218, 0.0
      %2223 = vrot.lane.b32.xlu0 %v2173, 120
      %v2224 = vpop.permute.xlu0 %2223
      %2225 = vrot.lane.b32.xlu0 %v2174, 120
      %v2226 = vpop.permute.xlu0 %2225
      %2227 = vrot.lane.b32.xlu0 %v2175, 120
      %v2228 = vpop.permute.xlu0 %2227
      %2229 = vrot.lane.b32.xlu0 %v2176, 120
      %v2230 = vpop.permute.xlu0 %2229
      %v2231 = vadd.s32 %v629, 8
      %vm2232 = vcmp.ge.s32.totalorder %v2231, 0
      %vm2233 = vcmp.lt.s32.totalorder %v2231, 16
      %vm2234 = vmand %vm2232, %vm2233
      %v2235 = vsel %vm2234, 1, 0
      %vm2236 = vcmp.eq.s32.totalorder %v2235, 1
      %v2237 = vsel %vm2236, %v2224, 0.0
      %v2238 = vsel %vm2236, %v2226, 0.0
      %v2239 = vsel %vm2236, %v2228, 0.0
      %v2240 = vsel %vm2236, %v2230, 0.0
      %v2241 = vpack.c.bf16 %v2192, %v2191
      %v2242 = vpack.c.bf16 %v2194, %v2193
      %v2243 = vpack.c.bf16 %v2204, %v2203
      %v2244 = vpack.c.bf16 %v2206, %v2205
      %v2245 = vpack.c.bf16 %v2208, %v2207
      %v2246 = vpack.c.bf16 %v2210, %v2209
      %v2247 = vpack.c.bf16 %v2220, %v2219
      %v2248 = vpack.c.bf16 %v2222, %v2221
      %v2249 = vpack.c.bf16 %v2238, %v2237
      %v2250 = vpack.c.bf16 %v2240, %v2239
      %s2251 = scalar_lea.vmem %s12, 64
      %v2252 = vld [vmem:[%s2251] sm:$0xff]
      %v2253 = vld [vmem:[%s2251 + $0x8] sm:$0xff]
      %v2254 = vld [vmem:[%s2251 + $0x10] sm:$0xff]
      %v2255 = vld [vmem:[%s2251 + $0x18] sm:$0xff]
      %s2256 = scalar_lea.vmem %s13, 64
      %v2257 = vld [vmem:[%s2256] sm:$0xff]
      %v2258 = vld [vmem:[%s2256 + $0x8] sm:$0xff]
      %v2259 = vld [vmem:[%s2256 + $0x10] sm:$0xff]
      %v2260 = vld [vmem:[%s2256 + $0x18] sm:$0xff]
      %2262 = vset.pattern.permute.xlu0 0
      %2263 = vperm.xlu0 %2262, %v2257
      %v2264 = vpop.permute.xlu0 %2263
      %2267 = vset.pattern.permute.xlu0 0
      %2268 = vperm.xlu0 %2267, %v2258
      %v2269 = vpop.permute.xlu0 %2268
      %2272 = vset.pattern.permute.xlu0 0
      %2273 = vperm.xlu0 %2272, %v2259
      %v2274 = vpop.permute.xlu0 %2273
      %2277 = vset.pattern.permute.xlu0 0
      %2278 = vperm.xlu0 %2277, %v2260
      %v2279 = vpop.permute.xlu0 %2278
      %v2285 = vunpack.c.l.b16 %v2252
      %v2286 = vunpack.c.h.b16 %v2252
      %v2287 = vunpack.c.l.b16 %v2253
      %v2288 = vunpack.c.h.b16 %v2253
      %v2289 = vunpack.c.l.b16 %v2254
      %v2290 = vunpack.c.h.b16 %v2254
      %v2291 = vunpack.c.l.b16 %v2255
      %v2292 = vunpack.c.h.b16 %v2255
      %v2293 = vpack.c.b16 %v2287, %v2285
      %v2294 = vpack.c.b16 %v2288, %v2286
      %v2295 = vpack.c.b16 %v2291, %v2289
      %v2296 = vpack.c.b16 %v2292, %v2290
      %v2300 = vsel %vm917, %v2294, 0
      %v2303 = vsel %vm917, %v2296, 0
      %2305 = vmatprep.subr.bf16.mxu0 0
      %2306 = vmatpush1.bf16.msra.mxu0 %v2241
      %2307 = vmatprep.subr.bf16.mxu0 0
      %2308 = vmatpush1.bf16.msra.mxu0 %v2242
      %2309 = vmatprep.subr.bf16.mxu0 0
      %2310 = vmatpush1.bf16.msra.mxu0 %v2243
      %2311 = vmatprep.subr.bf16.mxu0 0
      %2312 = vmatpush1.bf16.msra.mxu0 %v2244
      %2313 = vmatprep.subr.bf16.mxu0 0
      %2314 = vmatpush1.bf16.msra.mxu0 %v2245
      %2315 = vmatprep.subr.bf16.mxu0 0
      %2316 = vmatpush1.bf16.msra.mxu0 %v2246
      %2317 = vmatprep.subr.bf16.mxu0 0
      %2318 = vmatpush1.bf16.msra.mxu0 %v2247
      %2319 = vmatprep.subr.bf16.mxu0 0
      %2320 = vmatpush1.bf16.msra.mxu0 %v2248
      %2321 = vmatprep.subr.bf16.mxu0 0
      %2322 = vmatpush1.bf16.msra.mxu0 %v2249
      %2323 = vmatprep.subr.bf16.mxu0 0
      %2324 = vmatpush1.bf16.msra.mxu0 %v2250
      %2325 = vmatprep.subr.bf16.mxu0 0
      %2326 = vmatpush1.bf16.msra.mxu0 0
      %2327 = vmatprep.subr.bf16.mxu0 0
      %2328 = vmatpush1.bf16.msra.mxu0 0
      %2329 = vmatprep.subr.bf16.mxu0 0
      %2330 = vmatpush1.bf16.msra.mxu0 0
      %2331 = vmatprep.subr.bf16.mxu0 0
      %2332 = vmatpush1.bf16.msra.mxu0 0
      %2333 = vmatprep.subr.bf16.mxu0 0
      %2334 = vmatpush1.bf16.msra.mxu0 0
      %2335 = vmatprep.subr.bf16.mxu0 0
      %2336 = vmatpush1.bf16.msra.mxu0 0
      %2337 = vmatprep.mubr.bf16.mxu0 %v2300
      %2338 = vmatmul.mubr.bf16.gmra.mrb[0].mxu0 %v2293
      %v2339 = vpop.f32.mrb[0].mxu0
      %v2340 = vadd.f32 %v2264, %v2339
      %v2341 = vpop.f32.mrb[0].mxu0
      %v2342 = vpop.f32.mrb[0].mxu0
      %v2343 = vadd.f32 %v2269, %v2342
      %v2344 = vpop.f32.mrb[0].mxu0
      %2345 = vmatprep.mubr.bf16.mxu0 %v2303
      %2346 = vmatmul.mubr.bf16.gmra.mrb[0].mxu0 %v2295
      %v2347 = vpop.f32.mrb[0].mxu0
      %v2348 = vadd.f32 %v2274, %v2347
      %v2349 = vpop.f32.mrb[0].mxu0
      %v2350 = vpop.f32.mrb[0].mxu0
      %v2351 = vadd.f32 %v2279, %v2350
      %v2352 = vpop.f32.mrb[0].mxu0
      %2353 = vdwg.mxu0
      %v2354 = vmax.f32 %v2340, 0.0
      %v2355 = vmax.f32 %v2343, 0.0
      %v2356 = vmax.f32 %v2348, 0.0
      %v2357 = vmax.f32 %v2351, 0.0
      %s2358 = scalar_lea.vmem %s14, 32
      %v2359 = vld [vmem:[%s2358] sm:$0xf]
      %v2360 = vld [vmem:[%s2358 + $0x4] sm:$0xf]
      %v2361 = vld [vmem:[%s2358 + $0x8] sm:$0xf]
      %v2362 = vld [vmem:[%s2358 + $0xc] sm:$0xf]
      %v2363 = vpack.c.bf16 %v2355, %v2354
      %v2364 = vpack.c.bf16 %v2357, %v2356
      %s2365 = scalar_lea.vmem %s15, 64
      %v2366 = vld [vmem:[%s2365] sm:$0xff]
      %v2367 = vld [vmem:[%s2365 + $0x8] sm:$0xff]
      %v2368 = vld [vmem:[%s2365 + $0x10] sm:$0xff]
      %v2369 = vld [vmem:[%s2365 + $0x18] sm:$0xff]
      %2371 = vset.pattern.permute.xlu0 0
      %2372 = vperm.xlu0 %2371, %v2366
      %v2373 = vpop.permute.xlu0 %2372
      %2376 = vset.pattern.permute.xlu0 0
      %2377 = vperm.xlu0 %2376, %v2367
      %v2378 = vpop.permute.xlu0 %2377
      %2381 = vset.pattern.permute.xlu0 0
      %2382 = vperm.xlu0 %2381, %v2368
      %v2383 = vpop.permute.xlu0 %2382
      %2386 = vset.pattern.permute.xlu0 0
      %2387 = vperm.xlu0 %2386, %v2369
      %v2388 = vpop.permute.xlu0 %2387
      %v2394 = vunpack.c.l.b16 %v2359
      %v2395 = vunpack.c.l.b16 %v2360
      %v2396 = vunpack.c.l.b16 %v2361
      %v2397 = vunpack.c.l.b16 %v2362
      %v2398 = vpack.c.b16 %v2395, %v2394
      %v2399 = vpack.c.b16 %v2397, %v2396
      %v2401 = vsel %vm917, %v2398, 0
      %v2404 = vsel %vm917, %v2399, 0
      %2406 = vmatprep.subr.bf16.mxu0 0
      %2407 = vmatpush1.bf16.msra.mxu0 %v2363
      %2408 = vmatprep.subr.bf16.mxu0 0
      %2409 = vmatpush1.bf16.msra.mxu0 %v2364
      %2410 = vmatprep.subr.bf16.mxu0 0
      %2411 = vmatpush1.bf16.msra.mxu0 0
      %2412 = vmatprep.subr.bf16.mxu0 0
      %2413 = vmatpush1.bf16.msra.mxu0 0
      %2414 = vmatprep.subr.bf16.mxu0 0
      %2415 = vmatpush1.bf16.msra.mxu0 0
      %2416 = vmatprep.subr.bf16.mxu0 0
      %2417 = vmatpush1.bf16.msra.mxu0 0
      %2418 = vmatprep.subr.bf16.mxu0 0
      %2419 = vmatpush1.bf16.msra.mxu0 0
      %2420 = vmatprep.subr.bf16.mxu0 0
      %2421 = vmatpush1.bf16.msra.mxu0 0
      %2422 = vmatprep.subr.bf16.mxu0 0
      %2423 = vmatpush1.bf16.msra.mxu0 0
      %2424 = vmatprep.subr.bf16.mxu0 0
      %2425 = vmatpush1.bf16.msra.mxu0 0
      %2426 = vmatprep.subr.bf16.mxu0 0
      %2427 = vmatpush1.bf16.msra.mxu0 0
      %2428 = vmatprep.subr.bf16.mxu0 0
      %2429 = vmatpush1.bf16.msra.mxu0 0
      %2430 = vmatprep.subr.bf16.mxu0 0
      %2431 = vmatpush1.bf16.msra.mxu0 0
      %2432 = vmatprep.subr.bf16.mxu0 0
      %2433 = vmatpush1.bf16.msra.mxu0 0
      %2434 = vmatprep.subr.bf16.mxu0 0
      %2435 = vmatpush1.bf16.msra.mxu0 0
      %2436 = vmatprep.subr.bf16.mxu0 0
      %2437 = vmatpush1.bf16.msra.mxu0 0
      %2438 = vmatprep.mubr.bf16.mxu0 0
      %2439 = vmatmul.mubr.bf16.gmra.mrb[0].mxu0 %v2401
      %v2440 = vpop.f32.mrb[0].mxu0
      %v2441 = vadd.f32 %v2373, %v2440
      %v2442 = vpop.f32.mrb[0].mxu0
      %v2443 = vpop.f32.mrb[0].mxu0
      %v2444 = vadd.f32 %v2378, %v2443
      %v2445 = vpop.f32.mrb[0].mxu0
      %2446 = vmatprep.mubr.bf16.mxu0 0
      %2447 = vmatmul.mubr.bf16.gmra.mrb[0].mxu0 %v2404
      %v2448 = vpop.f32.mrb[0].mxu0
      %v2449 = vadd.f32 %v2383, %v2448
      %v2450 = vpop.f32.mrb[0].mxu0
      %v2451 = vpop.f32.mrb[0].mxu0
      %v2452 = vadd.f32 %v2388, %v2451
      %v2453 = vpop.f32.mrb[0].mxu0
      %2454 = vdwg.mxu0
      %v2455 = vadd.f32 %v2173, %v2441
      %v2456 = vadd.f32 %v2174, %v2444
      %v2457 = vadd.f32 %v2175, %v2449
      %v2458 = vadd.f32 %v2176, %v2452
      %v2459 = vmul.f32 %v2455, %v981
      %v2460 = vmul.f32 %v2456, %v981
      %v2461 = vmul.f32 %v2457, %v981
      %v2462 = vmul.f32 %v2458, %v981
      %v2463 = vld [vmem:[%s16] sm:$0x7]
      %v2464 = vpack.c.bf16 %v2460, %v2459
      %v2465 = vpack.c.bf16 %v2462, %v2461
      %v2466 = vld [vmem:[%s17] sm:$0x1f]
      %2468 = vset.pattern.permute.xlu0 0
      %2469 = vperm.xlu0 %2468, %v2466
      %v2470 = vpop.permute.xlu0 %2469
      %v2473 = vsel %vm917, %v2463, 0
      %2475 = vmatprep.subr.bf16.mxu0 0
      %2476 = vmatpush1.bf16.msra.mxu0 %v2464
      %2477 = vmatprep.subr.bf16.mxu0 0
      %2478 = vmatpush1.bf16.msra.mxu0 %v2465
      %2479 = vmatprep.subr.bf16.mxu0 0
      %2480 = vmatpush1.bf16.msra.mxu0 0
      %2481 = vmatprep.subr.bf16.mxu0 0
      %2482 = vmatpush1.bf16.msra.mxu0 0
      %2483 = vmatprep.subr.bf16.mxu0 0
      %2484 = vmatpush1.bf16.msra.mxu0 0
      %2485 = vmatprep.subr.bf16.mxu0 0
      %2486 = vmatpush1.bf16.msra.mxu0 0
      %2487 = vmatprep.subr.bf16.mxu0 0
      %2488 = vmatpush1.bf16.msra.mxu0 0
      %2489 = vmatprep.subr.bf16.mxu0 0
      %2490 = vmatpush1.bf16.msra.mxu0 0
      %2491 = vmatprep.subr.bf16.mxu0 0
      %2492 = vmatpush1.bf16.msra.mxu0 0
      %2493 = vmatprep.subr.bf16.mxu0 0
      %2494 = vmatpush1.bf16.msra.mxu0 0
      %2495 = vmatprep.subr.bf16.mxu0 0
      %2496 = vmatpush1.bf16.msra.mxu0 0
      %2497 = vmatprep.subr.bf16.mxu0 0
      %2498 = vmatpush1.bf16.msra.mxu0 0
      %2499 = vmatprep.subr.bf16.mxu0 0
      %2500 = vmatpush1.bf16.msra.mxu0 0
      %2501 = vmatprep.subr.bf16.mxu0 0
      %2502 = vmatpush1.bf16.msra.mxu0 0
      %2503 = vmatprep.subr.bf16.mxu0 0
      %2504 = vmatpush1.bf16.msra.mxu0 0
      %2505 = vmatprep.subr.bf16.mxu0 0
      %2506 = vmatpush1.bf16.msra.mxu0 0
      %2507 = vmatprep.mubr.bf16.mxu0 0
      %2508 = vmatmul.mubr.bf16.gmra.mrb[0].mxu0 %v2473
      %v2509 = vpop.f32.mrb[0].mxu0
      %v2510 = vadd.f32 %v2470, %v2509
      %v2511 = vpop.f32.mrb[0].mxu0
      %v2512 = vpop.f32.mrb[0].mxu0
      %v2513 = vpop.f32.mrb[0].mxu0
      %2514 = vdwg.mxu0
      %v2515 = vmul.f32 %v2510, %v981
      %v2516 = vadd.f32 %v1483, %v2459
      %v2517 = vadd.f32 %v1484, %v2460
      %v2518 = vadd.f32 %v1485, %v2461
      %v2519 = vadd.f32 %v1486, %v2462
      %2520 = vst [vmem:[%s620] sm:$0xff] %v2516
      %2521 = vst [vmem:[%s620 + $0x8] sm:$0xff] %v2517
      %2522 = vst [vmem:[%s620 + $0x10] sm:$0xff] %v2518
      %2523 = vst [vmem:[%s620 + $0x18] sm:$0xff] %v2519
      %v2524 = vadd.f32 %v1539, %v2515
      %2525 = vst [vmem:[%s624] sm:$0x1f] %v2524
      %p2526 = scmp.lt.s32.totalorder %s31, 1
      %s2527 = scalar_select %p2526, %s31, 1
      %s2528 = smul.addr %s2527, 4
      %s2529 = smul.addr %s2528, 8
      %s2530 = scalar_lea.vmem %s18, %s2529
      %p2531 = scmp.lt.s32.totalorder %s31, 1
      %s2532 = scalar_select %p2531, %s31, 1
      %s2533 = smul.addr %s2532, 8
      %s2534 = scalar_lea.vmem %s19, %s2533
      // Predicated region
      $region93: #{tower_forward.1} parent=91 // pred_check
        %p2535 = pneg %p437
      $region94: #{tower_forward.1} parent=91 // pred_check_branch
        %2537 = sbr.rel (%p2535) target = $region96
      $region95: #{tower_forward.1} parent=91 // pred_region
        _
      $region96: #{tower_forward.1} parent=91 // pred_fallthru
        _
      // Predicated region
      $region97: #{tower_forward.1} parent=91 // pred_check
        %p2538 = pneg %p463
      $region98: #{tower_forward.1} parent=91 // pred_check_branch
        %2540 = sbr.rel (%p2538) target = $region100
      $region99: #{tower_forward.1} parent=91 // pred_region
        _
      $region100: #{tower_forward.1} parent=91 // pred_fallthru
        _
    $region92: #{tower_forward.1} parent=5 // pred_fallthru
      _
    %p2541 = scmp.le.s32.totalorder 2, %s26
    // Predicated region
    $region101: #{tower_forward.1} parent=5 // pred_check
      %p2542 = pneg %p2541
    $region102: #{tower_forward.1} parent=5 // pred_check_branch
      %2544 = sbr.rel (%p2542) target = $region104
    $region103: #{tower_forward.1} parent=5 // pred_region
      %s2545 = ssub.s32 %s26, 2
      // Predicated region
      $region105: #{tower_forward.1} parent=103 // pred_check
        %p2546 = pneg %p443
      $region106: #{tower_forward.1} parent=103 // pred_check_branch
        %2548 = sbr.rel (%p2546) target = $region108
      $region107: #{tower_forward.1} parent=103 // pred_region
        %p2549 = scmp.lt.s32.totalorder %s32, 1
        %s2550 = scalar_select %p2549, %s32, 1
        %s2551 = smul.addr %s2550, 4
        %s2552 = smul.addr %s2551, 8
        %s2553 = scalar_lea.vmem %s18, %s2552
      $region108: #{tower_forward.1} parent=103 // pred_fallthru
        _
      // Predicated region
      $region109: #{tower_forward.1} parent=103 // pred_check
        %p2554 = pneg %p469
      $region110: #{tower_forward.1} parent=103 // pred_check_branch
        %2556 = sbr.rel (%p2554) target = $region112
      $region111: #{tower_forward.1} parent=103 // pred_region
        %p2557 = scmp.lt.s32.totalorder %s32, 1
        %s2558 = scalar_select %p2557, %s32, 1
        %s2559 = smul.addr %s2558, 8
        %s2560 = scalar_lea.vmem %s19, %s2559
      $region112: #{tower_forward.1} parent=103 // pred_fallthru
        _
    $region104: #{tower_forward.1} parent=5 // pred_fallthru
      _
  $region6: #{tower_forward.1} parent=0 // loop_footer
    %s30 = sadd.s32 1, %s26
  $region7: #{tower_forward.1} parent=0 // loop_footer_branch
    %25 = sbr.rel target = $region3
  $region8: #{tower_forward.1} parent=0 // loop_exit
    _

</llo_original>
